<compile_context>
chip_gen: v5e
topology: v5e:2x2
jax: 0.10.0
libtpu: 0.0.40
codegen_flags: <defaults>
</compile_context>

<pallas_src>
import functools

import numpy as np
import jax
import jax.numpy as jnp
from jax import lax
from jax.experimental import pallas as pl
from jax.experimental.pallas import tpu as pltpu

QUBITS = 4             # env QUBITS default
Q_DEPTH = 6            # env Q_DEPTH default
DIM = 1 << QUBITS      # statevector dimension = 16
LANES = 128
B_TILE = 1024          # max batch tile (batch maps to lanes)

_HI = lax.Precision.HIGHEST


# ----------------------------------------------------------- module constants
_IDX = np.arange(DIM)
_BITS_IQ = ((_IDX[:, None] >> np.arange(QUBITS)[None, :]) & 1).astype(np.float32)  # [DIM, Q]

# Per-qubit [DIM, DIM] masks for the column-convention RY layer matrix:
#   M_l[i, j] = prod_q ( SAME_q[i,j]*cos(th[q,l]/2) + DIFF_q[i,j]*sin(th[q,l]/2) )
_SAME_Q = np.transpose(
    (_BITS_IQ[:, None, :] == _BITS_IQ[None, :, :]).astype(np.float32), (2, 0, 1))   # [Q,DIM,DIM]
_DIFF_Q = np.transpose(
    (_BITS_IQ[:, None, :] - _BITS_IQ[None, :, :]).astype(np.float32), (2, 0, 1))    # [Q,DIM,DIM]

# <Z_q> projector (column convention): [Q, DIM], +1 where bit_q == 0 else -1.
_ZSGN_COL = (1.0 - 2.0 * _BITS_IQ.T).astype(np.float32)


# constants for the gate-by-gate pure-JAX reference only -----------------------
def _flip_perm(q):
    P = np.zeros((DIM, DIM), np.float32)
    for j in range(DIM):
        P[j, j ^ (1 << q)] = 1.0
    return P


def _cnot_perm(c, t):
    P = np.zeros((DIM, DIM), np.float32)
    for j in range(DIM):
        P[j, j ^ (((j >> c) & 1) << t)] = 1.0
    return P


def _ring_perm():
    P = np.eye(DIM, dtype=np.float32)
    for c in range(QUBITS):
        P = P @ _cnot_perm(c, (c + 1) % QUBITS)
    return P


_SIGNS = np.stack([np.where(((_IDX >> q) & 1) == 1, 1.0, -1.0)
                   for q in range(QUBITS)]).astype(np.float32)        # [Q, DIM]
_PFLIP = np.stack([_flip_perm(q) for q in range(QUBITS)])             # [Q,DIM,DIM]
_PRING = _ring_perm()
_ZSGN = _ZSGN_COL.T.copy()                                            # [DIM, Q]


def _round_up(v, m):
    return -(-v // m) * m


# --------------------------------------------------------------------- kernel
def _hybrid_kernel(x_ref, w_ref, b_ref, layers_ref, zsgn_ref, out_ref, *,
                   use_residual):
    # x_ref: [F, Bt]  -- batch on lanes, everything below stays lane-dense.
    x = x_ref[...].astype(jnp.float32)

    # fused classical encoder (+ optional residual skip): one MXU op, N = Bt.
    y = jnp.dot(w_ref[...], x, preferred_element_type=jnp.float32,
                precision=_HI) + b_ref[...]                   # [(1+r)*Q, Bt]
    enc = y[:QUBITS, :]                                       # [Q, Bt]

    half = jnp.tanh(enc) * (np.pi / 4.0)                      # (tanh*pi/2)/2
    c = jnp.cos(half)                                         # [Q, Bt]
    s = jnp.sin(half)

    # angle-embedding product state: state[i, b] = prod_q (bit_q(i) ? s : c)
    row = lax.broadcasted_iota(jnp.int32, (DIM, 1), 0)        # [DIM, 1]
    state = None
    for q in range(QUBITS):
        bit = ((row >> q) & 1).astype(jnp.float32)            # [DIM, 1]
        cq = c[q:q + 1, :]                                     # [1, Bt]
        sq = s[q:q + 1, :]
        fac = cq + bit * (sq - cq)                             # [DIM, Bt]
        state = fac if state is None else state * fac

    # CNOT-ring permutation (column convention), built from iota in-kernel.
    rr = lax.broadcasted_iota(jnp.int32, (DIM, DIM), 0)
    cc = lax.broadcasted_iota(jnp.int32, (DIM, DIM), 1)
    f = cc
    for ctrl in range(QUBITS):
        tgt = (ctrl + 1) % QUBITS
        f = f ^ (((f >> ctrl) & 1) << tgt)
    ring = (rr == f).astype(jnp.float32)                       # [DIM, DIM]

    # fold Q_DEPTH x [RY layer + CNOT ring] into one matrix (tiny MXU dots;
    # batch-independent but recomputed per block -- blocks are few and this is
    # parallel-safe, no cross-block state).
    u = None
    for l in range(Q_DEPTH):
        m = jnp.dot(ring, layers_ref[l], preferred_element_type=jnp.float32,
                    precision=_HI)
        u = m if u is None else jnp.dot(m, u, preferred_element_type=jnp.float32,
                                        precision=_HI)

    # apply the variational block and project onto <Z_q>.
    state = jnp.dot(u, state, preferred_element_type=jnp.float32,
                    precision=_HI)                             # [DIM, Bt]
    probs = state * state
    q_out = jnp.dot(zsgn_ref[...], probs, preferred_element_type=jnp.float32,
                    precision=_HI)                             # [Q, Bt]
    if use_residual:
        q_out = q_out + y[QUBITS:2 * QUBITS, :]

    out_ref[...] = q_out.astype(out_ref.dtype)                 # lane-dense store


# -------------------------------------------------------------------- wrapper
@functools.partial(jax.jit, static_argnames=("use_residual",))
def hybrid_qnn_forward(x, params, use_residual):
    x = x.astype(jnp.float32)
    B, F = x.shape

    # ---- batch tiling: lane-dense tiles; >=2 blocks for medium/large batches
    # so v7x's two TensorCores both engage; single biggest tile otherwise.
    b_full = _round_up(B, LANES)
    if b_full <= 2 * LANES:
        bt = b_full
    elif b_full <= 2 * B_TILE:
        bt = _round_up(-(-B // 2), LANES)
    else:
        bt = B_TILE
    n_blocks = -(-B // bt)
    b_pad = n_blocks * bt

    xt = x.T                                                   # [F, B]
    if b_pad != B:
        xt = jnp.pad(xt, ((0, 0), (0, b_pad - B)))

    # ---- fused encoder (+ skip) weights: [(1+r)*Q, F], bias [(1+r)*Q, 1]
    if use_residual:
        w_all = jnp.concatenate([params["w_enc"], params["w_skip"]], axis=0)
        b_all = jnp.concatenate([params["b_enc"].reshape(QUBITS, 1),
                                 params["b_skip"].reshape(QUBITS, 1)], axis=0)
    else:
        w_all = params["w_enc"]
        b_all = params["b_enc"].reshape(QUBITS, 1)
    w_all = w_all.astype(jnp.float32)
    b_all = b_all.astype(jnp.float32)
    nw = w_all.shape[0]

    # ---- per-layer RY matrices (column convention): pure element-wise math,
    # no XLA dots; all matmuls happen inside the kernel.
    qp = params["q_params"].astype(jnp.float32)                # [Q, L]
    cos_l = jnp.cos(qp * 0.5).T[:, :, None, None]              # [L, Q, 1, 1]
    sin_l = jnp.sin(qp * 0.5).T[:, :, None, None]
    factors = (jnp.asarray(_SAME_Q)[None] * cos_l
               + jnp.asarray(_DIFF_Q)[None] * sin_l)           # [L, Q, DIM, DIM]
    layer_mats = jnp.prod(factors, axis=1)                     # [L, DIM, DIM]

    kernel = functools.partial(_hybrid_kernel, use_residual=use_residual)

    out = pl.pallas_call(
        kernel,
        out_shape=jax.ShapeDtypeStruct((QUBITS, b_pad), jnp.float32),
        grid=(n_blocks,),
        in_specs=[
            pl.BlockSpec((F, bt), lambda i: (0, i)),                 # x^T (batch on lanes)
            pl.BlockSpec((nw, F), lambda i: (0, 0)),                 # fused enc(+skip) weights
            pl.BlockSpec((nw, 1), lambda i: (0, 0)),                 # fused bias
            pl.BlockSpec((Q_DEPTH, DIM, DIM), lambda i: (0, 0, 0)),  # RY layer matrices
            pl.BlockSpec((QUBITS, DIM), lambda i: (0, 0)),           # Z-sign projector
        ],
        out_specs=pl.BlockSpec((QUBITS, bt), lambda i: (0, i)),      # lane-dense output
        compiler_params=pltpu.CompilerParams(
            dimension_semantics=("parallel",)),
    )(xt, w_all, b_all, layer_mats, jnp.asarray(_ZSGN_COL))

    return out[:, :B].T                                        # [B, QUBITS]


# ---------------------------------------------------------- pure-JAX reference
def ref_forward(x, params, use_residual):
    """Gate-by-gate reference (validates the product-state + layer folding)."""
    x = x.astype(jnp.float32)
    B = x.shape[0]
    pflip = jnp.asarray(_PFLIP)
    signs = jnp.asarray(_SIGNS)
    pring = jnp.asarray(_PRING)
    zsgn = jnp.asarray(_ZSGN)

    enc = jnp.dot(x, params["w_enc"].T, precision=_HI) + params["b_enc"]
    q_in = jnp.tanh(enc) * (np.pi / 2.0)

    state = jnp.zeros((B, DIM), jnp.float32).at[:, 0].set(1.0)

    def apply_ry(st, q, c, s):
        flipped = jnp.dot(st, pflip[q], precision=_HI)
        return c * st + signs[q][None, :] * s * flipped

    c_emb, s_emb = jnp.cos(q_in * 0.5), jnp.sin(q_in * 0.5)
    for q in range(QUBITS):
        state = apply_ry(state, q, c_emb[:, q:q + 1], s_emb[:, q:q + 1])

    qp = params["q_params"]
    c_var, s_var = jnp.cos(qp * 0.5), jnp.sin(qp * 0.5)
    for l in range(Q_DEPTH):
        for q in range(QUBITS):
            state = apply_ry(state, q, c_var[q, l], s_var[q, l])
        state = jnp.dot(state, pring, precision=_HI)

    q_out = jnp.dot(state * state, zsgn, precision=_HI)
    if use_residual:
        q_out = q_out + jnp.dot(x, params["w_skip"].T, precision=_HI) \
                + params["b_skip"]
    return q_out


# ----------------------------------------------------------------------- main
if __name__ == "__main__":
    # TODO(synk): reference PennyLane circuit registry (`get_q_circuit`) and
    # circuit drawing are external / logging-only; a BasicEntangler-style
    # RY + CNOT-ring circuit is simulated explicitly here.
    key = jax.random.PRNGKey(0)
    B, in_features = 8, 16
    k1, k2, k3, k4, k5, k6, k7 = jax.random.split(key, 7)

    x = jax.random.normal(k1, (B, in_features), jnp.float32)

    lim_lin = float(np.sqrt(6.0 / (in_features + QUBITS)))   # xavier-ish limits
    lim_qp = float(np.sqrt(6.0 / (QUBITS + Q_DEPTH)))
    params = {
        # nn.Linear(in_features, qubits): weight [Q, F], bias [1, Q]
        "w_enc": jax.random.uniform(k2, (QUBITS, in_features), jnp.float32,
                                    -lim_lin, lim_lin),
        "b_enc": jax.random.uniform(k3, (1, QUBITS), jnp.float32, -0.1, 0.1),
        # xavier_uniform_(randn(qubits, q_depth))
        "q_params": jax.random.uniform(k4, (QUBITS, Q_DEPTH), jnp.float32,
                                       -lim_qp, lim_qp),
        # optional residual nn.Linear(in_features, qubits)
        "w_skip": jax.random.uniform(k5, (QUBITS, in_features), jnp.float32,
                                     -lim_lin, lim_lin),
        "b_skip": jax.random.uniform(k6, (1, QUBITS), jnp.float32, -0.1, 0.1),
    }

    # small-batch checks (single grid block), with and without residual
    for use_residual in (False, True):
        out = hybrid_qnn_forward(x, params, use_residual=use_residual)
        jax.block_until_ready(out)
        assert out.shape == (B, QUBITS) and out.dtype == jnp.float32
        ref = ref_forward(x, params, use_residual)
        np.testing.assert_allclose(np.asarray(out), np.asarray(ref),
                                   rtol=2e-3, atol=2e-3)

    # multi-block check (exercises batch tiling / padding / 2-block grid)
    B2 = 300
    x2 = jax.random.normal(k7, (B2, in_features), jnp.float32)
    out2 = hybrid_qnn_forward(x2, params, use_residual=True)
    jax.block_until_ready(out2)
    assert out2.shape == (B2, QUBITS)
    ref2 = ref_forward(x2, params, True)
    np.testing.assert_allclose(np.asarray(out2), np.asarray(ref2),
                               rtol=2e-3, atol=2e-3)

    print("KERNEL_OK")
</pallas_src>

<mosaic_0001>
module attributes {stable_mosaic.version = 11 : i64} {
  func.func @_hybrid_kernel(%arg0: i32, %arg1: memref<16x128xf32, #tpu.memory_space<vmem>>, %arg2: memref<4x16xf32, #tpu.memory_space<vmem>>, %arg3: memref<4x1xf32, #tpu.memory_space<vmem>>, %arg4: memref<6x16x16xf32, #tpu.memory_space<vmem>>, %arg5: memref<4x16xf32, #tpu.memory_space<vmem>>, %arg6: memref<4x128xf32, #tpu.memory_space<vmem>>) attributes {dimension_semantics = [#tpu.dimension_semantics<parallel>], iteration_bounds = array<i64: 1>, scalar_prefetch = 0 : i64, scratch_operands = 0 : i64, tpu.core_type = #tpu.core_type<tc>, window_params = [{transform_indices = @transform_0, window_bounds = array<i64: 16, 128>}, {pipeline_mode = #tpu.pipeline_mode<synchronous>, transform_indices = @transform_1, window_bounds = array<i64: 4, 16>}, {pipeline_mode = #tpu.pipeline_mode<synchronous>, transform_indices = @transform_2, window_bounds = array<i64: 4, 1>}, {pipeline_mode = #tpu.pipeline_mode<synchronous>, transform_indices = @transform_3, window_bounds = array<i64: 6, 16, 16>}, {pipeline_mode = #tpu.pipeline_mode<synchronous>, transform_indices = @transform_4, window_bounds = array<i64: 4, 16>}, {transform_indices = @transform_5, window_bounds = array<i64: 4, 128>}]} {
    %c0 = arith.constant 0 : index
    %c0_0 = arith.constant 0 : index
    %0 = vector.load %arg1[%c0, %c0_0] : memref<16x128xf32, #tpu.memory_space<vmem>>, vector<16x128xf32>
    %c0_1 = arith.constant 0 : index
    %c0_2 = arith.constant 0 : index
    %1 = vector.load %arg2[%c0_1, %c0_2] : memref<4x16xf32, #tpu.memory_space<vmem>>, vector<4x16xf32>
    %cst = arith.constant dense<0.000000e+00> : vector<4x128xf32>
    %2 = tpu.matmul %1, %0, %cst {dimension_numbers = #tpu.dot_dimension_numbers<[1], [0], [0], [1], [0, 0, 1, 1], [], []>, precision = #tpu.contract_precision<fp32>} : vector<4x16xf32>, vector<16x128xf32>, vector<4x128xf32> -> vector<4x128xf32>
    %c0_3 = arith.constant 0 : index
    %c0_4 = arith.constant 0 : index
    %3 = vector.load %arg3[%c0_3, %c0_4] : memref<4x1xf32, #tpu.memory_space<vmem>>, vector<4x1xf32>
    %4 = vector.broadcast %3 : vector<4x1xf32> to vector<4x128xf32>
    %5 = arith.addf %2, %4 : vector<4x128xf32>
    %6 = math.tanh %5 : vector<4x128xf32>
    %cst_5 = arith.constant 0.785398185 : f32
    %7 = vector.broadcast %cst_5 : f32 to vector<4x128xf32>
    %8 = arith.mulf %6, %7 : vector<4x128xf32>
    %9 = math.cos %8 : vector<4x128xf32>
    %10 = math.sin %8 : vector<4x128xf32>
    %11 = tpu.iota {dimensions = array<i32: 0>} : vector<16x1xi32>
    %c0_i32 = arith.constant 0 : i32
    %12 = vector.broadcast %c0_i32 : i32 to vector<16x1xi32>
    %13 = arith.shrsi %11, %12 : vector<16x1xi32>
    %c1_i32 = arith.constant 1 : i32
    %14 = vector.broadcast %c1_i32 : i32 to vector<16x1xi32>
    %15 = arith.andi %13, %14 : vector<16x1xi32>
    %16 = arith.sitofp %15 : vector<16x1xi32> to vector<16x1xf32>
    %17 = vector.extract_strided_slice %9 {offsets = [0, 0], sizes = [1, 128], strides = [1, 1]} : vector<4x128xf32> to vector<1x128xf32>
    %18 = vector.extract_strided_slice %10 {offsets = [0, 0], sizes = [1, 128], strides = [1, 1]} : vector<4x128xf32> to vector<1x128xf32>
    %19 = arith.subf %18, %17 : vector<1x128xf32>
    %20 = vector.broadcast %16 : vector<16x1xf32> to vector<16x128xf32>
    %21 = vector.broadcast %19 : vector<1x128xf32> to vector<16x128xf32>
    %22 = arith.mulf %20, %21 : vector<16x128xf32>
    %23 = vector.broadcast %17 : vector<1x128xf32> to vector<16x128xf32>
    %24 = arith.addf %23, %22 : vector<16x128xf32>
    %c1_i32_6 = arith.constant 1 : i32
    %25 = vector.broadcast %c1_i32_6 : i32 to vector<16x1xi32>
    %26 = arith.shrsi %11, %25 : vector<16x1xi32>
    %c1_i32_7 = arith.constant 1 : i32
    %27 = vector.broadcast %c1_i32_7 : i32 to vector<16x1xi32>
    %28 = arith.andi %26, %27 : vector<16x1xi32>
    %29 = arith.sitofp %28 : vector<16x1xi32> to vector<16x1xf32>
    %30 = vector.extract_strided_slice %9 {offsets = [1, 0], sizes = [1, 128], strides = [1, 1]} : vector<4x128xf32> to vector<1x128xf32>
    %31 = vector.extract_strided_slice %10 {offsets = [1, 0], sizes = [1, 128], strides = [1, 1]} : vector<4x128xf32> to vector<1x128xf32>
    %32 = arith.subf %31, %30 : vector<1x128xf32>
    %33 = vector.broadcast %29 : vector<16x1xf32> to vector<16x128xf32>
    %34 = vector.broadcast %32 : vector<1x128xf32> to vector<16x128xf32>
    %35 = arith.mulf %33, %34 : vector<16x128xf32>
    %36 = vector.broadcast %30 : vector<1x128xf32> to vector<16x128xf32>
    %37 = arith.addf %36, %35 : vector<16x128xf32>
    %38 = arith.mulf %24, %37 : vector<16x128xf32>
    %c2_i32 = arith.constant 2 : i32
    %39 = vector.broadcast %c2_i32 : i32 to vector<16x1xi32>
    %40 = arith.shrsi %11, %39 : vector<16x1xi32>
    %c1_i32_8 = arith.constant 1 : i32
    %41 = vector.broadcast %c1_i32_8 : i32 to vector<16x1xi32>
    %42 = arith.andi %40, %41 : vector<16x1xi32>
    %43 = arith.sitofp %42 : vector<16x1xi32> to vector<16x1xf32>
    %44 = vector.extract_strided_slice %9 {offsets = [2, 0], sizes = [1, 128], strides = [1, 1]} : vector<4x128xf32> to vector<1x128xf32>
    %45 = vector.extract_strided_slice %10 {offsets = [2, 0], sizes = [1, 128], strides = [1, 1]} : vector<4x128xf32> to vector<1x128xf32>
    %46 = arith.subf %45, %44 : vector<1x128xf32>
    %47 = vector.broadcast %43 : vector<16x1xf32> to vector<16x128xf32>
    %48 = vector.broadcast %46 : vector<1x128xf32> to vector<16x128xf32>
    %49 = arith.mulf %47, %48 : vector<16x128xf32>
    %50 = vector.broadcast %44 : vector<1x128xf32> to vector<16x128xf32>
    %51 = arith.addf %50, %49 : vector<16x128xf32>
    %52 = arith.mulf %38, %51 : vector<16x128xf32>
    %c3_i32 = arith.constant 3 : i32
    %53 = vector.broadcast %c3_i32 : i32 to vector<16x1xi32>
    %54 = arith.shrsi %11, %53 : vector<16x1xi32>
    %c1_i32_9 = arith.constant 1 : i32
    %55 = vector.broadcast %c1_i32_9 : i32 to vector<16x1xi32>
    %56 = arith.andi %54, %55 : vector<16x1xi32>
    %57 = arith.sitofp %56 : vector<16x1xi32> to vector<16x1xf32>
    %58 = vector.extract_strided_slice %9 {offsets = [3, 0], sizes = [1, 128], strides = [1, 1]} : vector<4x128xf32> to vector<1x128xf32>
    %59 = vector.extract_strided_slice %10 {offsets = [3, 0], sizes = [1, 128], strides = [1, 1]} : vector<4x128xf32> to vector<1x128xf32>
    %60 = arith.subf %59, %58 : vector<1x128xf32>
    %61 = vector.broadcast %57 : vector<16x1xf32> to vector<16x128xf32>
    %62 = vector.broadcast %60 : vector<1x128xf32> to vector<16x128xf32>
    %63 = arith.mulf %61, %62 : vector<16x128xf32>
    %64 = vector.broadcast %58 : vector<1x128xf32> to vector<16x128xf32>
    %65 = arith.addf %64, %63 : vector<16x128xf32>
    %66 = arith.mulf %52, %65 : vector<16x128xf32>
    %67 = tpu.iota {dimensions = array<i32: 0>} : vector<16x16xi32>
    %68 = tpu.iota {dimensions = array<i32: 1>} : vector<16x16xi32>
    %c0_i32_10 = arith.constant 0 : i32
    %69 = vector.broadcast %c0_i32_10 : i32 to vector<16x16xi32>
    %70 = arith.shrsi %68, %69 : vector<16x16xi32>
    %c1_i32_11 = arith.constant 1 : i32
    %71 = vector.broadcast %c1_i32_11 : i32 to vector<16x16xi32>
    %72 = arith.andi %70, %71 : vector<16x16xi32>
    %c1_i32_12 = arith.constant 1 : i32
    %73 = vector.broadcast %c1_i32_12 : i32 to vector<16x16xi32>
    %74 = arith.shli %72, %73 : vector<16x16xi32>
    %75 = arith.xori %68, %74 : vector<16x16xi32>
    %c1_i32_13 = arith.constant 1 : i32
    %76 = vector.broadcast %c1_i32_13 : i32 to vector<16x16xi32>
    %77 = arith.shrsi %75, %76 : vector<16x16xi32>
    %c1_i32_14 = arith.constant 1 : i32
    %78 = vector.broadcast %c1_i32_14 : i32 to vector<16x16xi32>
    %79 = arith.andi %77, %78 : vector<16x16xi32>
    %c2_i32_15 = arith.constant 2 : i32
    %80 = vector.broadcast %c2_i32_15 : i32 to vector<16x16xi32>
    %81 = arith.shli %79, %80 : vector<16x16xi32>
    %82 = arith.xori %75, %81 : vector<16x16xi32>
    %c2_i32_16 = arith.constant 2 : i32
    %83 = vector.broadcast %c2_i32_16 : i32 to vector<16x16xi32>
    %84 = arith.shrsi %82, %83 : vector<16x16xi32>
    %c1_i32_17 = arith.constant 1 : i32
    %85 = vector.broadcast %c1_i32_17 : i32 to vector<16x16xi32>
    %86 = arith.andi %84, %85 : vector<16x16xi32>
    %c3_i32_18 = arith.constant 3 : i32
    %87 = vector.broadcast %c3_i32_18 : i32 to vector<16x16xi32>
    %88 = arith.shli %86, %87 : vector<16x16xi32>
    %89 = arith.xori %82, %88 : vector<16x16xi32>
    %c3_i32_19 = arith.constant 3 : i32
    %90 = vector.broadcast %c3_i32_19 : i32 to vector<16x16xi32>
    %91 = arith.shrsi %89, %90 : vector<16x16xi32>
    %c1_i32_20 = arith.constant 1 : i32
    %92 = vector.broadcast %c1_i32_20 : i32 to vector<16x16xi32>
    %93 = arith.andi %91, %92 : vector<16x16xi32>
    %c0_i32_21 = arith.constant 0 : i32
    %94 = vector.broadcast %c0_i32_21 : i32 to vector<16x16xi32>
    %95 = arith.shli %93, %94 : vector<16x16xi32>
    %96 = arith.xori %89, %95 : vector<16x16xi32>
    %97 = arith.cmpi eq, %67, %96 : vector<16x16xi32>
    %98 = arith.extui %97 : vector<16x16xi1> to vector<16x16xi32>
    %99 = arith.sitofp %98 : vector<16x16xi32> to vector<16x16xf32>
    %c0_22 = arith.constant 0 : index
    %c0_23 = arith.constant 0 : index
    %c0_24 = arith.constant 0 : index
    %100 = vector.load %arg4[%c0_22, %c0_23, %c0_24] : memref<6x16x16xf32, #tpu.memory_space<vmem>>, vector<1x16x16xf32>
    %101 = vector.shape_cast %100 : vector<1x16x16xf32> to vector<16x16xf32>
    %cst_25 = arith.constant dense<0.000000e+00> : vector<16x16xf32>
    %102 = tpu.matmul %99, %101, %cst_25 {dimension_numbers = #tpu.dot_dimension_numbers<[1], [0], [0], [1], [0, 0, 1, 1], [], []>, precision = #tpu.contract_precision<fp32>} : vector<16x16xf32>, vector<16x16xf32>, vector<16x16xf32> -> vector<16x16xf32>
    %c1 = arith.constant 1 : index
    %c0_26 = arith.constant 0 : index
    %c0_27 = arith.constant 0 : index
    %103 = vector.load %arg4[%c1, %c0_26, %c0_27] : memref<6x16x16xf32, #tpu.memory_space<vmem>>, vector<1x16x16xf32>
    %104 = vector.shape_cast %103 : vector<1x16x16xf32> to vector<16x16xf32>
    %cst_28 = arith.constant dense<0.000000e+00> : vector<16x16xf32>
    %105 = tpu.matmul %99, %104, %cst_28 {dimension_numbers = #tpu.dot_dimension_numbers<[1], [0], [0], [1], [0, 0, 1, 1], [], []>, precision = #tpu.contract_precision<fp32>} : vector<16x16xf32>, vector<16x16xf32>, vector<16x16xf32> -> vector<16x16xf32>
    %cst_29 = arith.constant dense<0.000000e+00> : vector<16x16xf32>
    %106 = tpu.matmul %105, %102, %cst_29 {dimension_numbers = #tpu.dot_dimension_numbers<[1], [0], [0], [1], [0, 0, 1, 1], [], []>, precision = #tpu.contract_precision<fp32>} : vector<16x16xf32>, vector<16x16xf32>, vector<16x16xf32> -> vector<16x16xf32>
    %c2 = arith.constant 2 : index
    %c0_30 = arith.constant 0 : index
    %c0_31 = arith.constant 0 : index
    %107 = vector.load %arg4[%c2, %c0_30, %c0_31] : memref<6x16x16xf32, #tpu.memory_space<vmem>>, vector<1x16x16xf32>
    %108 = vector.shape_cast %107 : vector<1x16x16xf32> to vector<16x16xf32>
    %cst_32 = arith.constant dense<0.000000e+00> : vector<16x16xf32>
    %109 = tpu.matmul %99, %108, %cst_32 {dimension_numbers = #tpu.dot_dimension_numbers<[1], [0], [0], [1], [0, 0, 1, 1], [], []>, precision = #tpu.contract_precision<fp32>} : vector<16x16xf32>, vector<16x16xf32>, vector<16x16xf32> -> vector<16x16xf32>
    %cst_33 = arith.constant dense<0.000000e+00> : vector<16x16xf32>
    %110 = tpu.matmul %109, %106, %cst_33 {dimension_numbers = #tpu.dot_dimension_numbers<[1], [0], [0], [1], [0, 0, 1, 1], [], []>, precision = #tpu.contract_precision<fp32>} : vector<16x16xf32>, vector<16x16xf32>, vector<16x16xf32> -> vector<16x16xf32>
    %c3 = arith.constant 3 : index
    %c0_34 = arith.constant 0 : index
    %c0_35 = arith.constant 0 : index
    %111 = vector.load %arg4[%c3, %c0_34, %c0_35] : memref<6x16x16xf32, #tpu.memory_space<vmem>>, vector<1x16x16xf32>
    %112 = vector.shape_cast %111 : vector<1x16x16xf32> to vector<16x16xf32>
    %cst_36 = arith.constant dense<0.000000e+00> : vector<16x16xf32>
    %113 = tpu.matmul %99, %112, %cst_36 {dimension_numbers = #tpu.dot_dimension_numbers<[1], [0], [0], [1], [0, 0, 1, 1], [], []>, precision = #tpu.contract_precision<fp32>} : vector<16x16xf32>, vector<16x16xf32>, vector<16x16xf32> -> vector<16x16xf32>
    %cst_37 = arith.constant dense<0.000000e+00> : vector<16x16xf32>
    %114 = tpu.matmul %113, %110, %cst_37 {dimension_numbers = #tpu.dot_dimension_numbers<[1], [0], [0], [1], [0, 0, 1, 1], [], []>, precision = #tpu.contract_precision<fp32>} : vector<16x16xf32>, vector<16x16xf32>, vector<16x16xf32> -> vector<16x16xf32>
    %c4 = arith.constant 4 : index
    %c0_38 = arith.constant 0 : index
    %c0_39 = arith.constant 0 : index
    %115 = vector.load %arg4[%c4, %c0_38, %c0_39] : memref<6x16x16xf32, #tpu.memory_space<vmem>>, vector<1x16x16xf32>
    %116 = vector.shape_cast %115 : vector<1x16x16xf32> to vector<16x16xf32>
    %cst_40 = arith.constant dense<0.000000e+00> : vector<16x16xf32>
    %117 = tpu.matmul %99, %116, %cst_40 {dimension_numbers = #tpu.dot_dimension_numbers<[1], [0], [0], [1], [0, 0, 1, 1], [], []>, precision = #tpu.contract_precision<fp32>} : vector<16x16xf32>, vector<16x16xf32>, vector<16x16xf32> -> vector<16x16xf32>
    %cst_41 = arith.constant dense<0.000000e+00> : vector<16x16xf32>
    %118 = tpu.matmul %117, %114, %cst_41 {dimension_numbers = #tpu.dot_dimension_numbers<[1], [0], [0], [1], [0, 0, 1, 1], [], []>, precision = #tpu.contract_precision<fp32>} : vector<16x16xf32>, vector<16x16xf32>, vector<16x16xf32> -> vector<16x16xf32>
    %c5 = arith.constant 5 : index
    %c0_42 = arith.constant 0 : index
    %c0_43 = arith.constant 0 : index
    %119 = vector.load %arg4[%c5, %c0_42, %c0_43] : memref<6x16x16xf32, #tpu.memory_space<vmem>>, vector<1x16x16xf32>
    %120 = vector.shape_cast %119 : vector<1x16x16xf32> to vector<16x16xf32>
    %cst_44 = arith.constant dense<0.000000e+00> : vector<16x16xf32>
    %121 = tpu.matmul %99, %120, %cst_44 {dimension_numbers = #tpu.dot_dimension_numbers<[1], [0], [0], [1], [0, 0, 1, 1], [], []>, precision = #tpu.contract_precision<fp32>} : vector<16x16xf32>, vector<16x16xf32>, vector<16x16xf32> -> vector<16x16xf32>
    %cst_45 = arith.constant dense<0.000000e+00> : vector<16x16xf32>
    %122 = tpu.matmul %121, %118, %cst_45 {dimension_numbers = #tpu.dot_dimension_numbers<[1], [0], [0], [1], [0, 0, 1, 1], [], []>, precision = #tpu.contract_precision<fp32>} : vector<16x16xf32>, vector<16x16xf32>, vector<16x16xf32> -> vector<16x16xf32>
    %cst_46 = arith.constant dense<0.000000e+00> : vector<16x128xf32>
    %123 = tpu.matmul %122, %66, %cst_46 {dimension_numbers = #tpu.dot_dimension_numbers<[1], [0], [0], [1], [0, 0, 1, 1], [], []>, precision = #tpu.contract_precision<fp32>} : vector<16x16xf32>, vector<16x128xf32>, vector<16x128xf32> -> vector<16x128xf32>
    %124 = arith.mulf %123, %123 : vector<16x128xf32>
    %c0_47 = arith.constant 0 : index
    %c0_48 = arith.constant 0 : index
    %125 = vector.load %arg5[%c0_47, %c0_48] : memref<4x16xf32, #tpu.memory_space<vmem>>, vector<4x16xf32>
    %cst_49 = arith.constant dense<0.000000e+00> : vector<4x128xf32>
    %126 = tpu.matmul %125, %124, %cst_49 {dimension_numbers = #tpu.dot_dimension_numbers<[1], [0], [0], [1], [0, 0, 1, 1], [], []>, precision = #tpu.contract_precision<fp32>} : vector<4x16xf32>, vector<16x128xf32>, vector<4x128xf32> -> vector<4x128xf32>
    %c0_50 = arith.constant 0 : index
    %c0_51 = arith.constant 0 : index
    %127 = vector.load %arg6[%c0_50, %c0_51] : memref<4x128xf32, #tpu.memory_space<vmem>>, vector<4x128xf32>
    tpu.vector_store %arg6[%c0_50, %c0_51], %126 {strides = array<i32>} : memref<4x128xf32, #tpu.memory_space<vmem>>, vector<4x128xf32>,
    return
  }
  func.func @transform_0(%arg0: i32) -> (i32, i32) {
    %c0_i32 = arith.constant 0 : i32
    %c0_i32_0 = arith.constant 0 : i32
    return %c0_i32, %arg0 : i32, i32
  }
  func.func @transform_1(%arg0: i32) -> (i32, i32) {
    %c0_i32 = arith.constant 0 : i32
    %c0_i32_0 = arith.constant 0 : i32
    %c0_i32_1 = arith.constant 0 : i32
    return %c0_i32, %c0_i32_0 : i32, i32
  }
  func.func @transform_2(%arg0: i32) -> (i32, i32) {
    %c0_i32 = arith.constant 0 : i32
    %c0_i32_0 = arith.constant 0 : i32
    %c0_i32_1 = arith.constant 0 : i32
    return %c0_i32, %c0_i32_0 : i32, i32
  }
  func.func @transform_3(%arg0: i32) -> (i32, i32, i32) {
    %c0_i32 = arith.constant 0 : i32
    %c0_i32_0 = arith.constant 0 : i32
    %c0_i32_1 = arith.constant 0 : i32
    %c0_i32_2 = arith.constant 0 : i32
    return %c0_i32, %c0_i32_0, %c0_i32_1 : i32, i32, i32
  }
  func.func @transform_4(%arg0: i32) -> (i32, i32) {
    %c0_i32 = arith.constant 0 : i32
    %c0_i32_0 = arith.constant 0 : i32
    %c0_i32_1 = arith.constant 0 : i32
    return %c0_i32, %c0_i32_0 : i32, i32
  }
  func.func @transform_5(%arg0: i32) -> (i32, i32) {
    %c0_i32 = arith.constant 0 : i32
    %c0_i32_0 = arith.constant 0 : i32
    return %c0_i32, %arg0 : i32, i32
  }
}

</mosaic_0001>

<llo_original>
// kernel: hybrid_qnn_forward.1
$region0: #{hybrid_qnn_forward.1}
  #allocation0 [shape = 'u32[]', space=smem, size = 0x4, offset = 0x4, fixed_abs, tag = 'smem constant byte address 0x4 - core index']
  #allocation1 [shape = 'u32[72,128]{1,0:T(1,128)}', space=vmem, size = 0x9000, scoped, tag = 'internal scratch']
  %s0 = inlined_call_operand.vmem [shape: f32[16,128], index: 0, kind: input, shape index: {}]
  %s1 = inlined_call_operand.vmem [shape: f32[4,16], index: 1, kind: input, shape index: {}]
  %s2 = inlined_call_operand.vmem [shape: f32[4,1], index: 2, kind: input, shape index: {}]
  %s3 = inlined_call_operand.vmem [shape: f32[6,16,16], index: 3, kind: input, shape index: {}]
  %s4 = inlined_call_operand.vmem [shape: f32[4,16], index: 4, kind: input, shape index: {}]
  %s5 = inlined_call_operand.vmem [shape: f32[4,128], index: 5, kind: output, shape index: {}]
  %s6 = sld [smem:[#allocation0]]
  $region30: #{hybrid_qnn_forward.1} parent=0
    _
  %s8 = ssub.s32 1, %s6
  %s9 = scalar_select 0, %s8, %s6
  // Predicated region
  $region2: #{hybrid_qnn_forward.1} parent=0 // pred_check
    _
  $region3: #{hybrid_qnn_forward.1} parent=0 // pred_check_branch
    %11 = sbr.rel (0) target = $region5
  $region4: #{hybrid_qnn_forward.1} parent=0 // pred_region
    _
  $region5: #{hybrid_qnn_forward.1} parent=0 // pred_fallthru
    _
  // Predicated region
  $region6: #{hybrid_qnn_forward.1} parent=0 // pred_check
    _
  $region7: #{hybrid_qnn_forward.1} parent=0 // pred_check_branch
    %13 = sbr.rel (0) target = $region9
  $region8: #{hybrid_qnn_forward.1} parent=0 // pred_region
    _
  $region9: #{hybrid_qnn_forward.1} parent=0 // pred_fallthru
    _
  // Predicated region
  $region10: #{hybrid_qnn_forward.1} parent=0 // pred_check
    _
  $region11: #{hybrid_qnn_forward.1} parent=0 // pred_check_branch
    %15 = sbr.rel (0) target = $region13
  $region12: #{hybrid_qnn_forward.1} parent=0 // pred_region
    _
  $region13: #{hybrid_qnn_forward.1} parent=0 // pred_fallthru
    _
  // Predicated region
  $region14: #{hybrid_qnn_forward.1} parent=0 // pred_check
    _
  $region15: #{hybrid_qnn_forward.1} parent=0 // pred_check_branch
    %17 = sbr.rel (0) target = $region17
  $region16: #{hybrid_qnn_forward.1} parent=0 // pred_region
    _
  $region17: #{hybrid_qnn_forward.1} parent=0 // pred_fallthru
    _
  // Predicated region
  $region18: #{hybrid_qnn_forward.1} parent=0 // pred_check
    _
  $region19: #{hybrid_qnn_forward.1} parent=0 // pred_check_branch
    %19 = sbr.rel (0) target = $region21
  $region20: #{hybrid_qnn_forward.1} parent=0 // pred_region
    _
  $region21: #{hybrid_qnn_forward.1} parent=0 // pred_fallthru
    _
  %v20 = vld [vmem:[%s0] sm:$0xff]
  %v21 = vld [vmem:[%s0 + $0x8] sm:$0xff]
  %v22 = vld [vmem:[%s1] sm:$0xf]
  %v23 = vld [vmem:[%s2] sm:$0xf]
  %25 = vset.pattern.permute.xlu0 0
  %26 = vperm.xlu0 %25, %v23
  %v27 = vpop.permute.xlu0 %26
  %vm29 = vcmask 130048
  %v31 = vsel %vm29, %v22, 0
  %33 = vmatpush.msra.mxu0 0.0
  %34 = vmatpush.msra.mxu0 0.0
  %35 = vmatpush.msra.mxu0 0.0
  %36 = vmatpush.msra.mxu0 0.0
  %37 = vmatpush.msra.mxu0 0.0
  %38 = vmatpush.msra.mxu0 0.0
  %39 = vmatpush.msra.mxu0 0.0
  %40 = vmatpush.msra.mxu0 0.0
  %41 = vmatpush.msra.mxu0 0.0
  %42 = vmatpush.msra.mxu0 0.0
  %43 = vmatpush.msra.mxu0 0.0
  %44 = vmatpush.msra.mxu0 0.0
  %45 = vmatpush.msra.mxu0 0.0
  %46 = vmatpush.msra.mxu0 0.0
  %v47 = vand.u32 %v21, 4294901760
  %48 = vmatpush.msra.mxu0 %v47
  %v49 = vand.u32 %v20, 4294901760
  %50 = vmatpush.msra.mxu0 %v49
  %v51 = vand.u32 %v31, 4294901760
  %v52 = vsub.f32 %v31, %v51
  %v53 = vand.u32 %v52, 4294901760
  %v54 = vsub.f32 %v52, %v53
  %v55 = vand.u32 %v54, 4294901760
  %56 = vmatmul.f32.gmra.mxu0 %v55
  %v57 = vpop.f32.mrf.mxu0
  %v58 = vadd.f32 %v27, %v57
  %59 = vdwg.mxu0
  %60 = vmatpush.msra.mxu0 0.0
  %61 = vmatpush.msra.mxu0 0.0
  %62 = vmatpush.msra.mxu0 0.0
  %63 = vmatpush.msra.mxu0 0.0
  %64 = vmatpush.msra.mxu0 0.0
  %65 = vmatpush.msra.mxu0 0.0
  %66 = vmatpush.msra.mxu0 0.0
  %67 = vmatpush.msra.mxu0 0.0
  %68 = vmatpush.msra.mxu0 0.0
  %69 = vmatpush.msra.mxu0 0.0
  %70 = vmatpush.msra.mxu0 0.0
  %71 = vmatpush.msra.mxu0 0.0
  %72 = vmatpush.msra.mxu0 0.0
  %73 = vmatpush.msra.mxu0 0.0
  %v74 = vand.u32 %v21, 4294901760
  %v75 = vsub.f32 %v21, %v74
  %v76 = vand.u32 %v75, 4294901760
  %v77 = vsub.f32 %v75, %v76
  %v78 = vand.u32 %v77, 4294901760
  %79 = vmatpush.msra.mxu0 %v78
  %v80 = vand.u32 %v20, 4294901760
  %v81 = vsub.f32 %v20, %v80
  %v82 = vand.u32 %v81, 4294901760
  %v83 = vsub.f32 %v81, %v82
  %v84 = vand.u32 %v83, 4294901760
  %85 = vmatpush.msra.mxu0 %v84
  %v86 = vand.u32 %v31, 4294901760
  %87 = vmatmul.f32.gmra.mxu0 %v86
  %v88 = vpop.f32.mrf.mxu0
  %v89 = vadd.f32 %v58, %v88
  %90 = vdwg.mxu0
  %91 = vmatpush.msra.mxu0 0.0
  %92 = vmatpush.msra.mxu0 0.0
  %93 = vmatpush.msra.mxu0 0.0
  %94 = vmatpush.msra.mxu0 0.0
  %95 = vmatpush.msra.mxu0 0.0
  %96 = vmatpush.msra.mxu0 0.0
  %97 = vmatpush.msra.mxu0 0.0
  %98 = vmatpush.msra.mxu0 0.0
  %99 = vmatpush.msra.mxu0 0.0
  %100 = vmatpush.msra.mxu0 0.0
  %101 = vmatpush.msra.mxu0 0.0
  %102 = vmatpush.msra.mxu0 0.0
  %103 = vmatpush.msra.mxu0 0.0
  %104 = vmatpush.msra.mxu0 0.0
  %v105 = vand.u32 %v21, 4294901760
  %v106 = vsub.f32 %v21, %v105
  %107 = vmatpush.msra.mxu0 %v106
  %v108 = vand.u32 %v20, 4294901760
  %v109 = vsub.f32 %v20, %v108
  %110 = vmatpush.msra.mxu0 %v109
  %v111 = vand.u32 %v31, 4294901760
  %v112 = vsub.f32 %v31, %v111
  %113 = vmatmul.f32.gmra.mxu0 %v112
  %v114 = vpop.f32.mrf.mxu0
  %v115 = vadd.f32 %v89, %v114
  %116 = vdwg.mxu0
  %117 = vmatpush.msra.mxu0 0.0
  %118 = vmatpush.msra.mxu0 0.0
  %119 = vmatpush.msra.mxu0 0.0
  %120 = vmatpush.msra.mxu0 0.0
  %121 = vmatpush.msra.mxu0 0.0
  %122 = vmatpush.msra.mxu0 0.0
  %123 = vmatpush.msra.mxu0 0.0
  %124 = vmatpush.msra.mxu0 0.0
  %125 = vmatpush.msra.mxu0 0.0
  %126 = vmatpush.msra.mxu0 0.0
  %127 = vmatpush.msra.mxu0 0.0
  %128 = vmatpush.msra.mxu0 0.0
  %129 = vmatpush.msra.mxu0 0.0
  %130 = vmatpush.msra.mxu0 0.0
  %v131 = vand.u32 %v21, 4294901760
  %132 = vmatpush.msra.mxu0 %v131
  %v133 = vand.u32 %v20, 4294901760
  %134 = vmatpush.msra.mxu0 %v133
  %v135 = vand.u32 %v31, 4294901760
  %v136 = vsub.f32 %v31, %v135
  %v137 = vand.u32 %v136, 4294901760
  %138 = vmatmul.f32.gmra.mxu0 %v137
  %v139 = vpop.f32.mrf.mxu0
  %v140 = vadd.f32 %v115, %v139
  %141 = vdwg.mxu0
  %142 = vmatpush.msra.mxu0 0.0
  %143 = vmatpush.msra.mxu0 0.0
  %144 = vmatpush.msra.mxu0 0.0
  %145 = vmatpush.msra.mxu0 0.0
  %146 = vmatpush.msra.mxu0 0.0
  %147 = vmatpush.msra.mxu0 0.0
  %148 = vmatpush.msra.mxu0 0.0
  %149 = vmatpush.msra.mxu0 0.0
  %150 = vmatpush.msra.mxu0 0.0
  %151 = vmatpush.msra.mxu0 0.0
  %152 = vmatpush.msra.mxu0 0.0
  %153 = vmatpush.msra.mxu0 0.0
  %154 = vmatpush.msra.mxu0 0.0
  %155 = vmatpush.msra.mxu0 0.0
  %v156 = vand.u32 %v21, 4294901760
  %v157 = vsub.f32 %v21, %v156
  %v158 = vand.u32 %v157, 4294901760
  %159 = vmatpush.msra.mxu0 %v158
  %v160 = vand.u32 %v20, 4294901760
  %v161 = vsub.f32 %v20, %v160
  %v162 = vand.u32 %v161, 4294901760
  %163 = vmatpush.msra.mxu0 %v162
  %v164 = vand.u32 %v31, 4294901760
  %165 = vmatmul.f32.gmra.mxu0 %v164
  %v166 = vpop.f32.mrf.mxu0
  %v167 = vadd.f32 %v140, %v166
  %168 = vdwg.mxu0
  %169 = vmatpush.msra.mxu0 0.0
  %170 = vmatpush.msra.mxu0 0.0
  %171 = vmatpush.msra.mxu0 0.0
  %172 = vmatpush.msra.mxu0 0.0
  %173 = vmatpush.msra.mxu0 0.0
  %174 = vmatpush.msra.mxu0 0.0
  %175 = vmatpush.msra.mxu0 0.0
  %176 = vmatpush.msra.mxu0 0.0
  %177 = vmatpush.msra.mxu0 0.0
  %178 = vmatpush.msra.mxu0 0.0
  %179 = vmatpush.msra.mxu0 0.0
  %180 = vmatpush.msra.mxu0 0.0
  %181 = vmatpush.msra.mxu0 0.0
  %182 = vmatpush.msra.mxu0 0.0
  %v183 = vand.u32 %v21, 4294901760
  %184 = vmatpush.msra.mxu0 %v183
  %v185 = vand.u32 %v20, 4294901760
  %186 = vmatpush.msra.mxu0 %v185
  %v187 = vand.u32 %v31, 4294901760
  %188 = vmatmul.f32.gmra.mxu0 %v187
  %v189 = vpop.f32.mrf.mxu0
  %v190 = vadd.f32 %v167, %v189
  %191 = vdwg.mxu0
  %v192 = vtanh.pop %v190
  %v193 = vmul.f32 %v192, 0.7853982
  %v194 = vand.u32 2147483647, %v193
  %vm195 = vcmp.le.f32.partialorder %v194, 0.7853982
  %vm196 = vcmp.lt.s32.totalorder %v193, 0
  %v197 = vand.u32 %v193, 2139095040
  %v198 = vshrl.u32 %v197, 23
  %v199 = vsub.s32 %v198, 127
  %v200 = vand.u32 2147483647, %v193
  %v201 = vand.u32 %v200, 8388607
  %v202 = vor.u32 %v201, 8388608
  %v203 = vsub.s32 0, %v202
  %v204 = vadd.s32 %v199, 1
  %vm205 = vcmp.gt.s32.totalorder %v204, 0
  %v206 = vsel %vm205, %v204, 0
  %v207 = vshrl.u32 %v206, 5
  %v208 = vand.u32 %v206, 31
  %v209 = vsub.s32 32, %v208
  %v210 = vshrl.u32 683565275, %v209
  %v211 = vshll.u32 683565275, %v208
  %v212 = vshrl.u32 2475754826, %v209
  %v213 = vor.u32 %v211, %v212
  %v214 = vshll.u32 2475754826, %v208
  %v215 = vshrl.u32 2131351028, %v209
  %v216 = vor.u32 %v214, %v215
  %v217 = vshll.u32 2131351028, %v208
  %v218 = vshrl.u32 2102212464, %v209
  %v219 = vor.u32 %v217, %v218
  %v220 = vshll.u32 2102212464, %v208
  %v221 = vshrl.u32 920167782, %v209
  %v222 = vor.u32 %v220, %v221
  %v223 = vshll.u32 920167782, %v208
  %v224 = vshrl.u32 1326507024, %v209
  %v225 = vor.u32 %v223, %v224
  %vm226 = vcmp.lt.s32.totalorder %v207, 1
  %vm227 = vcmp.lt.s32.totalorder %v207, 2
  %vm228 = vcmp.lt.s32.totalorder %v207, 3
  %vm229 = vcmp.lt.s32.totalorder %v207, 4
  %v230 = vsel %vm226, %v210, %v213
  %v231 = vsel %vm229, %v219, 2102212464
  %v232 = vsel %vm228, %v216, %v231
  %v233 = vsel %vm227, %v230, %v232
  %v234 = vsel %vm226, %v213, %v216
  %v235 = vsel %vm229, %v222, 920167782
  %v236 = vsel %vm228, %v219, %v235
  %v237 = vsel %vm227, %v234, %v236
  %v238 = vsel %vm226, %v216, %v219
  %v239 = vsel %vm229, %v225, 1326507024
  %v240 = vsel %vm228, %v222, %v239
  %v241 = vsel %vm227, %v238, %v240
  %v242 = vshll.u32 %v202, 8
  %v243 = vand.u32 %v242, 65535
  %v244 = vshrl.u32 %v242, 16
  %v245 = vand.u32 %v241, 65535
  %v246 = vshrl.u32 %v241, 16
  %v247 = vmul.u32 %v243, %v245
  %v248 = vmul.u32 %v243, %v246
  %v249 = vmul.u32 %v244, %v245
  %v250 = vmul.u32 %v244, %v246
  %v251 = vshll.u32 %v248, 16
  %v252 = vshrl.u32 %v248, 16
  %v253 = vshll.u32 %v249, 16
  %v254 = vshrl.u32 %v249, 16
  %vm255 = vc.u32 %v247, %v251
  %v256 = vsel %vm255, 1, 0
  %v257 = vadd.s32 %v247, %v251
  %v258 = vadd.s32 %v250, %v256
  %vm259 = vc.u32 %v257, %v253
  %v260 = vsel %vm259, 1, 0
  %v261 = vadd.s32 %v257, %v253
  %v262 = vadd.s32 %v258, %v260
  %v263 = vadd.s32 %v262, %v252
  %v264 = vadd.s32 %v263, %v254
  %v265 = vand.u32 %v242, 65535
  %v266 = vshrl.u32 %v242, 16
  %v267 = vand.u32 %v237, 65535
  %v268 = vshrl.u32 %v237, 16
  %v269 = vmul.u32 %v265, %v267
  %v270 = vmul.u32 %v265, %v268
  %v271 = vmul.u32 %v266, %v267
  %v272 = vmul.u32 %v266, %v268
  %v273 = vshll.u32 %v270, 16
  %v274 = vshrl.u32 %v270, 16
  %v275 = vshll.u32 %v271, 16
  %v276 = vshrl.u32 %v271, 16
  %vm277 = vc.u32 %v269, %v273
  %v278 = vsel %vm277, 1, 0
  %v279 = vadd.s32 %v269, %v273
  %v280 = vadd.s32 %v272, %v278
  %vm281 = vc.u32 %v279, %v275
  %v282 = vsel %vm281, 1, 0
  %v283 = vadd.s32 %v279, %v275
  %v284 = vadd.s32 %v280, %v282
  %v285 = vadd.s32 %v284, %v274
  %v286 = vadd.s32 %v285, %v276
  %v287 = vmul.u32 %v242, %v233
  %v288 = vadd.s32 %v264, %v283
  %vm289 = vc.u32 %v264, %v283
  %v290 = vadd.s32 %v286, 1
  %v291 = vsel %vm289, %v290, %v286
  %v292 = vadd.s32 %v287, %v291
  %v293 = vadd.s32 %v292, 536870912
  %v294 = vshrl.u32 %v293, 30
  %v295 = vshll.u32 %v294, 30
  %v296 = vsub.s32 %v292, %v295
  %vm297 = vcmp.lt.s32.totalorder %v296, 0
  %v298 = vsub.s32 0, %v296
  %v299 = vsel %vm297, %v298, %v296
  %v300 = vclz %v299
  %v301 = vsub.s32 %v300, 2
  %vm302 = vcmp.gt.s32.totalorder 0, %v301
  %v303 = vsel %vm302, 0, %v301
  %v304 = vsub.s32 32, %v303
  %v305 = vshll.u32 %v296, %v303
  %v306 = vshrl.u32 %v288, %v304
  %v307 = vor.u32 %v305, %v306
  %v308 = vsub.s32 4294967266, %v303
  %v309 = vadd.s32 %v308, 127
  %v310 = vshll.u32 %v309, 23
  %v311 = vor.u32 4788187, %v310
  %v312 = vand.u32 2147483647, %v311
  %v314 = vcvt.s32.f32 %v307
  %v315 = vmul.f32 %v314, %v312
  %v316 = vxor.u32 %v315, 2147483648
  %v317 = vsel %vm196, %v316, %v315
  %v318 = vsub.s32 4, %v294
  %v319 = vsel %vm196, %v318, %v294
  %v320 = vsel %vm195, %v193, %v317
  %v321 = vsel %vm195, 0, %v319
  %v322 = vmul.f32 %v320, %v320
  %v323 = vmul.f32 %v322, -0.001358992
  %v324 = vadd.f32 %v323, 0.041655596
  %v325 = vmul.f32 %v322, %v324
  %v326 = vadd.f32 %v325, -0.4999988
  %v327 = vmul.f32 %v322, %v326
  %v328 = vadd.f32 1.0, %v327
  %v329 = vmul.f32 %v320, %v320
  %v330 = vmul.f32 %v329, -0.00019511016
  %v331 = vadd.f32 %v330, 0.008332121
  %v332 = vmul.f32 %v329, %v331
  %v333 = vadd.f32 %v332, -0.16666654
  %v334 = vmul.f32 %v329, %v333
  %v335 = vadd.f32 %v334, 1.0
  %v336 = vmul.f32 %v335, %v320
  %vm337 = vweird.f32 %v193
  %v338 = vand.u32 %v321, 3
  %vm339 = vcmp.lt.s32.totalorder %v338, 2
  %vm340 = vcmp.eq.s32.totalorder %v338, 0
  %v341 = vxor.u32 %v336, 2147483648
  %v342 = vsel %vm340, %v328, %v341
  %vm343 = vcmp.eq.s32.totalorder %v338, 2
  %v344 = vxor.u32 %v328, 2147483648
  %v345 = vsel %vm343, %v344, %v336
  %v346 = vsel %vm339, %v342, %v345
  %v347 = vsel %vm337, nan, %v346
  %v348 = vand.u32 2147483647, %v193
  %vm349 = vcmp.le.f32.partialorder %v348, 0.7853982
  %vm350 = vcmp.lt.s32.totalorder %v193, 0
  %v351 = vand.u32 %v193, 2139095040
  %v352 = vshrl.u32 %v351, 23
  %v353 = vsub.s32 %v352, 127
  %v354 = vand.u32 2147483647, %v193
  %v355 = vand.u32 %v354, 8388607
  %v356 = vor.u32 %v355, 8388608
  %v357 = vsub.s32 0, %v356
  %v358 = vadd.s32 %v353, 1
  %vm359 = vcmp.gt.s32.totalorder %v358, 0
  %v360 = vsel %vm359, %v358, 0
  %v361 = vshrl.u32 %v360, 5
  %v362 = vand.u32 %v360, 31
  %v363 = vsub.s32 32, %v362
  %v364 = vshrl.u32 683565275, %v363
  %v365 = vshll.u32 683565275, %v362
  %v366 = vshrl.u32 2475754826, %v363
  %v367 = vor.u32 %v365, %v366
  %v368 = vshll.u32 2475754826, %v362
  %v369 = vshrl.u32 2131351028, %v363
  %v370 = vor.u32 %v368, %v369
  %v371 = vshll.u32 2131351028, %v362
  %v372 = vshrl.u32 2102212464, %v363
  %v373 = vor.u32 %v371, %v372
  %v374 = vshll.u32 2102212464, %v362
  %v375 = vshrl.u32 920167782, %v363
  %v376 = vor.u32 %v374, %v375
  %v377 = vshll.u32 920167782, %v362
  %v378 = vshrl.u32 1326507024, %v363
  %v379 = vor.u32 %v377, %v378
  %vm380 = vcmp.lt.s32.totalorder %v361, 1
  %vm381 = vcmp.lt.s32.totalorder %v361, 2
  %vm382 = vcmp.lt.s32.totalorder %v361, 3
  %vm383 = vcmp.lt.s32.totalorder %v361, 4
  %v384 = vsel %vm380, %v364, %v367
  %v385 = vsel %vm383, %v373, 2102212464
  %v386 = vsel %vm382, %v370, %v385
  %v387 = vsel %vm381, %v384, %v386
  %v388 = vsel %vm380, %v367, %v370
  %v389 = vsel %vm383, %v376, 920167782
  %v390 = vsel %vm382, %v373, %v389
  %v391 = vsel %vm381, %v388, %v390
  %v392 = vsel %vm380, %v370, %v373
  %v393 = vsel %vm383, %v379, 1326507024
  %v394 = vsel %vm382, %v376, %v393
  %v395 = vsel %vm381, %v392, %v394
  %v396 = vshll.u32 %v356, 8
  %v397 = vand.u32 %v396, 65535
  %v398 = vshrl.u32 %v396, 16
  %v399 = vand.u32 %v395, 65535
  %v400 = vshrl.u32 %v395, 16
  %v401 = vmul.u32 %v397, %v399
  %v402 = vmul.u32 %v397, %v400
  %v403 = vmul.u32 %v398, %v399
  %v404 = vmul.u32 %v398, %v400
  %v405 = vshll.u32 %v402, 16
  %v406 = vshrl.u32 %v402, 16
  %v407 = vshll.u32 %v403, 16
  %v408 = vshrl.u32 %v403, 16
  %vm409 = vc.u32 %v401, %v405
  %v410 = vsel %vm409, 1, 0
  %v411 = vadd.s32 %v401, %v405
  %v412 = vadd.s32 %v404, %v410
  %vm413 = vc.u32 %v411, %v407
  %v414 = vsel %vm413, 1, 0
  %v415 = vadd.s32 %v411, %v407
  %v416 = vadd.s32 %v412, %v414
  %v417 = vadd.s32 %v416, %v406
  %v418 = vadd.s32 %v417, %v408
  %v419 = vand.u32 %v396, 65535
  %v420 = vshrl.u32 %v396, 16
  %v421 = vand.u32 %v391, 65535
  %v422 = vshrl.u32 %v391, 16
  %v423 = vmul.u32 %v419, %v421
  %v424 = vmul.u32 %v419, %v422
  %v425 = vmul.u32 %v420, %v421
  %v426 = vmul.u32 %v420, %v422
  %v427 = vshll.u32 %v424, 16
  %v428 = vshrl.u32 %v424, 16
  %v429 = vshll.u32 %v425, 16
  %v430 = vshrl.u32 %v425, 16
  %vm431 = vc.u32 %v423, %v427
  %v432 = vsel %vm431, 1, 0
  %v433 = vadd.s32 %v423, %v427
  %v434 = vadd.s32 %v426, %v432
  %vm435 = vc.u32 %v433, %v429
  %v436 = vsel %vm435, 1, 0
  %v437 = vadd.s32 %v433, %v429
  %v438 = vadd.s32 %v434, %v436
  %v439 = vadd.s32 %v438, %v428
  %v440 = vadd.s32 %v439, %v430
  %v441 = vmul.u32 %v396, %v387
  %v442 = vadd.s32 %v418, %v437
  %vm443 = vc.u32 %v418, %v437
  %v444 = vadd.s32 %v440, 1
  %v445 = vsel %vm443, %v444, %v440
  %v446 = vadd.s32 %v441, %v445
  %v447 = vadd.s32 %v446, 536870912
  %v448 = vshrl.u32 %v447, 30
  %v449 = vshll.u32 %v448, 30
  %v450 = vsub.s32 %v446, %v449
  %vm451 = vcmp.lt.s32.totalorder %v450, 0
  %v452 = vsub.s32 0, %v450
  %v453 = vsel %vm451, %v452, %v450
  %v454 = vclz %v453
  %v455 = vsub.s32 %v454, 2
  %vm456 = vcmp.gt.s32.totalorder 0, %v455
  %v457 = vsel %vm456, 0, %v455
  %v458 = vsub.s32 32, %v457
  %v459 = vshll.u32 %v450, %v457
  %v460 = vshrl.u32 %v442, %v458
  %v461 = vor.u32 %v459, %v460
  %v462 = vsub.s32 4294967266, %v457
  %v463 = vadd.s32 %v462, 127
  %v464 = vshll.u32 %v463, 23
  %v465 = vor.u32 4788187, %v464
  %v466 = vand.u32 2147483647, %v465
  %v468 = vcvt.s32.f32 %v461
  %v469 = vmul.f32 %v468, %v466
  %v470 = vxor.u32 %v469, 2147483648
  %v471 = vsel %vm350, %v470, %v469
  %v472 = vsub.s32 4, %v448
  %v473 = vsel %vm350, %v472, %v448
  %v474 = vsel %vm349, %v193, %v471
  %v475 = vsel %vm349, 0, %v473
  %v476 = vmul.f32 %v474, %v474
  %v477 = vmul.f32 %v476, -0.001358992
  %v478 = vadd.f32 %v477, 0.041655596
  %v479 = vmul.f32 %v476, %v478
  %v480 = vadd.f32 %v479, -0.4999988
  %v481 = vmul.f32 %v476, %v480
  %v482 = vadd.f32 1.0, %v481
  %v483 = vmul.f32 %v474, %v474
  %v484 = vmul.f32 %v483, -0.00019511016
  %v485 = vadd.f32 %v484, 0.008332121
  %v486 = vmul.f32 %v483, %v485
  %v487 = vadd.f32 %v486, -0.16666654
  %v488 = vmul.f32 %v483, %v487
  %v489 = vadd.f32 %v488, 1.0
  %v490 = vmul.f32 %v489, %v474
  %vm491 = vweird.f32 %v193
  %v492 = vadd.s32 %v475, 3
  %v493 = vand.u32 %v492, 3
  %vm494 = vcmp.lt.s32.totalorder %v493, 2
  %vm495 = vcmp.eq.s32.totalorder %v493, 0
  %v496 = vxor.u32 %v490, 2147483648
  %v497 = vsel %vm495, %v482, %v496
  %vm498 = vcmp.eq.s32.totalorder %v493, 2
  %v499 = vxor.u32 %v482, 2147483648
  %v500 = vsel %vm498, %v499, %v490
  %v501 = vsel %vm494, %v497, %v500
  %v502 = vsel %vm491, nan, %v501
  %v503 = vlaneseq
  %v504 = vshrl.u32 %v503, 7
  %v505 = vadd.s32 %v504, 8
  %v506 = vand.u32 %v504, 1
  %v507 = vand.u32 %v505, 1
  %v508 = vcvt.s32.f32 %v506
  %v509 = vcvt.s32.f32 %v507
  %v510 = vsub.f32 %v502, %v347
  %v511 = vperm.slane %v510, 0
  %v512 = vmul.f32 %v508, %v511
  %v513 = vmul.f32 %v509, %v511
  %v514 = vperm.slane %v347, 0
  %v515 = vadd.f32 %v514, %v512
  %v516 = vadd.f32 %v514, %v513
  %v517 = vshra.s32 %v504, 1
  %v518 = vshra.s32 %v505, 1
  %v519 = vand.u32 %v517, 1
  %v520 = vand.u32 %v518, 1
  %v521 = vcvt.s32.f32 %v519
  %v522 = vcvt.s32.f32 %v520
  %v523 = vperm.slane %v510, 1
  %v524 = vmul.f32 %v521, %v523
  %v525 = vmul.f32 %v522, %v523
  %v526 = vperm.slane %v347, 1
  %v527 = vadd.f32 %v526, %v524
  %v528 = vadd.f32 %v526, %v525
  %v529 = vmul.f32 %v515, %v527
  %v530 = vmul.f32 %v516, %v528
  %v531 = vshra.s32 %v504, 2
  %v532 = vshra.s32 %v505, 2
  %v533 = vand.u32 %v531, 1
  %v534 = vand.u32 %v532, 1
  %v535 = vcvt.s32.f32 %v533
  %v536 = vcvt.s32.f32 %v534
  %v537 = vperm.slane %v510, 2
  %v538 = vmul.f32 %v535, %v537
  %v539 = vmul.f32 %v536, %v537
  %v540 = vperm.slane %v347, 2
  %v541 = vadd.f32 %v540, %v538
  %v542 = vadd.f32 %v540, %v539
  %v543 = vmul.f32 %v529, %v541
  %v544 = vmul.f32 %v530, %v542
  %v545 = vshra.s32 %v504, 3
  %v546 = vshra.s32 %v505, 3
  %v547 = vand.u32 %v545, 1
  %v548 = vand.u32 %v546, 1
  %v549 = vcvt.s32.f32 %v547
  %v550 = vcvt.s32.f32 %v548
  %v551 = vperm.slane %v510, 3
  %v552 = vmul.f32 %v549, %v551
  %v553 = vmul.f32 %v550, %v551
  %v554 = vperm.slane %v347, 3
  %v555 = vadd.f32 %v554, %v552
  %v556 = vadd.f32 %v554, %v553
  %v557 = vmul.f32 %v543, %v555
  %v558 = vmul.f32 %v544, %v556
  %v559 = vlaneseq
  %v560 = vand.u32 %v559, 127
  %v561 = vand.u32 %v560, 1
  %v562 = vshll.u32 %v561, 1
  %v563 = vxor.u32 %v560, %v562
  %v564 = vshra.s32 %v563, 1
  %v565 = vand.u32 %v564, 1
  %v566 = vshll.u32 %v565, 2
  %v567 = vxor.u32 %v563, %v566
  %v568 = vshra.s32 %v567, 2
  %v569 = vand.u32 %v568, 1
  %v570 = vshll.u32 %v569, 3
  %v571 = vxor.u32 %v567, %v570
  %v572 = vshra.s32 %v571, 3
  %v573 = vand.u32 %v572, 1
  %v574 = vxor.u32 %v571, %v573
  %vm575 = vcmp.eq.s32.totalorder %v504, %v574
  %vm576 = vcmp.eq.s32.totalorder %v505, %v574
  %v577 = vsel %vm575, 1, 0
  %v578 = vsel %vm576, 1, 0
  %v579 = vcvt.s32.f32 %v577
  %v580 = vcvt.s32.f32 %v578
  %v581 = vld [vmem:[%s3] sm:$0xff]
  %v582 = vld [vmem:[%s3 + $0x8] sm:$0xff]
  %v584 = vsel %vm29, %v579, 0
  %v587 = vsel %vm29, %v580, 0
  %589 = vmatpush.msra.mxu0 0.0
  %590 = vmatpush.msra.mxu0 0.0
  %591 = vmatpush.msra.mxu0 0.0
  %592 = vmatpush.msra.mxu0 0.0
  %593 = vmatpush.msra.mxu0 0.0
  %594 = vmatpush.msra.mxu0 0.0
  %595 = vmatpush.msra.mxu0 0.0
  %596 = vmatpush.msra.mxu0 0.0
  %597 = vmatpush.msra.mxu0 0.0
  %598 = vmatpush.msra.mxu0 0.0
  %599 = vmatpush.msra.mxu0 0.0
  %600 = vmatpush.msra.mxu0 0.0
  %601 = vmatpush.msra.mxu0 0.0
  %602 = vmatpush.msra.mxu0 0.0
  %v603 = vand.u32 %v582, 4294901760
  %604 = vmatpush.msra.mxu0 %v603
  %v605 = vand.u32 %v581, 4294901760
  %606 = vmatpush.msra.mxu0 %v605
  %v607 = vand.u32 %v584, 4294901760
  %v608 = vsub.f32 %v584, %v607
  %v609 = vand.u32 %v608, 4294901760
  %v610 = vsub.f32 %v608, %v609
  %v611 = vand.u32 %v610, 4294901760
  %612 = vmatmul.f32.gmra.mxu0 %v611
  %v613 = vpop.f32.mrf.mxu0
  %v614 = vadd.f32 0.0, %v613
  %v615 = vand.u32 %v587, 4294901760
  %v616 = vsub.f32 %v587, %v615
  %v617 = vand.u32 %v616, 4294901760
  %v618 = vsub.f32 %v616, %v617
  %v619 = vand.u32 %v618, 4294901760
  %620 = vmatmul.f32.gmra.mxu0 %v619
  %v621 = vpop.f32.mrf.mxu0
  %v622 = vadd.f32 0.0, %v621
  %623 = vdwg.mxu0
  %624 = vmatpush.msra.mxu0 0.0
  %625 = vmatpush.msra.mxu0 0.0
  %626 = vmatpush.msra.mxu0 0.0
  %627 = vmatpush.msra.mxu0 0.0
  %628 = vmatpush.msra.mxu0 0.0
  %629 = vmatpush.msra.mxu0 0.0
  %630 = vmatpush.msra.mxu0 0.0
  %631 = vmatpush.msra.mxu0 0.0
  %632 = vmatpush.msra.mxu0 0.0
  %633 = vmatpush.msra.mxu0 0.0
  %634 = vmatpush.msra.mxu0 0.0
  %635 = vmatpush.msra.mxu0 0.0
  %636 = vmatpush.msra.mxu0 0.0
  %637 = vmatpush.msra.mxu0 0.0
  %v638 = vand.u32 %v582, 4294901760
  %v639 = vsub.f32 %v582, %v638
  %v640 = vand.u32 %v639, 4294901760
  %v641 = vsub.f32 %v639, %v640
  %v642 = vand.u32 %v641, 4294901760
  %643 = vmatpush.msra.mxu0 %v642
  %v644 = vand.u32 %v581, 4294901760
  %v645 = vsub.f32 %v581, %v644
  %v646 = vand.u32 %v645, 4294901760
  %v647 = vsub.f32 %v645, %v646
  %v648 = vand.u32 %v647, 4294901760
  %649 = vmatpush.msra.mxu0 %v648
  %v650 = vand.u32 %v584, 4294901760
  %651 = vmatmul.f32.gmra.mxu0 %v650
  %v652 = vpop.f32.mrf.mxu0
  %v653 = vadd.f32 %v614, %v652
  %v654 = vand.u32 %v587, 4294901760
  %655 = vmatmul.f32.gmra.mxu0 %v654
  %v656 = vpop.f32.mrf.mxu0
  %v657 = vadd.f32 %v622, %v656
  %658 = vdwg.mxu0
  %659 = vmatpush.msra.mxu0 0.0
  %660 = vmatpush.msra.mxu0 0.0
  %661 = vmatpush.msra.mxu0 0.0
  %662 = vmatpush.msra.mxu0 0.0
  %663 = vmatpush.msra.mxu0 0.0
  %664 = vmatpush.msra.mxu0 0.0
  %665 = vmatpush.msra.mxu0 0.0
  %666 = vmatpush.msra.mxu0 0.0
  %667 = vmatpush.msra.mxu0 0.0
  %668 = vmatpush.msra.mxu0 0.0
  %669 = vmatpush.msra.mxu0 0.0
  %670 = vmatpush.msra.mxu0 0.0
  %671 = vmatpush.msra.mxu0 0.0
  %672 = vmatpush.msra.mxu0 0.0
  %v673 = vand.u32 %v582, 4294901760
  %v674 = vsub.f32 %v582, %v673
  %675 = vmatpush.msra.mxu0 %v674
  %v676 = vand.u32 %v581, 4294901760
  %v677 = vsub.f32 %v581, %v676
  %678 = vmatpush.msra.mxu0 %v677
  %v679 = vand.u32 %v584, 4294901760
  %v680 = vsub.f32 %v584, %v679
  %681 = vmatmul.f32.gmra.mxu0 %v680
  %v682 = vpop.f32.mrf.mxu0
  %v683 = vadd.f32 %v653, %v682
  %v684 = vand.u32 %v587, 4294901760
  %v685 = vsub.f32 %v587, %v684
  %686 = vmatmul.f32.gmra.mxu0 %v685
  %v687 = vpop.f32.mrf.mxu0
  %v688 = vadd.f32 %v657, %v687
  %689 = vdwg.mxu0
  %690 = vmatpush.msra.mxu0 0.0
  %691 = vmatpush.msra.mxu0 0.0
  %692 = vmatpush.msra.mxu0 0.0
  %693 = vmatpush.msra.mxu0 0.0
  %694 = vmatpush.msra.mxu0 0.0
  %695 = vmatpush.msra.mxu0 0.0
  %696 = vmatpush.msra.mxu0 0.0
  %697 = vmatpush.msra.mxu0 0.0
  %698 = vmatpush.msra.mxu0 0.0
  %699 = vmatpush.msra.mxu0 0.0
  %700 = vmatpush.msra.mxu0 0.0
  %701 = vmatpush.msra.mxu0 0.0
  %702 = vmatpush.msra.mxu0 0.0
  %703 = vmatpush.msra.mxu0 0.0
  %v704 = vand.u32 %v582, 4294901760
  %705 = vmatpush.msra.mxu0 %v704
  %v706 = vand.u32 %v581, 4294901760
  %707 = vmatpush.msra.mxu0 %v706
  %v708 = vand.u32 %v584, 4294901760
  %v709 = vsub.f32 %v584, %v708
  %v710 = vand.u32 %v709, 4294901760
  %711 = vmatmul.f32.gmra.mxu0 %v710
  %v712 = vpop.f32.mrf.mxu0
  %v713 = vadd.f32 %v683, %v712
  %v714 = vand.u32 %v587, 4294901760
  %v715 = vsub.f32 %v587, %v714
  %v716 = vand.u32 %v715, 4294901760
  %717 = vmatmul.f32.gmra.mxu0 %v716
  %v718 = vpop.f32.mrf.mxu0
  %v719 = vadd.f32 %v688, %v718
  %720 = vdwg.mxu0
  %721 = vmatpush.msra.mxu0 0.0
  %722 = vmatpush.msra.mxu0 0.0
  %723 = vmatpush.msra.mxu0 0.0
  %724 = vmatpush.msra.mxu0 0.0
  %725 = vmatpush.msra.mxu0 0.0
  %726 = vmatpush.msra.mxu0 0.0
  %727 = vmatpush.msra.mxu0 0.0
  %728 = vmatpush.msra.mxu0 0.0
  %729 = vmatpush.msra.mxu0 0.0
  %730 = vmatpush.msra.mxu0 0.0
  %731 = vmatpush.msra.mxu0 0.0
  %732 = vmatpush.msra.mxu0 0.0
  %733 = vmatpush.msra.mxu0 0.0
  %734 = vmatpush.msra.mxu0 0.0
  %v735 = vand.u32 %v582, 4294901760
  %v736 = vsub.f32 %v582, %v735
  %v737 = vand.u32 %v736, 4294901760
  %738 = vmatpush.msra.mxu0 %v737
  %v739 = vand.u32 %v581, 4294901760
  %v740 = vsub.f32 %v581, %v739
  %v741 = vand.u32 %v740, 4294901760
  %742 = vmatpush.msra.mxu0 %v741
  %v743 = vand.u32 %v584, 4294901760
  %744 = vmatmul.f32.gmra.mxu0 %v743
  %v745 = vpop.f32.mrf.mxu0
  %v746 = vadd.f32 %v713, %v745
  %v747 = vand.u32 %v587, 4294901760
  %748 = vmatmul.f32.gmra.mxu0 %v747
  %v749 = vpop.f32.mrf.mxu0
  %v750 = vadd.f32 %v719, %v749
  %751 = vdwg.mxu0
  %752 = vmatpush.msra.mxu0 0.0
  %753 = vmatpush.msra.mxu0 0.0
  %754 = vmatpush.msra.mxu0 0.0
  %755 = vmatpush.msra.mxu0 0.0
  %756 = vmatpush.msra.mxu0 0.0
  %757 = vmatpush.msra.mxu0 0.0
  %758 = vmatpush.msra.mxu0 0.0
  %759 = vmatpush.msra.mxu0 0.0
  %760 = vmatpush.msra.mxu0 0.0
  %761 = vmatpush.msra.mxu0 0.0
  %762 = vmatpush.msra.mxu0 0.0
  %763 = vmatpush.msra.mxu0 0.0
  %764 = vmatpush.msra.mxu0 0.0
  %765 = vmatpush.msra.mxu0 0.0
  %v766 = vand.u32 %v582, 4294901760
  %767 = vmatpush.msra.mxu0 %v766
  %v768 = vand.u32 %v581, 4294901760
  %769 = vmatpush.msra.mxu0 %v768
  %v770 = vand.u32 %v584, 4294901760
  %771 = vmatmul.f32.gmra.mxu0 %v770
  %v772 = vpop.f32.mrf.mxu0
  %v773 = vadd.f32 %v746, %v772
  %v774 = vand.u32 %v587, 4294901760
  %775 = vmatmul.f32.gmra.mxu0 %v774
  %v776 = vpop.f32.mrf.mxu0
  %v777 = vadd.f32 %v750, %v776
  %778 = vdwg.mxu0
  %s779 = scalar_lea.vmem %s3, 16
  %v780 = vld [vmem:[%s779] sm:$0xff]
  %v781 = vld [vmem:[%s779 + $0x8] sm:$0xff]
  %782 = vmatpush.msra.mxu0 0.0
  %783 = vmatpush.msra.mxu0 0.0
  %784 = vmatpush.msra.mxu0 0.0
  %785 = vmatpush.msra.mxu0 0.0
  %786 = vmatpush.msra.mxu0 0.0
  %787 = vmatpush.msra.mxu0 0.0
  %788 = vmatpush.msra.mxu0 0.0
  %789 = vmatpush.msra.mxu0 0.0
  %790 = vmatpush.msra.mxu0 0.0
  %791 = vmatpush.msra.mxu0 0.0
  %792 = vmatpush.msra.mxu0 0.0
  %793 = vmatpush.msra.mxu0 0.0
  %794 = vmatpush.msra.mxu0 0.0
  %795 = vmatpush.msra.mxu0 0.0
  %v796 = vand.u32 %v781, 4294901760
  %797 = vmatpush.msra.mxu0 %v796
  %v798 = vand.u32 %v780, 4294901760
  %799 = vmatpush.msra.mxu0 %v798
  %v800 = vand.u32 %v584, 4294901760
  %v801 = vsub.f32 %v584, %v800
  %v802 = vand.u32 %v801, 4294901760
  %v803 = vsub.f32 %v801, %v802
  %v804 = vand.u32 %v803, 4294901760
  %805 = vmatmul.f32.gmra.mxu0 %v804
  %v806 = vpop.f32.mrf.mxu0
  %v807 = vadd.f32 0.0, %v806
  %v808 = vand.u32 %v587, 4294901760
  %v809 = vsub.f32 %v587, %v808
  %v810 = vand.u32 %v809, 4294901760
  %v811 = vsub.f32 %v809, %v810
  %v812 = vand.u32 %v811, 4294901760
  %813 = vmatmul.f32.gmra.mxu0 %v812
  %v814 = vpop.f32.mrf.mxu0
  %v815 = vadd.f32 0.0, %v814
  %816 = vdwg.mxu0
  %817 = vmatpush.msra.mxu0 0.0
  %818 = vmatpush.msra.mxu0 0.0
  %819 = vmatpush.msra.mxu0 0.0
  %820 = vmatpush.msra.mxu0 0.0
  %821 = vmatpush.msra.mxu0 0.0
  %822 = vmatpush.msra.mxu0 0.0
  %823 = vmatpush.msra.mxu0 0.0
  %824 = vmatpush.msra.mxu0 0.0
  %825 = vmatpush.msra.mxu0 0.0
  %826 = vmatpush.msra.mxu0 0.0
  %827 = vmatpush.msra.mxu0 0.0
  %828 = vmatpush.msra.mxu0 0.0
  %829 = vmatpush.msra.mxu0 0.0
  %830 = vmatpush.msra.mxu0 0.0
  %v831 = vand.u32 %v781, 4294901760
  %v832 = vsub.f32 %v781, %v831
  %v833 = vand.u32 %v832, 4294901760
  %v834 = vsub.f32 %v832, %v833
  %v835 = vand.u32 %v834, 4294901760
  %836 = vmatpush.msra.mxu0 %v835
  %v837 = vand.u32 %v780, 4294901760
  %v838 = vsub.f32 %v780, %v837
  %v839 = vand.u32 %v838, 4294901760
  %v840 = vsub.f32 %v838, %v839
  %v841 = vand.u32 %v840, 4294901760
  %842 = vmatpush.msra.mxu0 %v841
  %v843 = vand.u32 %v584, 4294901760
  %844 = vmatmul.f32.gmra.mxu0 %v843
  %v845 = vpop.f32.mrf.mxu0
  %v846 = vadd.f32 %v807, %v845
  %v847 = vand.u32 %v587, 4294901760
  %848 = vmatmul.f32.gmra.mxu0 %v847
  %v849 = vpop.f32.mrf.mxu0
  %v850 = vadd.f32 %v815, %v849
  %851 = vdwg.mxu0
  %852 = vmatpush.msra.mxu0 0.0
  %853 = vmatpush.msra.mxu0 0.0
  %854 = vmatpush.msra.mxu0 0.0
  %855 = vmatpush.msra.mxu0 0.0
  %856 = vmatpush.msra.mxu0 0.0
  %857 = vmatpush.msra.mxu0 0.0
  %858 = vmatpush.msra.mxu0 0.0
  %859 = vmatpush.msra.mxu0 0.0
  %860 = vmatpush.msra.mxu0 0.0
  %861 = vmatpush.msra.mxu0 0.0
  %862 = vmatpush.msra.mxu0 0.0
  %863 = vmatpush.msra.mxu0 0.0
  %864 = vmatpush.msra.mxu0 0.0
  %865 = vmatpush.msra.mxu0 0.0
  %v866 = vand.u32 %v781, 4294901760
  %v867 = vsub.f32 %v781, %v866
  %868 = vmatpush.msra.mxu0 %v867
  %v869 = vand.u32 %v780, 4294901760
  %v870 = vsub.f32 %v780, %v869
  %871 = vmatpush.msra.mxu0 %v870
  %v872 = vand.u32 %v584, 4294901760
  %v873 = vsub.f32 %v584, %v872
  %874 = vmatmul.f32.gmra.mxu0 %v873
  %v875 = vpop.f32.mrf.mxu0
  %v876 = vadd.f32 %v846, %v875
  %v877 = vand.u32 %v587, 4294901760
  %v878 = vsub.f32 %v587, %v877
  %879 = vmatmul.f32.gmra.mxu0 %v878
  %v880 = vpop.f32.mrf.mxu0
  %v881 = vadd.f32 %v850, %v880
  %882 = vdwg.mxu0
  %883 = vmatpush.msra.mxu0 0.0
  %884 = vmatpush.msra.mxu0 0.0
  %885 = vmatpush.msra.mxu0 0.0
  %886 = vmatpush.msra.mxu0 0.0
  %887 = vmatpush.msra.mxu0 0.0
  %888 = vmatpush.msra.mxu0 0.0
  %889 = vmatpush.msra.mxu0 0.0
  %890 = vmatpush.msra.mxu0 0.0
  %891 = vmatpush.msra.mxu0 0.0
  %892 = vmatpush.msra.mxu0 0.0
  %893 = vmatpush.msra.mxu0 0.0
  %894 = vmatpush.msra.mxu0 0.0
  %895 = vmatpush.msra.mxu0 0.0
  %896 = vmatpush.msra.mxu0 0.0
  %v897 = vand.u32 %v781, 4294901760
  %898 = vmatpush.msra.mxu0 %v897
  %v899 = vand.u32 %v780, 4294901760
  %900 = vmatpush.msra.mxu0 %v899
  %v901 = vand.u32 %v584, 4294901760
  %v902 = vsub.f32 %v584, %v901
  %v903 = vand.u32 %v902, 4294901760
  %904 = vmatmul.f32.gmra.mxu0 %v903
  %v905 = vpop.f32.mrf.mxu0
  %v906 = vadd.f32 %v876, %v905
  %v907 = vand.u32 %v587, 4294901760
  %v908 = vsub.f32 %v587, %v907
  %v909 = vand.u32 %v908, 4294901760
  %910 = vmatmul.f32.gmra.mxu0 %v909
  %v911 = vpop.f32.mrf.mxu0
  %v912 = vadd.f32 %v881, %v911
  %913 = vdwg.mxu0
  %914 = vmatpush.msra.mxu0 0.0
  %915 = vmatpush.msra.mxu0 0.0
  %916 = vmatpush.msra.mxu0 0.0
  %917 = vmatpush.msra.mxu0 0.0
  %918 = vmatpush.msra.mxu0 0.0
  %919 = vmatpush.msra.mxu0 0.0
  %920 = vmatpush.msra.mxu0 0.0
  %921 = vmatpush.msra.mxu0 0.0
  %922 = vmatpush.msra.mxu0 0.0
  %923 = vmatpush.msra.mxu0 0.0
  %924 = vmatpush.msra.mxu0 0.0
  %925 = vmatpush.msra.mxu0 0.0
  %926 = vmatpush.msra.mxu0 0.0
  %927 = vmatpush.msra.mxu0 0.0
  %v928 = vand.u32 %v781, 4294901760
  %v929 = vsub.f32 %v781, %v928
  %v930 = vand.u32 %v929, 4294901760
  %931 = vmatpush.msra.mxu0 %v930
  %v932 = vand.u32 %v780, 4294901760
  %v933 = vsub.f32 %v780, %v932
  %v934 = vand.u32 %v933, 4294901760
  %935 = vmatpush.msra.mxu0 %v934
  %v936 = vand.u32 %v584, 4294901760
  %937 = vmatmul.f32.gmra.mxu0 %v936
  %v938 = vpop.f32.mrf.mxu0
  %v939 = vadd.f32 %v906, %v938
  %v940 = vand.u32 %v587, 4294901760
  %941 = vmatmul.f32.gmra.mxu0 %v940
  %v942 = vpop.f32.mrf.mxu0
  %v943 = vadd.f32 %v912, %v942
  %944 = vdwg.mxu0
  %945 = vmatpush.msra.mxu0 0.0
  %946 = vmatpush.msra.mxu0 0.0
  %947 = vmatpush.msra.mxu0 0.0
  %948 = vmatpush.msra.mxu0 0.0
  %949 = vmatpush.msra.mxu0 0.0
  %950 = vmatpush.msra.mxu0 0.0
  %951 = vmatpush.msra.mxu0 0.0
  %952 = vmatpush.msra.mxu0 0.0
  %953 = vmatpush.msra.mxu0 0.0
  %954 = vmatpush.msra.mxu0 0.0
  %955 = vmatpush.msra.mxu0 0.0
  %956 = vmatpush.msra.mxu0 0.0
  %957 = vmatpush.msra.mxu0 0.0
  %958 = vmatpush.msra.mxu0 0.0
  %v959 = vand.u32 %v781, 4294901760
  %960 = vmatpush.msra.mxu0 %v959
  %v961 = vand.u32 %v780, 4294901760
  %962 = vmatpush.msra.mxu0 %v961
  %v963 = vand.u32 %v584, 4294901760
  %964 = vmatmul.f32.gmra.mxu0 %v963
  %v965 = vpop.f32.mrf.mxu0
  %v966 = vadd.f32 %v939, %v965
  %v967 = vand.u32 %v587, 4294901760
  %968 = vmatmul.f32.gmra.mxu0 %v967
  %v969 = vpop.f32.mrf.mxu0
  %v970 = vadd.f32 %v943, %v969
  %971 = vdwg.mxu0
  %v973 = vsel %vm29, %v966, 0
  %v976 = vsel %vm29, %v970, 0
  %978 = vmatpush.msra.mxu0 0.0
  %979 = vmatpush.msra.mxu0 0.0
  %980 = vmatpush.msra.mxu0 0.0
  %981 = vmatpush.msra.mxu0 0.0
  %982 = vmatpush.msra.mxu0 0.0
  %983 = vmatpush.msra.mxu0 0.0
  %984 = vmatpush.msra.mxu0 0.0
  %985 = vmatpush.msra.mxu0 0.0
  %986 = vmatpush.msra.mxu0 0.0
  %987 = vmatpush.msra.mxu0 0.0
  %988 = vmatpush.msra.mxu0 0.0
  %989 = vmatpush.msra.mxu0 0.0
  %990 = vmatpush.msra.mxu0 0.0
  %991 = vmatpush.msra.mxu0 0.0
  %v992 = vand.u32 %v777, 4294901760
  %993 = vmatpush.msra.mxu0 %v992
  %v994 = vand.u32 %v773, 4294901760
  %995 = vmatpush.msra.mxu0 %v994
  %v996 = vand.u32 %v973, 4294901760
  %v997 = vsub.f32 %v973, %v996
  %v998 = vand.u32 %v997, 4294901760
  %v999 = vsub.f32 %v997, %v998
  %v1000 = vand.u32 %v999, 4294901760
  %1001 = vmatmul.f32.gmra.mxu0 %v1000
  %v1002 = vpop.f32.mrf.mxu0
  %v1003 = vadd.f32 0.0, %v1002
  %v1004 = vand.u32 %v976, 4294901760
  %v1005 = vsub.f32 %v976, %v1004
  %v1006 = vand.u32 %v1005, 4294901760
  %v1007 = vsub.f32 %v1005, %v1006
  %v1008 = vand.u32 %v1007, 4294901760
  %1009 = vmatmul.f32.gmra.mxu0 %v1008
  %v1010 = vpop.f32.mrf.mxu0
  %v1011 = vadd.f32 0.0, %v1010
  %1012 = vdwg.mxu0
  %1013 = vmatpush.msra.mxu0 0.0
  %1014 = vmatpush.msra.mxu0 0.0
  %1015 = vmatpush.msra.mxu0 0.0
  %1016 = vmatpush.msra.mxu0 0.0
  %1017 = vmatpush.msra.mxu0 0.0
  %1018 = vmatpush.msra.mxu0 0.0
  %1019 = vmatpush.msra.mxu0 0.0
  %1020 = vmatpush.msra.mxu0 0.0
  %1021 = vmatpush.msra.mxu0 0.0
  %1022 = vmatpush.msra.mxu0 0.0
  %1023 = vmatpush.msra.mxu0 0.0
  %1024 = vmatpush.msra.mxu0 0.0
  %1025 = vmatpush.msra.mxu0 0.0
  %1026 = vmatpush.msra.mxu0 0.0
  %v1027 = vand.u32 %v777, 4294901760
  %v1028 = vsub.f32 %v777, %v1027
  %v1029 = vand.u32 %v1028, 4294901760
  %v1030 = vsub.f32 %v1028, %v1029
  %v1031 = vand.u32 %v1030, 4294901760
  %1032 = vmatpush.msra.mxu0 %v1031
  %v1033 = vand.u32 %v773, 4294901760
  %v1034 = vsub.f32 %v773, %v1033
  %v1035 = vand.u32 %v1034, 4294901760
  %v1036 = vsub.f32 %v1034, %v1035
  %v1037 = vand.u32 %v1036, 4294901760
  %1038 = vmatpush.msra.mxu0 %v1037
  %v1039 = vand.u32 %v973, 4294901760
  %1040 = vmatmul.f32.gmra.mxu0 %v1039
  %v1041 = vpop.f32.mrf.mxu0
  %v1042 = vadd.f32 %v1003, %v1041
  %v1043 = vand.u32 %v976, 4294901760
  %1044 = vmatmul.f32.gmra.mxu0 %v1043
  %v1045 = vpop.f32.mrf.mxu0
  %v1046 = vadd.f32 %v1011, %v1045
  %1047 = vdwg.mxu0
  %1048 = vmatpush.msra.mxu0 0.0
  %1049 = vmatpush.msra.mxu0 0.0
  %1050 = vmatpush.msra.mxu0 0.0
  %1051 = vmatpush.msra.mxu0 0.0
  %1052 = vmatpush.msra.mxu0 0.0
  %1053 = vmatpush.msra.mxu0 0.0
  %1054 = vmatpush.msra.mxu0 0.0
  %1055 = vmatpush.msra.mxu0 0.0
  %1056 = vmatpush.msra.mxu0 0.0
  %1057 = vmatpush.msra.mxu0 0.0
  %1058 = vmatpush.msra.mxu0 0.0
  %1059 = vmatpush.msra.mxu0 0.0
  %1060 = vmatpush.msra.mxu0 0.0
  %1061 = vmatpush.msra.mxu0 0.0
  %v1062 = vand.u32 %v777, 4294901760
  %v1063 = vsub.f32 %v777, %v1062
  %1064 = vmatpush.msra.mxu0 %v1063
  %v1065 = vand.u32 %v773, 4294901760
  %v1066 = vsub.f32 %v773, %v1065
  %1067 = vmatpush.msra.mxu0 %v1066
  %v1068 = vand.u32 %v973, 4294901760
  %v1069 = vsub.f32 %v973, %v1068
  %1070 = vmatmul.f32.gmra.mxu0 %v1069
  %v1071 = vpop.f32.mrf.mxu0
  %v1072 = vadd.f32 %v1042, %v1071
  %v1073 = vand.u32 %v976, 4294901760
  %v1074 = vsub.f32 %v976, %v1073
  %1075 = vmatmul.f32.gmra.mxu0 %v1074
  %v1076 = vpop.f32.mrf.mxu0
  %v1077 = vadd.f32 %v1046, %v1076
  %1078 = vdwg.mxu0
  %1079 = vmatpush.msra.mxu0 0.0
  %1080 = vmatpush.msra.mxu0 0.0
  %1081 = vmatpush.msra.mxu0 0.0
  %1082 = vmatpush.msra.mxu0 0.0
  %1083 = vmatpush.msra.mxu0 0.0
  %1084 = vmatpush.msra.mxu0 0.0
  %1085 = vmatpush.msra.mxu0 0.0
  %1086 = vmatpush.msra.mxu0 0.0
  %1087 = vmatpush.msra.mxu0 0.0
  %1088 = vmatpush.msra.mxu0 0.0
  %1089 = vmatpush.msra.mxu0 0.0
  %1090 = vmatpush.msra.mxu0 0.0
  %1091 = vmatpush.msra.mxu0 0.0
  %1092 = vmatpush.msra.mxu0 0.0
  %v1093 = vand.u32 %v777, 4294901760
  %1094 = vmatpush.msra.mxu0 %v1093
  %v1095 = vand.u32 %v773, 4294901760
  %1096 = vmatpush.msra.mxu0 %v1095
  %v1097 = vand.u32 %v973, 4294901760
  %v1098 = vsub.f32 %v973, %v1097
  %v1099 = vand.u32 %v1098, 4294901760
  %1100 = vmatmul.f32.gmra.mxu0 %v1099
  %v1101 = vpop.f32.mrf.mxu0
  %v1102 = vadd.f32 %v1072, %v1101
  %v1103 = vand.u32 %v976, 4294901760
  %v1104 = vsub.f32 %v976, %v1103
  %v1105 = vand.u32 %v1104, 4294901760
  %1106 = vmatmul.f32.gmra.mxu0 %v1105
  %v1107 = vpop.f32.mrf.mxu0
  %v1108 = vadd.f32 %v1077, %v1107
  %1109 = vdwg.mxu0
  %1110 = vmatpush.msra.mxu0 0.0
  %1111 = vmatpush.msra.mxu0 0.0
  %1112 = vmatpush.msra.mxu0 0.0
  %1113 = vmatpush.msra.mxu0 0.0
  %1114 = vmatpush.msra.mxu0 0.0
  %1115 = vmatpush.msra.mxu0 0.0
  %1116 = vmatpush.msra.mxu0 0.0
  %1117 = vmatpush.msra.mxu0 0.0
  %1118 = vmatpush.msra.mxu0 0.0
  %1119 = vmatpush.msra.mxu0 0.0
  %1120 = vmatpush.msra.mxu0 0.0
  %1121 = vmatpush.msra.mxu0 0.0
  %1122 = vmatpush.msra.mxu0 0.0
  %1123 = vmatpush.msra.mxu0 0.0
  %v1124 = vand.u32 %v777, 4294901760
  %v1125 = vsub.f32 %v777, %v1124
  %v1126 = vand.u32 %v1125, 4294901760
  %1127 = vmatpush.msra.mxu0 %v1126
  %v1128 = vand.u32 %v773, 4294901760
  %v1129 = vsub.f32 %v773, %v1128
  %v1130 = vand.u32 %v1129, 4294901760
  %1131 = vmatpush.msra.mxu0 %v1130
  %v1132 = vand.u32 %v973, 4294901760
  %1133 = vmatmul.f32.gmra.mxu0 %v1132
  %v1134 = vpop.f32.mrf.mxu0
  %v1135 = vadd.f32 %v1102, %v1134
  %v1136 = vand.u32 %v976, 4294901760
  %1137 = vmatmul.f32.gmra.mxu0 %v1136
  %v1138 = vpop.f32.mrf.mxu0
  %v1139 = vadd.f32 %v1108, %v1138
  %1140 = vdwg.mxu0
  %1141 = vmatpush.msra.mxu0 0.0
  %1142 = vmatpush.msra.mxu0 0.0
  %1143 = vmatpush.msra.mxu0 0.0
  %1144 = vmatpush.msra.mxu0 0.0
  %1145 = vmatpush.msra.mxu0 0.0
  %1146 = vmatpush.msra.mxu0 0.0
  %1147 = vmatpush.msra.mxu0 0.0
  %1148 = vmatpush.msra.mxu0 0.0
  %1149 = vmatpush.msra.mxu0 0.0
  %1150 = vmatpush.msra.mxu0 0.0
  %1151 = vmatpush.msra.mxu0 0.0
  %1152 = vmatpush.msra.mxu0 0.0
  %1153 = vmatpush.msra.mxu0 0.0
  %1154 = vmatpush.msra.mxu0 0.0
  %v1155 = vand.u32 %v777, 4294901760
  %1156 = vmatpush.msra.mxu0 %v1155
  %v1157 = vand.u32 %v773, 4294901760
  %1158 = vmatpush.msra.mxu0 %v1157
  %v1159 = vand.u32 %v973, 4294901760
  %1160 = vmatmul.f32.gmra.mxu0 %v1159
  %v1161 = vpop.f32.mrf.mxu0
  %v1162 = vadd.f32 %v1135, %v1161
  %v1163 = vand.u32 %v976, 4294901760
  %1164 = vmatmul.f32.gmra.mxu0 %v1163
  %v1165 = vpop.f32.mrf.mxu0
  %v1166 = vadd.f32 %v1139, %v1165
  %1167 = vdwg.mxu0
  %s1168 = scalar_lea.vmem %s3, 32
  %v1169 = vld [vmem:[%s1168] sm:$0xff]
  %v1170 = vld [vmem:[%s1168 + $0x8] sm:$0xff]
  %1171 = vmatpush.msra.mxu0 0.0
  %1172 = vmatpush.msra.mxu0 0.0
  %1173 = vmatpush.msra.mxu0 0.0
  %1174 = vmatpush.msra.mxu0 0.0
  %1175 = vmatpush.msra.mxu0 0.0
  %1176 = vmatpush.msra.mxu0 0.0
  %1177 = vmatpush.msra.mxu0 0.0
  %1178 = vmatpush.msra.mxu0 0.0
  %1179 = vmatpush.msra.mxu0 0.0
  %1180 = vmatpush.msra.mxu0 0.0
  %1181 = vmatpush.msra.mxu0 0.0
  %1182 = vmatpush.msra.mxu0 0.0
  %1183 = vmatpush.msra.mxu0 0.0
  %1184 = vmatpush.msra.mxu0 0.0
  %v1185 = vand.u32 %v1170, 4294901760
  %1186 = vmatpush.msra.mxu0 %v1185
  %v1187 = vand.u32 %v1169, 4294901760
  %1188 = vmatpush.msra.mxu0 %v1187
  %v1189 = vand.u32 %v584, 4294901760
  %v1190 = vsub.f32 %v584, %v1189
  %v1191 = vand.u32 %v1190, 4294901760
  %v1192 = vsub.f32 %v1190, %v1191
  %v1193 = vand.u32 %v1192, 4294901760
  %1194 = vmatmul.f32.gmra.mxu0 %v1193
  %v1195 = vpop.f32.mrf.mxu0
  %v1196 = vadd.f32 0.0, %v1195
  %v1197 = vand.u32 %v587, 4294901760
  %v1198 = vsub.f32 %v587, %v1197
  %v1199 = vand.u32 %v1198, 4294901760
  %v1200 = vsub.f32 %v1198, %v1199
  %v1201 = vand.u32 %v1200, 4294901760
  %1202 = vmatmul.f32.gmra.mxu0 %v1201
  %v1203 = vpop.f32.mrf.mxu0
  %v1204 = vadd.f32 0.0, %v1203
  %1205 = vdwg.mxu0
  %1206 = vmatpush.msra.mxu0 0.0
  %1207 = vmatpush.msra.mxu0 0.0
  %1208 = vmatpush.msra.mxu0 0.0
  %1209 = vmatpush.msra.mxu0 0.0
  %1210 = vmatpush.msra.mxu0 0.0
  %1211 = vmatpush.msra.mxu0 0.0
  %1212 = vmatpush.msra.mxu0 0.0
  %1213 = vmatpush.msra.mxu0 0.0
  %1214 = vmatpush.msra.mxu0 0.0
  %1215 = vmatpush.msra.mxu0 0.0
  %1216 = vmatpush.msra.mxu0 0.0
  %1217 = vmatpush.msra.mxu0 0.0
  %1218 = vmatpush.msra.mxu0 0.0
  %1219 = vmatpush.msra.mxu0 0.0
  %v1220 = vand.u32 %v1170, 4294901760
  %v1221 = vsub.f32 %v1170, %v1220
  %v1222 = vand.u32 %v1221, 4294901760
  %v1223 = vsub.f32 %v1221, %v1222
  %v1224 = vand.u32 %v1223, 4294901760
  %1225 = vmatpush.msra.mxu0 %v1224
  %v1226 = vand.u32 %v1169, 4294901760
  %v1227 = vsub.f32 %v1169, %v1226
  %v1228 = vand.u32 %v1227, 4294901760
  %v1229 = vsub.f32 %v1227, %v1228
  %v1230 = vand.u32 %v1229, 4294901760
  %1231 = vmatpush.msra.mxu0 %v1230
  %v1232 = vand.u32 %v584, 4294901760
  %1233 = vmatmul.f32.gmra.mxu0 %v1232
  %v1234 = vpop.f32.mrf.mxu0
  %v1235 = vadd.f32 %v1196, %v1234
  %v1236 = vand.u32 %v587, 4294901760
  %1237 = vmatmul.f32.gmra.mxu0 %v1236
  %v1238 = vpop.f32.mrf.mxu0
  %v1239 = vadd.f32 %v1204, %v1238
  %1240 = vdwg.mxu0
  %1241 = vmatpush.msra.mxu0 0.0
  %1242 = vmatpush.msra.mxu0 0.0
  %1243 = vmatpush.msra.mxu0 0.0
  %1244 = vmatpush.msra.mxu0 0.0
  %1245 = vmatpush.msra.mxu0 0.0
  %1246 = vmatpush.msra.mxu0 0.0
  %1247 = vmatpush.msra.mxu0 0.0
  %1248 = vmatpush.msra.mxu0 0.0
  %1249 = vmatpush.msra.mxu0 0.0
  %1250 = vmatpush.msra.mxu0 0.0
  %1251 = vmatpush.msra.mxu0 0.0
  %1252 = vmatpush.msra.mxu0 0.0
  %1253 = vmatpush.msra.mxu0 0.0
  %1254 = vmatpush.msra.mxu0 0.0
  %v1255 = vand.u32 %v1170, 4294901760
  %v1256 = vsub.f32 %v1170, %v1255
  %1257 = vmatpush.msra.mxu0 %v1256
  %v1258 = vand.u32 %v1169, 4294901760
  %v1259 = vsub.f32 %v1169, %v1258
  %1260 = vmatpush.msra.mxu0 %v1259
  %v1261 = vand.u32 %v584, 4294901760
  %v1262 = vsub.f32 %v584, %v1261
  %1263 = vmatmul.f32.gmra.mxu0 %v1262
  %v1264 = vpop.f32.mrf.mxu0
  %v1265 = vadd.f32 %v1235, %v1264
  %v1266 = vand.u32 %v587, 4294901760
  %v1267 = vsub.f32 %v587, %v1266
  %1268 = vmatmul.f32.gmra.mxu0 %v1267
  %v1269 = vpop.f32.mrf.mxu0
  %v1270 = vadd.f32 %v1239, %v1269
  %1271 = vdwg.mxu0
  %1272 = vmatpush.msra.mxu0 0.0
  %1273 = vmatpush.msra.mxu0 0.0
  %1274 = vmatpush.msra.mxu0 0.0
  %1275 = vmatpush.msra.mxu0 0.0
  %1276 = vmatpush.msra.mxu0 0.0
  %1277 = vmatpush.msra.mxu0 0.0
  %1278 = vmatpush.msra.mxu0 0.0
  %1279 = vmatpush.msra.mxu0 0.0
  %1280 = vmatpush.msra.mxu0 0.0
  %1281 = vmatpush.msra.mxu0 0.0
  %1282 = vmatpush.msra.mxu0 0.0
  %1283 = vmatpush.msra.mxu0 0.0
  %1284 = vmatpush.msra.mxu0 0.0
  %1285 = vmatpush.msra.mxu0 0.0
  %v1286 = vand.u32 %v1170, 4294901760
  %1287 = vmatpush.msra.mxu0 %v1286
  %v1288 = vand.u32 %v1169, 4294901760
  %1289 = vmatpush.msra.mxu0 %v1288
  %v1290 = vand.u32 %v584, 4294901760
  %v1291 = vsub.f32 %v584, %v1290
  %v1292 = vand.u32 %v1291, 4294901760
  %1293 = vmatmul.f32.gmra.mxu0 %v1292
  %v1294 = vpop.f32.mrf.mxu0
  %v1295 = vadd.f32 %v1265, %v1294
  %v1296 = vand.u32 %v587, 4294901760
  %v1297 = vsub.f32 %v587, %v1296
  %v1298 = vand.u32 %v1297, 4294901760
  %1299 = vmatmul.f32.gmra.mxu0 %v1298
  %v1300 = vpop.f32.mrf.mxu0
  %v1301 = vadd.f32 %v1270, %v1300
  %1302 = vdwg.mxu0
  %1303 = vmatpush.msra.mxu0 0.0
  %1304 = vmatpush.msra.mxu0 0.0
  %1305 = vmatpush.msra.mxu0 0.0
  %1306 = vmatpush.msra.mxu0 0.0
  %1307 = vmatpush.msra.mxu0 0.0
  %1308 = vmatpush.msra.mxu0 0.0
  %1309 = vmatpush.msra.mxu0 0.0
  %1310 = vmatpush.msra.mxu0 0.0
  %1311 = vmatpush.msra.mxu0 0.0
  %1312 = vmatpush.msra.mxu0 0.0
  %1313 = vmatpush.msra.mxu0 0.0
  %1314 = vmatpush.msra.mxu0 0.0
  %1315 = vmatpush.msra.mxu0 0.0
  %1316 = vmatpush.msra.mxu0 0.0
  %v1317 = vand.u32 %v1170, 4294901760
  %v1318 = vsub.f32 %v1170, %v1317
  %v1319 = vand.u32 %v1318, 4294901760
  %1320 = vmatpush.msra.mxu0 %v1319
  %v1321 = vand.u32 %v1169, 4294901760
  %v1322 = vsub.f32 %v1169, %v1321
  %v1323 = vand.u32 %v1322, 4294901760
  %1324 = vmatpush.msra.mxu0 %v1323
  %v1325 = vand.u32 %v584, 4294901760
  %1326 = vmatmul.f32.gmra.mxu0 %v1325
  %v1327 = vpop.f32.mrf.mxu0
  %v1328 = vadd.f32 %v1295, %v1327
  %v1329 = vand.u32 %v587, 4294901760
  %1330 = vmatmul.f32.gmra.mxu0 %v1329
  %v1331 = vpop.f32.mrf.mxu0
  %v1332 = vadd.f32 %v1301, %v1331
  %1333 = vdwg.mxu0
  %1334 = vmatpush.msra.mxu0 0.0
  %1335 = vmatpush.msra.mxu0 0.0
  %1336 = vmatpush.msra.mxu0 0.0
  %1337 = vmatpush.msra.mxu0 0.0
  %1338 = vmatpush.msra.mxu0 0.0
  %1339 = vmatpush.msra.mxu0 0.0
  %1340 = vmatpush.msra.mxu0 0.0
  %1341 = vmatpush.msra.mxu0 0.0
  %1342 = vmatpush.msra.mxu0 0.0
  %1343 = vmatpush.msra.mxu0 0.0
  %1344 = vmatpush.msra.mxu0 0.0
  %1345 = vmatpush.msra.mxu0 0.0
  %1346 = vmatpush.msra.mxu0 0.0
  %1347 = vmatpush.msra.mxu0 0.0
  %v1348 = vand.u32 %v1170, 4294901760
  %1349 = vmatpush.msra.mxu0 %v1348
  %v1350 = vand.u32 %v1169, 4294901760
  %1351 = vmatpush.msra.mxu0 %v1350
  %v1352 = vand.u32 %v584, 4294901760
  %1353 = vmatmul.f32.gmra.mxu0 %v1352
  %v1354 = vpop.f32.mrf.mxu0
  %v1355 = vadd.f32 %v1328, %v1354
  %v1356 = vand.u32 %v587, 4294901760
  %1357 = vmatmul.f32.gmra.mxu0 %v1356
  %v1358 = vpop.f32.mrf.mxu0
  %v1359 = vadd.f32 %v1332, %v1358
  %1360 = vdwg.mxu0
  %v1362 = vsel %vm29, %v1355, 0
  %v1365 = vsel %vm29, %v1359, 0
  %1367 = vmatpush.msra.mxu0 0.0
  %1368 = vmatpush.msra.mxu0 0.0
  %1369 = vmatpush.msra.mxu0 0.0
  %1370 = vmatpush.msra.mxu0 0.0
  %1371 = vmatpush.msra.mxu0 0.0
  %1372 = vmatpush.msra.mxu0 0.0
  %1373 = vmatpush.msra.mxu0 0.0
  %1374 = vmatpush.msra.mxu0 0.0
  %1375 = vmatpush.msra.mxu0 0.0
  %1376 = vmatpush.msra.mxu0 0.0
  %1377 = vmatpush.msra.mxu0 0.0
  %1378 = vmatpush.msra.mxu0 0.0
  %1379 = vmatpush.msra.mxu0 0.0
  %1380 = vmatpush.msra.mxu0 0.0
  %v1381 = vand.u32 %v1166, 4294901760
  %1382 = vmatpush.msra.mxu0 %v1381
  %v1383 = vand.u32 %v1162, 4294901760
  %1384 = vmatpush.msra.mxu0 %v1383
  %v1385 = vand.u32 %v1362, 4294901760
  %v1386 = vsub.f32 %v1362, %v1385
  %v1387 = vand.u32 %v1386, 4294901760
  %v1388 = vsub.f32 %v1386, %v1387
  %v1389 = vand.u32 %v1388, 4294901760
  %1390 = vmatmul.f32.gmra.mxu0 %v1389
  %v1391 = vpop.f32.mrf.mxu0
  %v1392 = vadd.f32 0.0, %v1391
  %v1393 = vand.u32 %v1365, 4294901760
  %v1394 = vsub.f32 %v1365, %v1393
  %v1395 = vand.u32 %v1394, 4294901760
  %v1396 = vsub.f32 %v1394, %v1395
  %v1397 = vand.u32 %v1396, 4294901760
  %1398 = vmatmul.f32.gmra.mxu0 %v1397
  %v1399 = vpop.f32.mrf.mxu0
  %v1400 = vadd.f32 0.0, %v1399
  %1401 = vdwg.mxu0
  %1402 = vmatpush.msra.mxu0 0.0
  %1403 = vmatpush.msra.mxu0 0.0
  %1404 = vmatpush.msra.mxu0 0.0
  %1405 = vmatpush.msra.mxu0 0.0
  %1406 = vmatpush.msra.mxu0 0.0
  %1407 = vmatpush.msra.mxu0 0.0
  %1408 = vmatpush.msra.mxu0 0.0
  %1409 = vmatpush.msra.mxu0 0.0
  %1410 = vmatpush.msra.mxu0 0.0
  %1411 = vmatpush.msra.mxu0 0.0
  %1412 = vmatpush.msra.mxu0 0.0
  %1413 = vmatpush.msra.mxu0 0.0
  %1414 = vmatpush.msra.mxu0 0.0
  %1415 = vmatpush.msra.mxu0 0.0
  %v1416 = vand.u32 %v1166, 4294901760
  %v1417 = vsub.f32 %v1166, %v1416
  %v1418 = vand.u32 %v1417, 4294901760
  %v1419 = vsub.f32 %v1417, %v1418
  %v1420 = vand.u32 %v1419, 4294901760
  %1421 = vmatpush.msra.mxu0 %v1420
  %v1422 = vand.u32 %v1162, 4294901760
  %v1423 = vsub.f32 %v1162, %v1422
  %v1424 = vand.u32 %v1423, 4294901760
  %v1425 = vsub.f32 %v1423, %v1424
  %v1426 = vand.u32 %v1425, 4294901760
  %1427 = vmatpush.msra.mxu0 %v1426
  %v1428 = vand.u32 %v1362, 4294901760
  %1429 = vmatmul.f32.gmra.mxu0 %v1428
  %v1430 = vpop.f32.mrf.mxu0
  %v1431 = vadd.f32 %v1392, %v1430
  %v1432 = vand.u32 %v1365, 4294901760
  %1433 = vmatmul.f32.gmra.mxu0 %v1432
  %v1434 = vpop.f32.mrf.mxu0
  %v1435 = vadd.f32 %v1400, %v1434
  %1436 = vdwg.mxu0
  %1437 = vmatpush.msra.mxu0 0.0
  %1438 = vmatpush.msra.mxu0 0.0
  %1439 = vmatpush.msra.mxu0 0.0
  %1440 = vmatpush.msra.mxu0 0.0
  %1441 = vmatpush.msra.mxu0 0.0
  %1442 = vmatpush.msra.mxu0 0.0
  %1443 = vmatpush.msra.mxu0 0.0
  %1444 = vmatpush.msra.mxu0 0.0
  %1445 = vmatpush.msra.mxu0 0.0
  %1446 = vmatpush.msra.mxu0 0.0
  %1447 = vmatpush.msra.mxu0 0.0
  %1448 = vmatpush.msra.mxu0 0.0
  %1449 = vmatpush.msra.mxu0 0.0
  %1450 = vmatpush.msra.mxu0 0.0
  %v1451 = vand.u32 %v1166, 4294901760
  %v1452 = vsub.f32 %v1166, %v1451
  %1453 = vmatpush.msra.mxu0 %v1452
  %v1454 = vand.u32 %v1162, 4294901760
  %v1455 = vsub.f32 %v1162, %v1454
  %1456 = vmatpush.msra.mxu0 %v1455
  %v1457 = vand.u32 %v1362, 4294901760
  %v1458 = vsub.f32 %v1362, %v1457
  %1459 = vmatmul.f32.gmra.mxu0 %v1458
  %v1460 = vpop.f32.mrf.mxu0
  %v1461 = vadd.f32 %v1431, %v1460
  %v1462 = vand.u32 %v1365, 4294901760
  %v1463 = vsub.f32 %v1365, %v1462
  %1464 = vmatmul.f32.gmra.mxu0 %v1463
  %v1465 = vpop.f32.mrf.mxu0
  %v1466 = vadd.f32 %v1435, %v1465
  %1467 = vdwg.mxu0
  %1468 = vmatpush.msra.mxu0 0.0
  %1469 = vmatpush.msra.mxu0 0.0
  %1470 = vmatpush.msra.mxu0 0.0
  %1471 = vmatpush.msra.mxu0 0.0
  %1472 = vmatpush.msra.mxu0 0.0
  %1473 = vmatpush.msra.mxu0 0.0
  %1474 = vmatpush.msra.mxu0 0.0
  %1475 = vmatpush.msra.mxu0 0.0
  %1476 = vmatpush.msra.mxu0 0.0
  %1477 = vmatpush.msra.mxu0 0.0
  %1478 = vmatpush.msra.mxu0 0.0
  %1479 = vmatpush.msra.mxu0 0.0
  %1480 = vmatpush.msra.mxu0 0.0
  %1481 = vmatpush.msra.mxu0 0.0
  %v1482 = vand.u32 %v1166, 4294901760
  %1483 = vmatpush.msra.mxu0 %v1482
  %v1484 = vand.u32 %v1162, 4294901760
  %1485 = vmatpush.msra.mxu0 %v1484
  %v1486 = vand.u32 %v1362, 4294901760
  %v1487 = vsub.f32 %v1362, %v1486
  %v1488 = vand.u32 %v1487, 4294901760
  %1489 = vmatmul.f32.gmra.mxu0 %v1488
  %v1490 = vpop.f32.mrf.mxu0
  %v1491 = vadd.f32 %v1461, %v1490
  %v1492 = vand.u32 %v1365, 4294901760
  %v1493 = vsub.f32 %v1365, %v1492
  %v1494 = vand.u32 %v1493, 4294901760
  %1495 = vmatmul.f32.gmra.mxu0 %v1494
  %v1496 = vpop.f32.mrf.mxu0
  %v1497 = vadd.f32 %v1466, %v1496
  %1498 = vdwg.mxu0
  %1499 = vmatpush.msra.mxu0 0.0
  %1500 = vmatpush.msra.mxu0 0.0
  %1501 = vmatpush.msra.mxu0 0.0
  %1502 = vmatpush.msra.mxu0 0.0
  %1503 = vmatpush.msra.mxu0 0.0
  %1504 = vmatpush.msra.mxu0 0.0
  %1505 = vmatpush.msra.mxu0 0.0
  %1506 = vmatpush.msra.mxu0 0.0
  %1507 = vmatpush.msra.mxu0 0.0
  %1508 = vmatpush.msra.mxu0 0.0
  %1509 = vmatpush.msra.mxu0 0.0
  %1510 = vmatpush.msra.mxu0 0.0
  %1511 = vmatpush.msra.mxu0 0.0
  %1512 = vmatpush.msra.mxu0 0.0
  %v1513 = vand.u32 %v1166, 4294901760
  %v1514 = vsub.f32 %v1166, %v1513
  %v1515 = vand.u32 %v1514, 4294901760
  %1516 = vmatpush.msra.mxu0 %v1515
  %v1517 = vand.u32 %v1162, 4294901760
  %v1518 = vsub.f32 %v1162, %v1517
  %v1519 = vand.u32 %v1518, 4294901760
  %1520 = vmatpush.msra.mxu0 %v1519
  %v1521 = vand.u32 %v1362, 4294901760
  %1522 = vmatmul.f32.gmra.mxu0 %v1521
  %v1523 = vpop.f32.mrf.mxu0
  %v1524 = vadd.f32 %v1491, %v1523
  %v1525 = vand.u32 %v1365, 4294901760
  %1526 = vmatmul.f32.gmra.mxu0 %v1525
  %v1527 = vpop.f32.mrf.mxu0
  %v1528 = vadd.f32 %v1497, %v1527
  %1529 = vdwg.mxu0
  %1530 = vmatpush.msra.mxu0 0.0
  %1531 = vmatpush.msra.mxu0 0.0
  %1532 = vmatpush.msra.mxu0 0.0
  %1533 = vmatpush.msra.mxu0 0.0
  %1534 = vmatpush.msra.mxu0 0.0
  %1535 = vmatpush.msra.mxu0 0.0
  %1536 = vmatpush.msra.mxu0 0.0
  %1537 = vmatpush.msra.mxu0 0.0
  %1538 = vmatpush.msra.mxu0 0.0
  %1539 = vmatpush.msra.mxu0 0.0
  %1540 = vmatpush.msra.mxu0 0.0
  %1541 = vmatpush.msra.mxu0 0.0
  %1542 = vmatpush.msra.mxu0 0.0
  %1543 = vmatpush.msra.mxu0 0.0
  %v1544 = vand.u32 %v1166, 4294901760
  %1545 = vmatpush.msra.mxu0 %v1544
  %v1546 = vand.u32 %v1162, 4294901760
  %1547 = vmatpush.msra.mxu0 %v1546
  %v1548 = vand.u32 %v1362, 4294901760
  %1549 = vmatmul.f32.gmra.mxu0 %v1548
  %v1550 = vpop.f32.mrf.mxu0
  %v1551 = vadd.f32 %v1524, %v1550
  %v1552 = vand.u32 %v1365, 4294901760
  %1553 = vmatmul.f32.gmra.mxu0 %v1552
  %v1554 = vpop.f32.mrf.mxu0
  %v1555 = vadd.f32 %v1528, %v1554
  %1556 = vdwg.mxu0
  %s1557 = scalar_lea.vmem %s3, 48
  %v1558 = vld [vmem:[%s1557] sm:$0xff]
  %v1559 = vld [vmem:[%s1557 + $0x8] sm:$0xff]
  %1560 = vmatpush.msra.mxu0 0.0
  %1561 = vmatpush.msra.mxu0 0.0
  %1562 = vmatpush.msra.mxu0 0.0
  %1563 = vmatpush.msra.mxu0 0.0
  %1564 = vmatpush.msra.mxu0 0.0
  %1565 = vmatpush.msra.mxu0 0.0
  %1566 = vmatpush.msra.mxu0 0.0
  %1567 = vmatpush.msra.mxu0 0.0
  %1568 = vmatpush.msra.mxu0 0.0
  %1569 = vmatpush.msra.mxu0 0.0
  %1570 = vmatpush.msra.mxu0 0.0
  %1571 = vmatpush.msra.mxu0 0.0
  %1572 = vmatpush.msra.mxu0 0.0
  %1573 = vmatpush.msra.mxu0 0.0
  %v1574 = vand.u32 %v1559, 4294901760
  %1575 = vmatpush.msra.mxu0 %v1574
  %v1576 = vand.u32 %v1558, 4294901760
  %1577 = vmatpush.msra.mxu0 %v1576
  %v1578 = vand.u32 %v584, 4294901760
  %v1579 = vsub.f32 %v584, %v1578
  %v1580 = vand.u32 %v1579, 4294901760
  %v1581 = vsub.f32 %v1579, %v1580
  %v1582 = vand.u32 %v1581, 4294901760
  %1583 = vmatmul.f32.gmra.mxu0 %v1582
  %v1584 = vpop.f32.mrf.mxu0
  %v1585 = vadd.f32 0.0, %v1584
  %v1586 = vand.u32 %v587, 4294901760
  %v1587 = vsub.f32 %v587, %v1586
  %v1588 = vand.u32 %v1587, 4294901760
  %v1589 = vsub.f32 %v1587, %v1588
  %v1590 = vand.u32 %v1589, 4294901760
  %1591 = vmatmul.f32.gmra.mxu0 %v1590
  %v1592 = vpop.f32.mrf.mxu0
  %v1593 = vadd.f32 0.0, %v1592
  %1594 = vdwg.mxu0
  %1595 = vmatpush.msra.mxu0 0.0
  %1596 = vmatpush.msra.mxu0 0.0
  %1597 = vmatpush.msra.mxu0 0.0
  %1598 = vmatpush.msra.mxu0 0.0
  %1599 = vmatpush.msra.mxu0 0.0
  %1600 = vmatpush.msra.mxu0 0.0
  %1601 = vmatpush.msra.mxu0 0.0
  %1602 = vmatpush.msra.mxu0 0.0
  %1603 = vmatpush.msra.mxu0 0.0
  %1604 = vmatpush.msra.mxu0 0.0
  %1605 = vmatpush.msra.mxu0 0.0
  %1606 = vmatpush.msra.mxu0 0.0
  %1607 = vmatpush.msra.mxu0 0.0
  %1608 = vmatpush.msra.mxu0 0.0
  %v1609 = vand.u32 %v1559, 4294901760
  %v1610 = vsub.f32 %v1559, %v1609
  %v1611 = vand.u32 %v1610, 4294901760
  %v1612 = vsub.f32 %v1610, %v1611
  %v1613 = vand.u32 %v1612, 4294901760
  %1614 = vmatpush.msra.mxu0 %v1613
  %v1615 = vand.u32 %v1558, 4294901760
  %v1616 = vsub.f32 %v1558, %v1615
  %v1617 = vand.u32 %v1616, 4294901760
  %v1618 = vsub.f32 %v1616, %v1617
  %v1619 = vand.u32 %v1618, 4294901760
  %1620 = vmatpush.msra.mxu0 %v1619
  %v1621 = vand.u32 %v584, 4294901760
  %1622 = vmatmul.f32.gmra.mxu0 %v1621
  %v1623 = vpop.f32.mrf.mxu0
  %v1624 = vadd.f32 %v1585, %v1623
  %v1625 = vand.u32 %v587, 4294901760
  %1626 = vmatmul.f32.gmra.mxu0 %v1625
  %v1627 = vpop.f32.mrf.mxu0
  %v1628 = vadd.f32 %v1593, %v1627
  %1629 = vdwg.mxu0
  %1630 = vmatpush.msra.mxu0 0.0
  %1631 = vmatpush.msra.mxu0 0.0
  %1632 = vmatpush.msra.mxu0 0.0
  %1633 = vmatpush.msra.mxu0 0.0
  %1634 = vmatpush.msra.mxu0 0.0
  %1635 = vmatpush.msra.mxu0 0.0
  %1636 = vmatpush.msra.mxu0 0.0
  %1637 = vmatpush.msra.mxu0 0.0
  %1638 = vmatpush.msra.mxu0 0.0
  %1639 = vmatpush.msra.mxu0 0.0
  %1640 = vmatpush.msra.mxu0 0.0
  %1641 = vmatpush.msra.mxu0 0.0
  %1642 = vmatpush.msra.mxu0 0.0
  %1643 = vmatpush.msra.mxu0 0.0
  %v1644 = vand.u32 %v1559, 4294901760
  %v1645 = vsub.f32 %v1559, %v1644
  %1646 = vmatpush.msra.mxu0 %v1645
  %v1647 = vand.u32 %v1558, 4294901760
  %v1648 = vsub.f32 %v1558, %v1647
  %1649 = vmatpush.msra.mxu0 %v1648
  %v1650 = vand.u32 %v584, 4294901760
  %v1651 = vsub.f32 %v584, %v1650
  %1652 = vmatmul.f32.gmra.mxu0 %v1651
  %v1653 = vpop.f32.mrf.mxu0
  %v1654 = vadd.f32 %v1624, %v1653
  %v1655 = vand.u32 %v587, 4294901760
  %v1656 = vsub.f32 %v587, %v1655
  %1657 = vmatmul.f32.gmra.mxu0 %v1656
  %v1658 = vpop.f32.mrf.mxu0
  %v1659 = vadd.f32 %v1628, %v1658
  %1660 = vdwg.mxu0
  %1661 = vmatpush.msra.mxu0 0.0
  %1662 = vmatpush.msra.mxu0 0.0
  %1663 = vmatpush.msra.mxu0 0.0
  %1664 = vmatpush.msra.mxu0 0.0
  %1665 = vmatpush.msra.mxu0 0.0
  %1666 = vmatpush.msra.mxu0 0.0
  %1667 = vmatpush.msra.mxu0 0.0
  %1668 = vmatpush.msra.mxu0 0.0
  %1669 = vmatpush.msra.mxu0 0.0
  %1670 = vmatpush.msra.mxu0 0.0
  %1671 = vmatpush.msra.mxu0 0.0
  %1672 = vmatpush.msra.mxu0 0.0
  %1673 = vmatpush.msra.mxu0 0.0
  %1674 = vmatpush.msra.mxu0 0.0
  %v1675 = vand.u32 %v1559, 4294901760
  %1676 = vmatpush.msra.mxu0 %v1675
  %v1677 = vand.u32 %v1558, 4294901760
  %1678 = vmatpush.msra.mxu0 %v1677
  %v1679 = vand.u32 %v584, 4294901760
  %v1680 = vsub.f32 %v584, %v1679
  %v1681 = vand.u32 %v1680, 4294901760
  %1682 = vmatmul.f32.gmra.mxu0 %v1681
  %v1683 = vpop.f32.mrf.mxu0
  %v1684 = vadd.f32 %v1654, %v1683
  %v1685 = vand.u32 %v587, 4294901760
  %v1686 = vsub.f32 %v587, %v1685
  %v1687 = vand.u32 %v1686, 4294901760
  %1688 = vmatmul.f32.gmra.mxu0 %v1687
  %v1689 = vpop.f32.mrf.mxu0
  %v1690 = vadd.f32 %v1659, %v1689
  %1691 = vdwg.mxu0
  %1692 = vmatpush.msra.mxu0 0.0
  %1693 = vmatpush.msra.mxu0 0.0
  %1694 = vmatpush.msra.mxu0 0.0
  %1695 = vmatpush.msra.mxu0 0.0
  %1696 = vmatpush.msra.mxu0 0.0
  %1697 = vmatpush.msra.mxu0 0.0
  %1698 = vmatpush.msra.mxu0 0.0
  %1699 = vmatpush.msra.mxu0 0.0
  %1700 = vmatpush.msra.mxu0 0.0
  %1701 = vmatpush.msra.mxu0 0.0
  %1702 = vmatpush.msra.mxu0 0.0
  %1703 = vmatpush.msra.mxu0 0.0
  %1704 = vmatpush.msra.mxu0 0.0
  %1705 = vmatpush.msra.mxu0 0.0
  %v1706 = vand.u32 %v1559, 4294901760
  %v1707 = vsub.f32 %v1559, %v1706
  %v1708 = vand.u32 %v1707, 4294901760
  %1709 = vmatpush.msra.mxu0 %v1708
  %v1710 = vand.u32 %v1558, 4294901760
  %v1711 = vsub.f32 %v1558, %v1710
  %v1712 = vand.u32 %v1711, 4294901760
  %1713 = vmatpush.msra.mxu0 %v1712
  %v1714 = vand.u32 %v584, 4294901760
  %1715 = vmatmul.f32.gmra.mxu0 %v1714
  %v1716 = vpop.f32.mrf.mxu0
  %v1717 = vadd.f32 %v1684, %v1716
  %v1718 = vand.u32 %v587, 4294901760
  %1719 = vmatmul.f32.gmra.mxu0 %v1718
  %v1720 = vpop.f32.mrf.mxu0
  %v1721 = vadd.f32 %v1690, %v1720
  %1722 = vdwg.mxu0
  %1723 = vmatpush.msra.mxu0 0.0
  %1724 = vmatpush.msra.mxu0 0.0
  %1725 = vmatpush.msra.mxu0 0.0
  %1726 = vmatpush.msra.mxu0 0.0
  %1727 = vmatpush.msra.mxu0 0.0
  %1728 = vmatpush.msra.mxu0 0.0
  %1729 = vmatpush.msra.mxu0 0.0
  %1730 = vmatpush.msra.mxu0 0.0
  %1731 = vmatpush.msra.mxu0 0.0
  %1732 = vmatpush.msra.mxu0 0.0
  %1733 = vmatpush.msra.mxu0 0.0
  %1734 = vmatpush.msra.mxu0 0.0
  %1735 = vmatpush.msra.mxu0 0.0
  %1736 = vmatpush.msra.mxu0 0.0
  %v1737 = vand.u32 %v1559, 4294901760
  %1738 = vmatpush.msra.mxu0 %v1737
  %v1739 = vand.u32 %v1558, 4294901760
  %1740 = vmatpush.msra.mxu0 %v1739
  %v1741 = vand.u32 %v584, 4294901760
  %1742 = vmatmul.f32.gmra.mxu0 %v1741
  %v1743 = vpop.f32.mrf.mxu0
  %v1744 = vadd.f32 %v1717, %v1743
  %v1745 = vand.u32 %v587, 4294901760
  %1746 = vmatmul.f32.gmra.mxu0 %v1745
  %v1747 = vpop.f32.mrf.mxu0
  %v1748 = vadd.f32 %v1721, %v1747
  %1749 = vdwg.mxu0
  %v1751 = vsel %vm29, %v1744, 0
  %v1754 = vsel %vm29, %v1748, 0
  %1756 = vmatpush.msra.mxu0 0.0
  %1757 = vmatpush.msra.mxu0 0.0
  %1758 = vmatpush.msra.mxu0 0.0
  %1759 = vmatpush.msra.mxu0 0.0
  %1760 = vmatpush.msra.mxu0 0.0
  %1761 = vmatpush.msra.mxu0 0.0
  %1762 = vmatpush.msra.mxu0 0.0
  %1763 = vmatpush.msra.mxu0 0.0
  %1764 = vmatpush.msra.mxu0 0.0
  %1765 = vmatpush.msra.mxu0 0.0
  %1766 = vmatpush.msra.mxu0 0.0
  %1767 = vmatpush.msra.mxu0 0.0
  %1768 = vmatpush.msra.mxu0 0.0
  %1769 = vmatpush.msra.mxu0 0.0
  %v1770 = vand.u32 %v1555, 4294901760
  %1771 = vmatpush.msra.mxu0 %v1770
  %v1772 = vand.u32 %v1551, 4294901760
  %1773 = vmatpush.msra.mxu0 %v1772
  %v1774 = vand.u32 %v1751, 4294901760
  %v1775 = vsub.f32 %v1751, %v1774
  %v1776 = vand.u32 %v1775, 4294901760
  %v1777 = vsub.f32 %v1775, %v1776
  %v1778 = vand.u32 %v1777, 4294901760
  %1779 = vmatmul.f32.gmra.mxu0 %v1778
  %v1780 = vpop.f32.mrf.mxu0
  %v1781 = vadd.f32 0.0, %v1780
  %v1782 = vand.u32 %v1754, 4294901760
  %v1783 = vsub.f32 %v1754, %v1782
  %v1784 = vand.u32 %v1783, 4294901760
  %v1785 = vsub.f32 %v1783, %v1784
  %v1786 = vand.u32 %v1785, 4294901760
  %1787 = vmatmul.f32.gmra.mxu0 %v1786
  %v1788 = vpop.f32.mrf.mxu0
  %v1789 = vadd.f32 0.0, %v1788
  %1790 = vdwg.mxu0
  %1791 = vmatpush.msra.mxu0 0.0
  %1792 = vmatpush.msra.mxu0 0.0
  %1793 = vmatpush.msra.mxu0 0.0
  %1794 = vmatpush.msra.mxu0 0.0
  %1795 = vmatpush.msra.mxu0 0.0
  %1796 = vmatpush.msra.mxu0 0.0
  %1797 = vmatpush.msra.mxu0 0.0
  %1798 = vmatpush.msra.mxu0 0.0
  %1799 = vmatpush.msra.mxu0 0.0
  %1800 = vmatpush.msra.mxu0 0.0
  %1801 = vmatpush.msra.mxu0 0.0
  %1802 = vmatpush.msra.mxu0 0.0
  %1803 = vmatpush.msra.mxu0 0.0
  %1804 = vmatpush.msra.mxu0 0.0
  %v1805 = vand.u32 %v1555, 4294901760
  %v1806 = vsub.f32 %v1555, %v1805
  %v1807 = vand.u32 %v1806, 4294901760
  %v1808 = vsub.f32 %v1806, %v1807
  %v1809 = vand.u32 %v1808, 4294901760
  %1810 = vmatpush.msra.mxu0 %v1809
  %v1811 = vand.u32 %v1551, 4294901760
  %v1812 = vsub.f32 %v1551, %v1811
  %v1813 = vand.u32 %v1812, 4294901760
  %v1814 = vsub.f32 %v1812, %v1813
  %v1815 = vand.u32 %v1814, 4294901760
  %1816 = vmatpush.msra.mxu0 %v1815
  %v1817 = vand.u32 %v1751, 4294901760
  %1818 = vmatmul.f32.gmra.mxu0 %v1817
  %v1819 = vpop.f32.mrf.mxu0
  %v1820 = vadd.f32 %v1781, %v1819
  %v1821 = vand.u32 %v1754, 4294901760
  %1822 = vmatmul.f32.gmra.mxu0 %v1821
  %v1823 = vpop.f32.mrf.mxu0
  %v1824 = vadd.f32 %v1789, %v1823
  %1825 = vdwg.mxu0
  %1826 = vmatpush.msra.mxu0 0.0
  %1827 = vmatpush.msra.mxu0 0.0
  %1828 = vmatpush.msra.mxu0 0.0
  %1829 = vmatpush.msra.mxu0 0.0
  %1830 = vmatpush.msra.mxu0 0.0
  %1831 = vmatpush.msra.mxu0 0.0
  %1832 = vmatpush.msra.mxu0 0.0
  %1833 = vmatpush.msra.mxu0 0.0
  %1834 = vmatpush.msra.mxu0 0.0
  %1835 = vmatpush.msra.mxu0 0.0
  %1836 = vmatpush.msra.mxu0 0.0
  %1837 = vmatpush.msra.mxu0 0.0
  %1838 = vmatpush.msra.mxu0 0.0
  %1839 = vmatpush.msra.mxu0 0.0
  %v1840 = vand.u32 %v1555, 4294901760
  %v1841 = vsub.f32 %v1555, %v1840
  %1842 = vmatpush.msra.mxu0 %v1841
  %v1843 = vand.u32 %v1551, 4294901760
  %v1844 = vsub.f32 %v1551, %v1843
  %1845 = vmatpush.msra.mxu0 %v1844
  %v1846 = vand.u32 %v1751, 4294901760
  %v1847 = vsub.f32 %v1751, %v1846
  %1848 = vmatmul.f32.gmra.mxu0 %v1847
  %v1849 = vpop.f32.mrf.mxu0
  %v1850 = vadd.f32 %v1820, %v1849
  %v1851 = vand.u32 %v1754, 4294901760
  %v1852 = vsub.f32 %v1754, %v1851
  %1853 = vmatmul.f32.gmra.mxu0 %v1852
  %v1854 = vpop.f32.mrf.mxu0
  %v1855 = vadd.f32 %v1824, %v1854
  %1856 = vdwg.mxu0
  %1857 = vmatpush.msra.mxu0 0.0
  %1858 = vmatpush.msra.mxu0 0.0
  %1859 = vmatpush.msra.mxu0 0.0
  %1860 = vmatpush.msra.mxu0 0.0
  %1861 = vmatpush.msra.mxu0 0.0
  %1862 = vmatpush.msra.mxu0 0.0
  %1863 = vmatpush.msra.mxu0 0.0
  %1864 = vmatpush.msra.mxu0 0.0
  %1865 = vmatpush.msra.mxu0 0.0
  %1866 = vmatpush.msra.mxu0 0.0
  %1867 = vmatpush.msra.mxu0 0.0
  %1868 = vmatpush.msra.mxu0 0.0
  %1869 = vmatpush.msra.mxu0 0.0
  %1870 = vmatpush.msra.mxu0 0.0
  %v1871 = vand.u32 %v1555, 4294901760
  %1872 = vmatpush.msra.mxu0 %v1871
  %v1873 = vand.u32 %v1551, 4294901760
  %1874 = vmatpush.msra.mxu0 %v1873
  %v1875 = vand.u32 %v1751, 4294901760
  %v1876 = vsub.f32 %v1751, %v1875
  %v1877 = vand.u32 %v1876, 4294901760
  %1878 = vmatmul.f32.gmra.mxu0 %v1877
  %v1879 = vpop.f32.mrf.mxu0
  %v1880 = vadd.f32 %v1850, %v1879
  %v1881 = vand.u32 %v1754, 4294901760
  %v1882 = vsub.f32 %v1754, %v1881
  %v1883 = vand.u32 %v1882, 4294901760
  %1884 = vmatmul.f32.gmra.mxu0 %v1883
  %v1885 = vpop.f32.mrf.mxu0
  %v1886 = vadd.f32 %v1855, %v1885
  %1887 = vdwg.mxu0
  %1888 = vmatpush.msra.mxu0 0.0
  %1889 = vmatpush.msra.mxu0 0.0
  %1890 = vmatpush.msra.mxu0 0.0
  %1891 = vmatpush.msra.mxu0 0.0
  %1892 = vmatpush.msra.mxu0 0.0
  %1893 = vmatpush.msra.mxu0 0.0
  %1894 = vmatpush.msra.mxu0 0.0
  %1895 = vmatpush.msra.mxu0 0.0
  %1896 = vmatpush.msra.mxu0 0.0
  %1897 = vmatpush.msra.mxu0 0.0
  %1898 = vmatpush.msra.mxu0 0.0
  %1899 = vmatpush.msra.mxu0 0.0
  %1900 = vmatpush.msra.mxu0 0.0
  %1901 = vmatpush.msra.mxu0 0.0
  %v1902 = vand.u32 %v1555, 4294901760
  %v1903 = vsub.f32 %v1555, %v1902
  %v1904 = vand.u32 %v1903, 4294901760
  %1905 = vmatpush.msra.mxu0 %v1904
  %v1906 = vand.u32 %v1551, 4294901760
  %v1907 = vsub.f32 %v1551, %v1906
  %v1908 = vand.u32 %v1907, 4294901760
  %1909 = vmatpush.msra.mxu0 %v1908
  %v1910 = vand.u32 %v1751, 4294901760
  %1911 = vmatmul.f32.gmra.mxu0 %v1910
  %v1912 = vpop.f32.mrf.mxu0
  %v1913 = vadd.f32 %v1880, %v1912
  %v1914 = vand.u32 %v1754, 4294901760
  %1915 = vmatmul.f32.gmra.mxu0 %v1914
  %v1916 = vpop.f32.mrf.mxu0
  %v1917 = vadd.f32 %v1886, %v1916
  %1918 = vdwg.mxu0
  %1919 = vmatpush.msra.mxu0 0.0
  %1920 = vmatpush.msra.mxu0 0.0
  %1921 = vmatpush.msra.mxu0 0.0
  %1922 = vmatpush.msra.mxu0 0.0
  %1923 = vmatpush.msra.mxu0 0.0
  %1924 = vmatpush.msra.mxu0 0.0
  %1925 = vmatpush.msra.mxu0 0.0
  %1926 = vmatpush.msra.mxu0 0.0
  %1927 = vmatpush.msra.mxu0 0.0
  %1928 = vmatpush.msra.mxu0 0.0
  %1929 = vmatpush.msra.mxu0 0.0
  %1930 = vmatpush.msra.mxu0 0.0
  %1931 = vmatpush.msra.mxu0 0.0
  %1932 = vmatpush.msra.mxu0 0.0
  %v1933 = vand.u32 %v1555, 4294901760
  %1934 = vmatpush.msra.mxu0 %v1933
  %v1935 = vand.u32 %v1551, 4294901760
  %1936 = vmatpush.msra.mxu0 %v1935
  %v1937 = vand.u32 %v1751, 4294901760
  %1938 = vmatmul.f32.gmra.mxu0 %v1937
  %v1939 = vpop.f32.mrf.mxu0
  %v1940 = vadd.f32 %v1913, %v1939
  %v1941 = vand.u32 %v1754, 4294901760
  %1942 = vmatmul.f32.gmra.mxu0 %v1941
  %v1943 = vpop.f32.mrf.mxu0
  %v1944 = vadd.f32 %v1917, %v1943
  %1945 = vdwg.mxu0
  %s1946 = scalar_lea.vmem %s3, 64
  %v1947 = vld [vmem:[%s1946] sm:$0xff]
  %v1948 = vld [vmem:[%s1946 + $0x8] sm:$0xff]
  %1949 = vmatpush.msra.mxu0 0.0
  %1950 = vmatpush.msra.mxu0 0.0
  %1951 = vmatpush.msra.mxu0 0.0
  %1952 = vmatpush.msra.mxu0 0.0
  %1953 = vmatpush.msra.mxu0 0.0
  %1954 = vmatpush.msra.mxu0 0.0
  %1955 = vmatpush.msra.mxu0 0.0
  %1956 = vmatpush.msra.mxu0 0.0
  %1957 = vmatpush.msra.mxu0 0.0
  %1958 = vmatpush.msra.mxu0 0.0
  %1959 = vmatpush.msra.mxu0 0.0
  %1960 = vmatpush.msra.mxu0 0.0
  %1961 = vmatpush.msra.mxu0 0.0
  %1962 = vmatpush.msra.mxu0 0.0
  %v1963 = vand.u32 %v1948, 4294901760
  %1964 = vmatpush.msra.mxu0 %v1963
  %v1965 = vand.u32 %v1947, 4294901760
  %1966 = vmatpush.msra.mxu0 %v1965
  %v1967 = vand.u32 %v584, 4294901760
  %v1968 = vsub.f32 %v584, %v1967
  %v1969 = vand.u32 %v1968, 4294901760
  %v1970 = vsub.f32 %v1968, %v1969
  %v1971 = vand.u32 %v1970, 4294901760
  %1972 = vmatmul.f32.gmra.mxu0 %v1971
  %v1973 = vpop.f32.mrf.mxu0
  %v1974 = vadd.f32 0.0, %v1973
  %v1975 = vand.u32 %v587, 4294901760
  %v1976 = vsub.f32 %v587, %v1975
  %v1977 = vand.u32 %v1976, 4294901760
  %v1978 = vsub.f32 %v1976, %v1977
  %v1979 = vand.u32 %v1978, 4294901760
  %1980 = vmatmul.f32.gmra.mxu0 %v1979
  %v1981 = vpop.f32.mrf.mxu0
  %v1982 = vadd.f32 0.0, %v1981
  %1983 = vdwg.mxu0
  %1984 = vmatpush.msra.mxu0 0.0
  %1985 = vmatpush.msra.mxu0 0.0
  %1986 = vmatpush.msra.mxu0 0.0
  %1987 = vmatpush.msra.mxu0 0.0
  %1988 = vmatpush.msra.mxu0 0.0
  %1989 = vmatpush.msra.mxu0 0.0
  %1990 = vmatpush.msra.mxu0 0.0
  %1991 = vmatpush.msra.mxu0 0.0
  %1992 = vmatpush.msra.mxu0 0.0
  %1993 = vmatpush.msra.mxu0 0.0
  %1994 = vmatpush.msra.mxu0 0.0
  %1995 = vmatpush.msra.mxu0 0.0
  %1996 = vmatpush.msra.mxu0 0.0
  %1997 = vmatpush.msra.mxu0 0.0
  %v1998 = vand.u32 %v1948, 4294901760
  %v1999 = vsub.f32 %v1948, %v1998
  %v2000 = vand.u32 %v1999, 4294901760
  %v2001 = vsub.f32 %v1999, %v2000
  %v2002 = vand.u32 %v2001, 4294901760
  %2003 = vmatpush.msra.mxu0 %v2002
  %v2004 = vand.u32 %v1947, 4294901760
  %v2005 = vsub.f32 %v1947, %v2004
  %v2006 = vand.u32 %v2005, 4294901760
  %v2007 = vsub.f32 %v2005, %v2006
  %v2008 = vand.u32 %v2007, 4294901760
  %2009 = vmatpush.msra.mxu0 %v2008
  %v2010 = vand.u32 %v584, 4294901760
  %2011 = vmatmul.f32.gmra.mxu0 %v2010
  %v2012 = vpop.f32.mrf.mxu0
  %v2013 = vadd.f32 %v1974, %v2012
  %v2014 = vand.u32 %v587, 4294901760
  %2015 = vmatmul.f32.gmra.mxu0 %v2014
  %v2016 = vpop.f32.mrf.mxu0
  %v2017 = vadd.f32 %v1982, %v2016
  %2018 = vdwg.mxu0
  %2019 = vmatpush.msra.mxu0 0.0
  %2020 = vmatpush.msra.mxu0 0.0
  %2021 = vmatpush.msra.mxu0 0.0
  %2022 = vmatpush.msra.mxu0 0.0
  %2023 = vmatpush.msra.mxu0 0.0
  %2024 = vmatpush.msra.mxu0 0.0
  %2025 = vmatpush.msra.mxu0 0.0
  %2026 = vmatpush.msra.mxu0 0.0
  %2027 = vmatpush.msra.mxu0 0.0
  %2028 = vmatpush.msra.mxu0 0.0
  %2029 = vmatpush.msra.mxu0 0.0
  %2030 = vmatpush.msra.mxu0 0.0
  %2031 = vmatpush.msra.mxu0 0.0
  %2032 = vmatpush.msra.mxu0 0.0
  %v2033 = vand.u32 %v1948, 4294901760
  %v2034 = vsub.f32 %v1948, %v2033
  %2035 = vmatpush.msra.mxu0 %v2034
  %v2036 = vand.u32 %v1947, 4294901760
  %v2037 = vsub.f32 %v1947, %v2036
  %2038 = vmatpush.msra.mxu0 %v2037
  %v2039 = vand.u32 %v584, 4294901760
  %v2040 = vsub.f32 %v584, %v2039
  %2041 = vmatmul.f32.gmra.mxu0 %v2040
  %v2042 = vpop.f32.mrf.mxu0
  %v2043 = vadd.f32 %v2013, %v2042
  %v2044 = vand.u32 %v587, 4294901760
  %v2045 = vsub.f32 %v587, %v2044
  %2046 = vmatmul.f32.gmra.mxu0 %v2045
  %v2047 = vpop.f32.mrf.mxu0
  %v2048 = vadd.f32 %v2017, %v2047
  %2049 = vdwg.mxu0
  %2050 = vmatpush.msra.mxu0 0.0
  %2051 = vmatpush.msra.mxu0 0.0
  %2052 = vmatpush.msra.mxu0 0.0
  %2053 = vmatpush.msra.mxu0 0.0
  %2054 = vmatpush.msra.mxu0 0.0
  %2055 = vmatpush.msra.mxu0 0.0
  %2056 = vmatpush.msra.mxu0 0.0
  %2057 = vmatpush.msra.mxu0 0.0
  %2058 = vmatpush.msra.mxu0 0.0
  %2059 = vmatpush.msra.mxu0 0.0
  %2060 = vmatpush.msra.mxu0 0.0
  %2061 = vmatpush.msra.mxu0 0.0
  %2062 = vmatpush.msra.mxu0 0.0
  %2063 = vmatpush.msra.mxu0 0.0
  %v2064 = vand.u32 %v1948, 4294901760
  %2065 = vmatpush.msra.mxu0 %v2064
  %v2066 = vand.u32 %v1947, 4294901760
  %2067 = vmatpush.msra.mxu0 %v2066
  %v2068 = vand.u32 %v584, 4294901760
  %v2069 = vsub.f32 %v584, %v2068
  %v2070 = vand.u32 %v2069, 4294901760
  %2071 = vmatmul.f32.gmra.mxu0 %v2070
  %v2072 = vpop.f32.mrf.mxu0
  %v2073 = vadd.f32 %v2043, %v2072
  %v2074 = vand.u32 %v587, 4294901760
  %v2075 = vsub.f32 %v587, %v2074
  %v2076 = vand.u32 %v2075, 4294901760
  %2077 = vmatmul.f32.gmra.mxu0 %v2076
  %v2078 = vpop.f32.mrf.mxu0
  %v2079 = vadd.f32 %v2048, %v2078
  %2080 = vdwg.mxu0
  %2081 = vmatpush.msra.mxu0 0.0
  %2082 = vmatpush.msra.mxu0 0.0
  %2083 = vmatpush.msra.mxu0 0.0
  %2084 = vmatpush.msra.mxu0 0.0
  %2085 = vmatpush.msra.mxu0 0.0
  %2086 = vmatpush.msra.mxu0 0.0
  %2087 = vmatpush.msra.mxu0 0.0
  %2088 = vmatpush.msra.mxu0 0.0
  %2089 = vmatpush.msra.mxu0 0.0
  %2090 = vmatpush.msra.mxu0 0.0
  %2091 = vmatpush.msra.mxu0 0.0
  %2092 = vmatpush.msra.mxu0 0.0
  %2093 = vmatpush.msra.mxu0 0.0
  %2094 = vmatpush.msra.mxu0 0.0
  %v2095 = vand.u32 %v1948, 4294901760
  %v2096 = vsub.f32 %v1948, %v2095
  %v2097 = vand.u32 %v2096, 4294901760
  %2098 = vmatpush.msra.mxu0 %v2097
  %v2099 = vand.u32 %v1947, 4294901760
  %v2100 = vsub.f32 %v1947, %v2099
  %v2101 = vand.u32 %v2100, 4294901760
  %2102 = vmatpush.msra.mxu0 %v2101
  %v2103 = vand.u32 %v584, 4294901760
  %2104 = vmatmul.f32.gmra.mxu0 %v2103
  %v2105 = vpop.f32.mrf.mxu0
  %v2106 = vadd.f32 %v2073, %v2105
  %v2107 = vand.u32 %v587, 4294901760
  %2108 = vmatmul.f32.gmra.mxu0 %v2107
  %v2109 = vpop.f32.mrf.mxu0
  %v2110 = vadd.f32 %v2079, %v2109
  %2111 = vdwg.mxu0
  %2112 = vmatpush.msra.mxu0 0.0
  %2113 = vmatpush.msra.mxu0 0.0
  %2114 = vmatpush.msra.mxu0 0.0
  %2115 = vmatpush.msra.mxu0 0.0
  %2116 = vmatpush.msra.mxu0 0.0
  %2117 = vmatpush.msra.mxu0 0.0
  %2118 = vmatpush.msra.mxu0 0.0
  %2119 = vmatpush.msra.mxu0 0.0
  %2120 = vmatpush.msra.mxu0 0.0
  %2121 = vmatpush.msra.mxu0 0.0
  %2122 = vmatpush.msra.mxu0 0.0
  %2123 = vmatpush.msra.mxu0 0.0
  %2124 = vmatpush.msra.mxu0 0.0
  %2125 = vmatpush.msra.mxu0 0.0
  %v2126 = vand.u32 %v1948, 4294901760
  %2127 = vmatpush.msra.mxu0 %v2126
  %v2128 = vand.u32 %v1947, 4294901760
  %2129 = vmatpush.msra.mxu0 %v2128
  %v2130 = vand.u32 %v584, 4294901760
  %2131 = vmatmul.f32.gmra.mxu0 %v2130
  %v2132 = vpop.f32.mrf.mxu0
  %v2133 = vadd.f32 %v2106, %v2132
  %v2134 = vand.u32 %v587, 4294901760
  %2135 = vmatmul.f32.gmra.mxu0 %v2134
  %v2136 = vpop.f32.mrf.mxu0
  %v2137 = vadd.f32 %v2110, %v2136
  %2138 = vdwg.mxu0
  %v2140 = vsel %vm29, %v2133, 0
  %v2143 = vsel %vm29, %v2137, 0
  %2145 = vmatpush.msra.mxu0 0.0
  %2146 = vmatpush.msra.mxu0 0.0
  %2147 = vmatpush.msra.mxu0 0.0
  %2148 = vmatpush.msra.mxu0 0.0
  %2149 = vmatpush.msra.mxu0 0.0
  %2150 = vmatpush.msra.mxu0 0.0
  %2151 = vmatpush.msra.mxu0 0.0
  %2152 = vmatpush.msra.mxu0 0.0
  %2153 = vmatpush.msra.mxu0 0.0
  %2154 = vmatpush.msra.mxu0 0.0
  %2155 = vmatpush.msra.mxu0 0.0
  %2156 = vmatpush.msra.mxu0 0.0
  %2157 = vmatpush.msra.mxu0 0.0
  %2158 = vmatpush.msra.mxu0 0.0
  %v2159 = vand.u32 %v1944, 4294901760
  %2160 = vmatpush.msra.mxu0 %v2159
  %v2161 = vand.u32 %v1940, 4294901760
  %2162 = vmatpush.msra.mxu0 %v2161
  %v2163 = vand.u32 %v2140, 4294901760
  %v2164 = vsub.f32 %v2140, %v2163
  %v2165 = vand.u32 %v2164, 4294901760
  %v2166 = vsub.f32 %v2164, %v2165
  %v2167 = vand.u32 %v2166, 4294901760
  %2168 = vmatmul.f32.gmra.mxu0 %v2167
  %v2169 = vpop.f32.mrf.mxu0
  %v2170 = vadd.f32 0.0, %v2169
  %v2171 = vand.u32 %v2143, 4294901760
  %v2172 = vsub.f32 %v2143, %v2171
  %v2173 = vand.u32 %v2172, 4294901760
  %v2174 = vsub.f32 %v2172, %v2173
  %v2175 = vand.u32 %v2174, 4294901760
  %2176 = vmatmul.f32.gmra.mxu0 %v2175
  %v2177 = vpop.f32.mrf.mxu0
  %v2178 = vadd.f32 0.0, %v2177
  %2179 = vdwg.mxu0
  %2180 = vmatpush.msra.mxu0 0.0
  %2181 = vmatpush.msra.mxu0 0.0
  %2182 = vmatpush.msra.mxu0 0.0
  %2183 = vmatpush.msra.mxu0 0.0
  %2184 = vmatpush.msra.mxu0 0.0
  %2185 = vmatpush.msra.mxu0 0.0
  %2186 = vmatpush.msra.mxu0 0.0
  %2187 = vmatpush.msra.mxu0 0.0
  %2188 = vmatpush.msra.mxu0 0.0
  %2189 = vmatpush.msra.mxu0 0.0
  %2190 = vmatpush.msra.mxu0 0.0
  %2191 = vmatpush.msra.mxu0 0.0
  %2192 = vmatpush.msra.mxu0 0.0
  %2193 = vmatpush.msra.mxu0 0.0
  %v2194 = vand.u32 %v1944, 4294901760
  %v2195 = vsub.f32 %v1944, %v2194
  %v2196 = vand.u32 %v2195, 4294901760
  %v2197 = vsub.f32 %v2195, %v2196
  %v2198 = vand.u32 %v2197, 4294901760
  %2199 = vmatpush.msra.mxu0 %v2198
  %v2200 = vand.u32 %v1940, 4294901760
  %v2201 = vsub.f32 %v1940, %v2200
  %v2202 = vand.u32 %v2201, 4294901760
  %v2203 = vsub.f32 %v2201, %v2202
  %v2204 = vand.u32 %v2203, 4294901760
  %2205 = vmatpush.msra.mxu0 %v2204
  %v2206 = vand.u32 %v2140, 4294901760
  %2207 = vmatmul.f32.gmra.mxu0 %v2206
  %v2208 = vpop.f32.mrf.mxu0
  %v2209 = vadd.f32 %v2170, %v2208
  %v2210 = vand.u32 %v2143, 4294901760
  %2211 = vmatmul.f32.gmra.mxu0 %v2210
  %v2212 = vpop.f32.mrf.mxu0
  %v2213 = vadd.f32 %v2178, %v2212
  %2214 = vdwg.mxu0
  %2215 = vmatpush.msra.mxu0 0.0
  %2216 = vmatpush.msra.mxu0 0.0
  %2217 = vmatpush.msra.mxu0 0.0
  %2218 = vmatpush.msra.mxu0 0.0
  %2219 = vmatpush.msra.mxu0 0.0
  %2220 = vmatpush.msra.mxu0 0.0
  %2221 = vmatpush.msra.mxu0 0.0
  %2222 = vmatpush.msra.mxu0 0.0
  %2223 = vmatpush.msra.mxu0 0.0
  %2224 = vmatpush.msra.mxu0 0.0
  %2225 = vmatpush.msra.mxu0 0.0
  %2226 = vmatpush.msra.mxu0 0.0
  %2227 = vmatpush.msra.mxu0 0.0
  %2228 = vmatpush.msra.mxu0 0.0
  %v2229 = vand.u32 %v1944, 4294901760
  %v2230 = vsub.f32 %v1944, %v2229
  %2231 = vmatpush.msra.mxu0 %v2230
  %v2232 = vand.u32 %v1940, 4294901760
  %v2233 = vsub.f32 %v1940, %v2232
  %2234 = vmatpush.msra.mxu0 %v2233
  %v2235 = vand.u32 %v2140, 4294901760
  %v2236 = vsub.f32 %v2140, %v2235
  %2237 = vmatmul.f32.gmra.mxu0 %v2236
  %v2238 = vpop.f32.mrf.mxu0
  %v2239 = vadd.f32 %v2209, %v2238
  %v2240 = vand.u32 %v2143, 4294901760
  %v2241 = vsub.f32 %v2143, %v2240
  %2242 = vmatmul.f32.gmra.mxu0 %v2241
  %v2243 = vpop.f32.mrf.mxu0
  %v2244 = vadd.f32 %v2213, %v2243
  %2245 = vdwg.mxu0
  %2246 = vmatpush.msra.mxu0 0.0
  %2247 = vmatpush.msra.mxu0 0.0
  %2248 = vmatpush.msra.mxu0 0.0
  %2249 = vmatpush.msra.mxu0 0.0
  %2250 = vmatpush.msra.mxu0 0.0
  %2251 = vmatpush.msra.mxu0 0.0
  %2252 = vmatpush.msra.mxu0 0.0
  %2253 = vmatpush.msra.mxu0 0.0
  %2254 = vmatpush.msra.mxu0 0.0
  %2255 = vmatpush.msra.mxu0 0.0
  %2256 = vmatpush.msra.mxu0 0.0
  %2257 = vmatpush.msra.mxu0 0.0
  %2258 = vmatpush.msra.mxu0 0.0
  %2259 = vmatpush.msra.mxu0 0.0
  %v2260 = vand.u32 %v1944, 4294901760
  %2261 = vmatpush.msra.mxu0 %v2260
  %v2262 = vand.u32 %v1940, 4294901760
  %2263 = vmatpush.msra.mxu0 %v2262
  %v2264 = vand.u32 %v2140, 4294901760
  %v2265 = vsub.f32 %v2140, %v2264
  %v2266 = vand.u32 %v2265, 4294901760
  %2267 = vmatmul.f32.gmra.mxu0 %v2266
  %v2268 = vpop.f32.mrf.mxu0
  %v2269 = vadd.f32 %v2239, %v2268
  %v2270 = vand.u32 %v2143, 4294901760
  %v2271 = vsub.f32 %v2143, %v2270
  %v2272 = vand.u32 %v2271, 4294901760
  %2273 = vmatmul.f32.gmra.mxu0 %v2272
  %v2274 = vpop.f32.mrf.mxu0
  %v2275 = vadd.f32 %v2244, %v2274
  %2276 = vdwg.mxu0
  %2277 = vmatpush.msra.mxu0 0.0
  %2278 = vmatpush.msra.mxu0 0.0
  %2279 = vmatpush.msra.mxu0 0.0
  %2280 = vmatpush.msra.mxu0 0.0
  %2281 = vmatpush.msra.mxu0 0.0
  %2282 = vmatpush.msra.mxu0 0.0
  %2283 = vmatpush.msra.mxu0 0.0
  %2284 = vmatpush.msra.mxu0 0.0
  %2285 = vmatpush.msra.mxu0 0.0
  %2286 = vmatpush.msra.mxu0 0.0
  %2287 = vmatpush.msra.mxu0 0.0
  %2288 = vmatpush.msra.mxu0 0.0
  %2289 = vmatpush.msra.mxu0 0.0
  %2290 = vmatpush.msra.mxu0 0.0
  %v2291 = vand.u32 %v1944, 4294901760
  %v2292 = vsub.f32 %v1944, %v2291
  %v2293 = vand.u32 %v2292, 4294901760
  %2294 = vmatpush.msra.mxu0 %v2293
  %v2295 = vand.u32 %v1940, 4294901760
  %v2296 = vsub.f32 %v1940, %v2295
  %v2297 = vand.u32 %v2296, 4294901760
  %2298 = vmatpush.msra.mxu0 %v2297
  %v2299 = vand.u32 %v2140, 4294901760
  %2300 = vmatmul.f32.gmra.mxu0 %v2299
  %v2301 = vpop.f32.mrf.mxu0
  %v2302 = vadd.f32 %v2269, %v2301
  %v2303 = vand.u32 %v2143, 4294901760
  %2304 = vmatmul.f32.gmra.mxu0 %v2303
  %v2305 = vpop.f32.mrf.mxu0
  %v2306 = vadd.f32 %v2275, %v2305
  %2307 = vdwg.mxu0
  %2308 = vmatpush.msra.mxu0 0.0
  %2309 = vmatpush.msra.mxu0 0.0
  %2310 = vmatpush.msra.mxu0 0.0
  %2311 = vmatpush.msra.mxu0 0.0
  %2312 = vmatpush.msra.mxu0 0.0
  %2313 = vmatpush.msra.mxu0 0.0
  %2314 = vmatpush.msra.mxu0 0.0
  %2315 = vmatpush.msra.mxu0 0.0
  %2316 = vmatpush.msra.mxu0 0.0
  %2317 = vmatpush.msra.mxu0 0.0
  %2318 = vmatpush.msra.mxu0 0.0
  %2319 = vmatpush.msra.mxu0 0.0
  %2320 = vmatpush.msra.mxu0 0.0
  %2321 = vmatpush.msra.mxu0 0.0
  %v2322 = vand.u32 %v1944, 4294901760
  %2323 = vmatpush.msra.mxu0 %v2322
  %v2324 = vand.u32 %v1940, 4294901760
  %2325 = vmatpush.msra.mxu0 %v2324
  %v2326 = vand.u32 %v2140, 4294901760
  %2327 = vmatmul.f32.gmra.mxu0 %v2326
  %v2328 = vpop.f32.mrf.mxu0
  %v2329 = vadd.f32 %v2302, %v2328
  %v2330 = vand.u32 %v2143, 4294901760
  %2331 = vmatmul.f32.gmra.mxu0 %v2330
  %v2332 = vpop.f32.mrf.mxu0
  %v2333 = vadd.f32 %v2306, %v2332
  %2334 = vdwg.mxu0
  %s2335 = scalar_lea.vmem %s3, 80
  %v2336 = vld [vmem:[%s2335] sm:$0xff]
  %v2337 = vld [vmem:[%s2335 + $0x8] sm:$0xff]
  %2338 = vmatpush.msra.mxu0 0.0
  %2339 = vmatpush.msra.mxu0 0.0
  %2340 = vmatpush.msra.mxu0 0.0
  %2341 = vmatpush.msra.mxu0 0.0
  %2342 = vmatpush.msra.mxu0 0.0
  %2343 = vmatpush.msra.mxu0 0.0
  %2344 = vmatpush.msra.mxu0 0.0
  %2345 = vmatpush.msra.mxu0 0.0
  %2346 = vmatpush.msra.mxu0 0.0
  %2347 = vmatpush.msra.mxu0 0.0
  %2348 = vmatpush.msra.mxu0 0.0
  %2349 = vmatpush.msra.mxu0 0.0
  %2350 = vmatpush.msra.mxu0 0.0
  %2351 = vmatpush.msra.mxu0 0.0
  %v2352 = vand.u32 %v2337, 4294901760
  %2353 = vmatpush.msra.mxu0 %v2352
  %v2354 = vand.u32 %v2336, 4294901760
  %2355 = vmatpush.msra.mxu0 %v2354
  %v2356 = vand.u32 %v584, 4294901760
  %v2357 = vsub.f32 %v584, %v2356
  %v2358 = vand.u32 %v2357, 4294901760
  %v2359 = vsub.f32 %v2357, %v2358
  %v2360 = vand.u32 %v2359, 4294901760
  %2361 = vmatmul.f32.gmra.mxu0 %v2360
  %v2362 = vpop.f32.mrf.mxu0
  %v2363 = vadd.f32 0.0, %v2362
  %v2364 = vand.u32 %v587, 4294901760
  %v2365 = vsub.f32 %v587, %v2364
  %v2366 = vand.u32 %v2365, 4294901760
  %v2367 = vsub.f32 %v2365, %v2366
  %v2368 = vand.u32 %v2367, 4294901760
  %2369 = vmatmul.f32.gmra.mxu0 %v2368
  %v2370 = vpop.f32.mrf.mxu0
  %v2371 = vadd.f32 0.0, %v2370
  %2372 = vdwg.mxu0
  %2373 = vmatpush.msra.mxu0 0.0
  %2374 = vmatpush.msra.mxu0 0.0
  %2375 = vmatpush.msra.mxu0 0.0
  %2376 = vmatpush.msra.mxu0 0.0
  %2377 = vmatpush.msra.mxu0 0.0
  %2378 = vmatpush.msra.mxu0 0.0
  %2379 = vmatpush.msra.mxu0 0.0
  %2380 = vmatpush.msra.mxu0 0.0
  %2381 = vmatpush.msra.mxu0 0.0
  %2382 = vmatpush.msra.mxu0 0.0
  %2383 = vmatpush.msra.mxu0 0.0
  %2384 = vmatpush.msra.mxu0 0.0
  %2385 = vmatpush.msra.mxu0 0.0
  %2386 = vmatpush.msra.mxu0 0.0
  %v2387 = vand.u32 %v2337, 4294901760
  %v2388 = vsub.f32 %v2337, %v2387
  %v2389 = vand.u32 %v2388, 4294901760
  %v2390 = vsub.f32 %v2388, %v2389
  %v2391 = vand.u32 %v2390, 4294901760
  %2392 = vmatpush.msra.mxu0 %v2391
  %v2393 = vand.u32 %v2336, 4294901760
  %v2394 = vsub.f32 %v2336, %v2393
  %v2395 = vand.u32 %v2394, 4294901760
  %v2396 = vsub.f32 %v2394, %v2395
  %v2397 = vand.u32 %v2396, 4294901760
  %2398 = vmatpush.msra.mxu0 %v2397
  %v2399 = vand.u32 %v584, 4294901760
  %2400 = vmatmul.f32.gmra.mxu0 %v2399
  %v2401 = vpop.f32.mrf.mxu0
  %v2402 = vadd.f32 %v2363, %v2401
  %v2403 = vand.u32 %v587, 4294901760
  %2404 = vmatmul.f32.gmra.mxu0 %v2403
  %v2405 = vpop.f32.mrf.mxu0
  %v2406 = vadd.f32 %v2371, %v2405
  %2407 = vdwg.mxu0
  %2408 = vmatpush.msra.mxu0 0.0
  %2409 = vmatpush.msra.mxu0 0.0
  %2410 = vmatpush.msra.mxu0 0.0
  %2411 = vmatpush.msra.mxu0 0.0
  %2412 = vmatpush.msra.mxu0 0.0
  %2413 = vmatpush.msra.mxu0 0.0
  %2414 = vmatpush.msra.mxu0 0.0
  %2415 = vmatpush.msra.mxu0 0.0
  %2416 = vmatpush.msra.mxu0 0.0
  %2417 = vmatpush.msra.mxu0 0.0
  %2418 = vmatpush.msra.mxu0 0.0
  %2419 = vmatpush.msra.mxu0 0.0
  %2420 = vmatpush.msra.mxu0 0.0
  %2421 = vmatpush.msra.mxu0 0.0
  %v2422 = vand.u32 %v2337, 4294901760
  %v2423 = vsub.f32 %v2337, %v2422
  %2424 = vmatpush.msra.mxu0 %v2423
  %v2425 = vand.u32 %v2336, 4294901760
  %v2426 = vsub.f32 %v2336, %v2425
  %2427 = vmatpush.msra.mxu0 %v2426
  %v2428 = vand.u32 %v584, 4294901760
  %v2429 = vsub.f32 %v584, %v2428
  %2430 = vmatmul.f32.gmra.mxu0 %v2429
  %v2431 = vpop.f32.mrf.mxu0
  %v2432 = vadd.f32 %v2402, %v2431
  %v2433 = vand.u32 %v587, 4294901760
  %v2434 = vsub.f32 %v587, %v2433
  %2435 = vmatmul.f32.gmra.mxu0 %v2434
  %v2436 = vpop.f32.mrf.mxu0
  %v2437 = vadd.f32 %v2406, %v2436
  %2438 = vdwg.mxu0
  %2439 = vmatpush.msra.mxu0 0.0
  %2440 = vmatpush.msra.mxu0 0.0
  %2441 = vmatpush.msra.mxu0 0.0
  %2442 = vmatpush.msra.mxu0 0.0
  %2443 = vmatpush.msra.mxu0 0.0
  %2444 = vmatpush.msra.mxu0 0.0
  %2445 = vmatpush.msra.mxu0 0.0
  %2446 = vmatpush.msra.mxu0 0.0
  %2447 = vmatpush.msra.mxu0 0.0
  %2448 = vmatpush.msra.mxu0 0.0
  %2449 = vmatpush.msra.mxu0 0.0
  %2450 = vmatpush.msra.mxu0 0.0
  %2451 = vmatpush.msra.mxu0 0.0
  %2452 = vmatpush.msra.mxu0 0.0
  %v2453 = vand.u32 %v2337, 4294901760
  %2454 = vmatpush.msra.mxu0 %v2453
  %v2455 = vand.u32 %v2336, 4294901760
  %2456 = vmatpush.msra.mxu0 %v2455
  %v2457 = vand.u32 %v584, 4294901760
  %v2458 = vsub.f32 %v584, %v2457
  %v2459 = vand.u32 %v2458, 4294901760
  %2460 = vmatmul.f32.gmra.mxu0 %v2459
  %v2461 = vpop.f32.mrf.mxu0
  %v2462 = vadd.f32 %v2432, %v2461
  %v2463 = vand.u32 %v587, 4294901760
  %v2464 = vsub.f32 %v587, %v2463
  %v2465 = vand.u32 %v2464, 4294901760
  %2466 = vmatmul.f32.gmra.mxu0 %v2465
  %v2467 = vpop.f32.mrf.mxu0
  %v2468 = vadd.f32 %v2437, %v2467
  %2469 = vdwg.mxu0
  %2470 = vmatpush.msra.mxu0 0.0
  %2471 = vmatpush.msra.mxu0 0.0
  %2472 = vmatpush.msra.mxu0 0.0
  %2473 = vmatpush.msra.mxu0 0.0
  %2474 = vmatpush.msra.mxu0 0.0
  %2475 = vmatpush.msra.mxu0 0.0
  %2476 = vmatpush.msra.mxu0 0.0
  %2477 = vmatpush.msra.mxu0 0.0
  %2478 = vmatpush.msra.mxu0 0.0
  %2479 = vmatpush.msra.mxu0 0.0
  %2480 = vmatpush.msra.mxu0 0.0
  %2481 = vmatpush.msra.mxu0 0.0
  %2482 = vmatpush.msra.mxu0 0.0
  %2483 = vmatpush.msra.mxu0 0.0
  %v2484 = vand.u32 %v2337, 4294901760
  %v2485 = vsub.f32 %v2337, %v2484
  %v2486 = vand.u32 %v2485, 4294901760
  %2487 = vmatpush.msra.mxu0 %v2486
  %v2488 = vand.u32 %v2336, 4294901760
  %v2489 = vsub.f32 %v2336, %v2488
  %v2490 = vand.u32 %v2489, 4294901760
  %2491 = vmatpush.msra.mxu0 %v2490
  %v2492 = vand.u32 %v584, 4294901760
  %2493 = vmatmul.f32.gmra.mxu0 %v2492
  %v2494 = vpop.f32.mrf.mxu0
  %v2495 = vadd.f32 %v2462, %v2494
  %v2496 = vand.u32 %v587, 4294901760
  %2497 = vmatmul.f32.gmra.mxu0 %v2496
  %v2498 = vpop.f32.mrf.mxu0
  %v2499 = vadd.f32 %v2468, %v2498
  %2500 = vdwg.mxu0
  %2501 = vmatpush.msra.mxu0 0.0
  %2502 = vmatpush.msra.mxu0 0.0
  %2503 = vmatpush.msra.mxu0 0.0
  %2504 = vmatpush.msra.mxu0 0.0
  %2505 = vmatpush.msra.mxu0 0.0
  %2506 = vmatpush.msra.mxu0 0.0
  %2507 = vmatpush.msra.mxu0 0.0
  %2508 = vmatpush.msra.mxu0 0.0
  %2509 = vmatpush.msra.mxu0 0.0
  %2510 = vmatpush.msra.mxu0 0.0
  %2511 = vmatpush.msra.mxu0 0.0
  %2512 = vmatpush.msra.mxu0 0.0
  %2513 = vmatpush.msra.mxu0 0.0
  %2514 = vmatpush.msra.mxu0 0.0
  %v2515 = vand.u32 %v2337, 4294901760
  %2516 = vmatpush.msra.mxu0 %v2515
  %v2517 = vand.u32 %v2336, 4294901760
  %2518 = vmatpush.msra.mxu0 %v2517
  %v2519 = vand.u32 %v584, 4294901760
  %2520 = vmatmul.f32.gmra.mxu0 %v2519
  %v2521 = vpop.f32.mrf.mxu0
  %v2522 = vadd.f32 %v2495, %v2521
  %v2523 = vand.u32 %v587, 4294901760
  %2524 = vmatmul.f32.gmra.mxu0 %v2523
  %v2525 = vpop.f32.mrf.mxu0
  %v2526 = vadd.f32 %v2499, %v2525
  %2527 = vdwg.mxu0
  %v2529 = vsel %vm29, %v2522, 0
  %v2532 = vsel %vm29, %v2526, 0
  %2534 = vmatpush.msra.mxu0 0.0
  %2535 = vmatpush.msra.mxu0 0.0
  %2536 = vmatpush.msra.mxu0 0.0
  %2537 = vmatpush.msra.mxu0 0.0
  %2538 = vmatpush.msra.mxu0 0.0
  %2539 = vmatpush.msra.mxu0 0.0
  %2540 = vmatpush.msra.mxu0 0.0
  %2541 = vmatpush.msra.mxu0 0.0
  %2542 = vmatpush.msra.mxu0 0.0
  %2543 = vmatpush.msra.mxu0 0.0
  %2544 = vmatpush.msra.mxu0 0.0
  %2545 = vmatpush.msra.mxu0 0.0
  %2546 = vmatpush.msra.mxu0 0.0
  %2547 = vmatpush.msra.mxu0 0.0
  %v2548 = vand.u32 %v2333, 4294901760
  %2549 = vmatpush.msra.mxu0 %v2548
  %v2550 = vand.u32 %v2329, 4294901760
  %2551 = vmatpush.msra.mxu0 %v2550
  %v2552 = vand.u32 %v2529, 4294901760
  %v2553 = vsub.f32 %v2529, %v2552
  %v2554 = vand.u32 %v2553, 4294901760
  %v2555 = vsub.f32 %v2553, %v2554
  %v2556 = vand.u32 %v2555, 4294901760
  %2557 = vmatmul.f32.gmra.mxu0 %v2556
  %v2558 = vpop.f32.mrf.mxu0
  %v2559 = vadd.f32 0.0, %v2558
  %v2560 = vand.u32 %v2532, 4294901760
  %v2561 = vsub.f32 %v2532, %v2560
  %v2562 = vand.u32 %v2561, 4294901760
  %v2563 = vsub.f32 %v2561, %v2562
  %v2564 = vand.u32 %v2563, 4294901760
  %2565 = vmatmul.f32.gmra.mxu0 %v2564
  %v2566 = vpop.f32.mrf.mxu0
  %v2567 = vadd.f32 0.0, %v2566
  %2568 = vdwg.mxu0
  %2569 = vmatpush.msra.mxu0 0.0
  %2570 = vmatpush.msra.mxu0 0.0
  %2571 = vmatpush.msra.mxu0 0.0
  %2572 = vmatpush.msra.mxu0 0.0
  %2573 = vmatpush.msra.mxu0 0.0
  %2574 = vmatpush.msra.mxu0 0.0
  %2575 = vmatpush.msra.mxu0 0.0
  %2576 = vmatpush.msra.mxu0 0.0
  %2577 = vmatpush.msra.mxu0 0.0
  %2578 = vmatpush.msra.mxu0 0.0
  %2579 = vmatpush.msra.mxu0 0.0
  %2580 = vmatpush.msra.mxu0 0.0
  %2581 = vmatpush.msra.mxu0 0.0
  %2582 = vmatpush.msra.mxu0 0.0
  %v2583 = vand.u32 %v2333, 4294901760
  %v2584 = vsub.f32 %v2333, %v2583
  %v2585 = vand.u32 %v2584, 4294901760
  %v2586 = vsub.f32 %v2584, %v2585
  %v2587 = vand.u32 %v2586, 4294901760
  %2588 = vmatpush.msra.mxu0 %v2587
  %v2589 = vand.u32 %v2329, 4294901760
  %v2590 = vsub.f32 %v2329, %v2589
  %v2591 = vand.u32 %v2590, 4294901760
  %v2592 = vsub.f32 %v2590, %v2591
  %v2593 = vand.u32 %v2592, 4294901760
  %2594 = vmatpush.msra.mxu0 %v2593
  %v2595 = vand.u32 %v2529, 4294901760
  %2596 = vmatmul.f32.gmra.mxu0 %v2595
  %v2597 = vpop.f32.mrf.mxu0
  %v2598 = vadd.f32 %v2559, %v2597
  %v2599 = vand.u32 %v2532, 4294901760
  %2600 = vmatmul.f32.gmra.mxu0 %v2599
  %v2601 = vpop.f32.mrf.mxu0
  %v2602 = vadd.f32 %v2567, %v2601
  %2603 = vdwg.mxu0
  %2604 = vmatpush.msra.mxu0 0.0
  %2605 = vmatpush.msra.mxu0 0.0
  %2606 = vmatpush.msra.mxu0 0.0
  %2607 = vmatpush.msra.mxu0 0.0
  %2608 = vmatpush.msra.mxu0 0.0
  %2609 = vmatpush.msra.mxu0 0.0
  %2610 = vmatpush.msra.mxu0 0.0
  %2611 = vmatpush.msra.mxu0 0.0
  %2612 = vmatpush.msra.mxu0 0.0
  %2613 = vmatpush.msra.mxu0 0.0
  %2614 = vmatpush.msra.mxu0 0.0
  %2615 = vmatpush.msra.mxu0 0.0
  %2616 = vmatpush.msra.mxu0 0.0
  %2617 = vmatpush.msra.mxu0 0.0
  %v2618 = vand.u32 %v2333, 4294901760
  %v2619 = vsub.f32 %v2333, %v2618
  %2620 = vmatpush.msra.mxu0 %v2619
  %v2621 = vand.u32 %v2329, 4294901760
  %v2622 = vsub.f32 %v2329, %v2621
  %2623 = vmatpush.msra.mxu0 %v2622
  %v2624 = vand.u32 %v2529, 4294901760
  %v2625 = vsub.f32 %v2529, %v2624
  %2626 = vmatmul.f32.gmra.mxu0 %v2625
  %v2627 = vpop.f32.mrf.mxu0
  %v2628 = vadd.f32 %v2598, %v2627
  %v2629 = vand.u32 %v2532, 4294901760
  %v2630 = vsub.f32 %v2532, %v2629
  %2631 = vmatmul.f32.gmra.mxu0 %v2630
  %v2632 = vpop.f32.mrf.mxu0
  %v2633 = vadd.f32 %v2602, %v2632
  %2634 = vdwg.mxu0
  %2635 = vmatpush.msra.mxu0 0.0
  %2636 = vmatpush.msra.mxu0 0.0
  %2637 = vmatpush.msra.mxu0 0.0
  %2638 = vmatpush.msra.mxu0 0.0
  %2639 = vmatpush.msra.mxu0 0.0
  %2640 = vmatpush.msra.mxu0 0.0
  %2641 = vmatpush.msra.mxu0 0.0
  %2642 = vmatpush.msra.mxu0 0.0
  %2643 = vmatpush.msra.mxu0 0.0
  %2644 = vmatpush.msra.mxu0 0.0
  %2645 = vmatpush.msra.mxu0 0.0
  %2646 = vmatpush.msra.mxu0 0.0
  %2647 = vmatpush.msra.mxu0 0.0
  %2648 = vmatpush.msra.mxu0 0.0
  %v2649 = vand.u32 %v2333, 4294901760
  %2650 = vmatpush.msra.mxu0 %v2649
  %v2651 = vand.u32 %v2329, 4294901760
  %2652 = vmatpush.msra.mxu0 %v2651
  %v2653 = vand.u32 %v2529, 4294901760
  %v2654 = vsub.f32 %v2529, %v2653
  %v2655 = vand.u32 %v2654, 4294901760
  %2656 = vmatmul.f32.gmra.mxu0 %v2655
  %v2657 = vpop.f32.mrf.mxu0
  %v2658 = vadd.f32 %v2628, %v2657
  %v2659 = vand.u32 %v2532, 4294901760
  %v2660 = vsub.f32 %v2532, %v2659
  %v2661 = vand.u32 %v2660, 4294901760
  %2662 = vmatmul.f32.gmra.mxu0 %v2661
  %v2663 = vpop.f32.mrf.mxu0
  %v2664 = vadd.f32 %v2633, %v2663
  %2665 = vdwg.mxu0
  %2666 = vmatpush.msra.mxu0 0.0
  %2667 = vmatpush.msra.mxu0 0.0
  %2668 = vmatpush.msra.mxu0 0.0
  %2669 = vmatpush.msra.mxu0 0.0
  %2670 = vmatpush.msra.mxu0 0.0
  %2671 = vmatpush.msra.mxu0 0.0
  %2672 = vmatpush.msra.mxu0 0.0
  %2673 = vmatpush.msra.mxu0 0.0
  %2674 = vmatpush.msra.mxu0 0.0
  %2675 = vmatpush.msra.mxu0 0.0
  %2676 = vmatpush.msra.mxu0 0.0
  %2677 = vmatpush.msra.mxu0 0.0
  %2678 = vmatpush.msra.mxu0 0.0
  %2679 = vmatpush.msra.mxu0 0.0
  %v2680 = vand.u32 %v2333, 4294901760
  %v2681 = vsub.f32 %v2333, %v2680
  %v2682 = vand.u32 %v2681, 4294901760
  %2683 = vmatpush.msra.mxu0 %v2682
  %v2684 = vand.u32 %v2329, 4294901760
  %v2685 = vsub.f32 %v2329, %v2684
  %v2686 = vand.u32 %v2685, 4294901760
  %2687 = vmatpush.msra.mxu0 %v2686
  %v2688 = vand.u32 %v2529, 4294901760
  %2689 = vmatmul.f32.gmra.mxu0 %v2688
  %v2690 = vpop.f32.mrf.mxu0
  %v2691 = vadd.f32 %v2658, %v2690
  %v2692 = vand.u32 %v2532, 4294901760
  %2693 = vmatmul.f32.gmra.mxu0 %v2692
  %v2694 = vpop.f32.mrf.mxu0
  %v2695 = vadd.f32 %v2664, %v2694
  %2696 = vdwg.mxu0
  %2697 = vmatpush.msra.mxu0 0.0
  %2698 = vmatpush.msra.mxu0 0.0
  %2699 = vmatpush.msra.mxu0 0.0
  %2700 = vmatpush.msra.mxu0 0.0
  %2701 = vmatpush.msra.mxu0 0.0
  %2702 = vmatpush.msra.mxu0 0.0
  %2703 = vmatpush.msra.mxu0 0.0
  %2704 = vmatpush.msra.mxu0 0.0
  %2705 = vmatpush.msra.mxu0 0.0
  %2706 = vmatpush.msra.mxu0 0.0
  %2707 = vmatpush.msra.mxu0 0.0
  %2708 = vmatpush.msra.mxu0 0.0
  %2709 = vmatpush.msra.mxu0 0.0
  %2710 = vmatpush.msra.mxu0 0.0
  %v2711 = vand.u32 %v2333, 4294901760
  %2712 = vmatpush.msra.mxu0 %v2711
  %v2713 = vand.u32 %v2329, 4294901760
  %2714 = vmatpush.msra.mxu0 %v2713
  %v2715 = vand.u32 %v2529, 4294901760
  %2716 = vmatmul.f32.gmra.mxu0 %v2715
  %v2717 = vpop.f32.mrf.mxu0
  %v2718 = vadd.f32 %v2691, %v2717
  %v2719 = vand.u32 %v2532, 4294901760
  %2720 = vmatmul.f32.gmra.mxu0 %v2719
  %v2721 = vpop.f32.mrf.mxu0
  %v2722 = vadd.f32 %v2695, %v2721
  %2723 = vdwg.mxu0
  %v2725 = vsel %vm29, %v2718, 0
  %v2728 = vsel %vm29, %v2722, 0
  %2730 = vmatpush.msra.mxu0 0.0
  %2731 = vmatpush.msra.mxu0 0.0
  %2732 = vmatpush.msra.mxu0 0.0
  %2733 = vmatpush.msra.mxu0 0.0
  %2734 = vmatpush.msra.mxu0 0.0
  %2735 = vmatpush.msra.mxu0 0.0
  %2736 = vmatpush.msra.mxu0 0.0
  %2737 = vmatpush.msra.mxu0 0.0
  %2738 = vmatpush.msra.mxu0 0.0
  %2739 = vmatpush.msra.mxu0 0.0
  %2740 = vmatpush.msra.mxu0 0.0
  %2741 = vmatpush.msra.mxu0 0.0
  %2742 = vmatpush.msra.mxu0 0.0
  %2743 = vmatpush.msra.mxu0 0.0
  %v2744 = vand.u32 %v558, 4294901760
  %2745 = vmatpush.msra.mxu0 %v2744
  %v2746 = vand.u32 %v557, 4294901760
  %2747 = vmatpush.msra.mxu0 %v2746
  %v2748 = vand.u32 %v2725, 4294901760
  %v2749 = vsub.f32 %v2725, %v2748
  %v2750 = vand.u32 %v2749, 4294901760
  %v2751 = vsub.f32 %v2749, %v2750
  %v2752 = vand.u32 %v2751, 4294901760
  %2753 = vmatmul.f32.gmra.mxu0 %v2752
  %v2754 = vpop.f32.mrf.mxu0
  %v2755 = vadd.f32 0.0, %v2754
  %v2756 = vand.u32 %v2728, 4294901760
  %v2757 = vsub.f32 %v2728, %v2756
  %v2758 = vand.u32 %v2757, 4294901760
  %v2759 = vsub.f32 %v2757, %v2758
  %v2760 = vand.u32 %v2759, 4294901760
  %2761 = vmatmul.f32.gmra.mxu0 %v2760
  %v2762 = vpop.f32.mrf.mxu0
  %v2763 = vadd.f32 0.0, %v2762
  %2764 = vdwg.mxu0
  %2765 = vmatpush.msra.mxu0 0.0
  %2766 = vmatpush.msra.mxu0 0.0
  %2767 = vmatpush.msra.mxu0 0.0
  %2768 = vmatpush.msra.mxu0 0.0
  %2769 = vmatpush.msra.mxu0 0.0
  %2770 = vmatpush.msra.mxu0 0.0
  %2771 = vmatpush.msra.mxu0 0.0
  %2772 = vmatpush.msra.mxu0 0.0
  %2773 = vmatpush.msra.mxu0 0.0
  %2774 = vmatpush.msra.mxu0 0.0
  %2775 = vmatpush.msra.mxu0 0.0
  %2776 = vmatpush.msra.mxu0 0.0
  %2777 = vmatpush.msra.mxu0 0.0
  %2778 = vmatpush.msra.mxu0 0.0
  %v2779 = vand.u32 %v558, 4294901760
  %v2780 = vsub.f32 %v558, %v2779
  %v2781 = vand.u32 %v2780, 4294901760
  %v2782 = vsub.f32 %v2780, %v2781
  %v2783 = vand.u32 %v2782, 4294901760
  %2784 = vmatpush.msra.mxu0 %v2783
  %v2785 = vand.u32 %v557, 4294901760
  %v2786 = vsub.f32 %v557, %v2785
  %v2787 = vand.u32 %v2786, 4294901760
  %v2788 = vsub.f32 %v2786, %v2787
  %v2789 = vand.u32 %v2788, 4294901760
  %2790 = vmatpush.msra.mxu0 %v2789
  %v2791 = vand.u32 %v2725, 4294901760
  %2792 = vmatmul.f32.gmra.mxu0 %v2791
  %v2793 = vpop.f32.mrf.mxu0
  %v2794 = vadd.f32 %v2755, %v2793
  %v2795 = vand.u32 %v2728, 4294901760
  %2796 = vmatmul.f32.gmra.mxu0 %v2795
  %v2797 = vpop.f32.mrf.mxu0
  %v2798 = vadd.f32 %v2763, %v2797
  %2799 = vdwg.mxu0
  %2800 = vmatpush.msra.mxu0 0.0
  %2801 = vmatpush.msra.mxu0 0.0
  %2802 = vmatpush.msra.mxu0 0.0
  %2803 = vmatpush.msra.mxu0 0.0
  %2804 = vmatpush.msra.mxu0 0.0
  %2805 = vmatpush.msra.mxu0 0.0
  %2806 = vmatpush.msra.mxu0 0.0
  %2807 = vmatpush.msra.mxu0 0.0
  %2808 = vmatpush.msra.mxu0 0.0
  %2809 = vmatpush.msra.mxu0 0.0
  %2810 = vmatpush.msra.mxu0 0.0
  %2811 = vmatpush.msra.mxu0 0.0
  %2812 = vmatpush.msra.mxu0 0.0
  %2813 = vmatpush.msra.mxu0 0.0
  %v2814 = vand.u32 %v558, 4294901760
  %v2815 = vsub.f32 %v558, %v2814
  %2816 = vmatpush.msra.mxu0 %v2815
  %v2817 = vand.u32 %v557, 4294901760
  %v2818 = vsub.f32 %v557, %v2817
  %2819 = vmatpush.msra.mxu0 %v2818
  %v2820 = vand.u32 %v2725, 4294901760
  %v2821 = vsub.f32 %v2725, %v2820
  %2822 = vmatmul.f32.gmra.mxu0 %v2821
  %v2823 = vpop.f32.mrf.mxu0
  %v2824 = vadd.f32 %v2794, %v2823
  %v2825 = vand.u32 %v2728, 4294901760
  %v2826 = vsub.f32 %v2728, %v2825
  %2827 = vmatmul.f32.gmra.mxu0 %v2826
  %v2828 = vpop.f32.mrf.mxu0
  %v2829 = vadd.f32 %v2798, %v2828
  %2830 = vdwg.mxu0
  %2831 = vmatpush.msra.mxu0 0.0
  %2832 = vmatpush.msra.mxu0 0.0
  %2833 = vmatpush.msra.mxu0 0.0
  %2834 = vmatpush.msra.mxu0 0.0
  %2835 = vmatpush.msra.mxu0 0.0
  %2836 = vmatpush.msra.mxu0 0.0
  %2837 = vmatpush.msra.mxu0 0.0
  %2838 = vmatpush.msra.mxu0 0.0
  %2839 = vmatpush.msra.mxu0 0.0
  %2840 = vmatpush.msra.mxu0 0.0
  %2841 = vmatpush.msra.mxu0 0.0
  %2842 = vmatpush.msra.mxu0 0.0
  %2843 = vmatpush.msra.mxu0 0.0
  %2844 = vmatpush.msra.mxu0 0.0
  %v2845 = vand.u32 %v558, 4294901760
  %2846 = vmatpush.msra.mxu0 %v2845
  %v2847 = vand.u32 %v557, 4294901760
  %2848 = vmatpush.msra.mxu0 %v2847
  %v2849 = vand.u32 %v2725, 4294901760
  %v2850 = vsub.f32 %v2725, %v2849
  %v2851 = vand.u32 %v2850, 4294901760
  %2852 = vmatmul.f32.gmra.mxu0 %v2851
  %v2853 = vpop.f32.mrf.mxu0
  %v2854 = vadd.f32 %v2824, %v2853
  %v2855 = vand.u32 %v2728, 4294901760
  %v2856 = vsub.f32 %v2728, %v2855
  %v2857 = vand.u32 %v2856, 4294901760
  %2858 = vmatmul.f32.gmra.mxu0 %v2857
  %v2859 = vpop.f32.mrf.mxu0
  %v2860 = vadd.f32 %v2829, %v2859
  %2861 = vdwg.mxu0
  %2862 = vmatpush.msra.mxu0 0.0
  %2863 = vmatpush.msra.mxu0 0.0
  %2864 = vmatpush.msra.mxu0 0.0
  %2865 = vmatpush.msra.mxu0 0.0
  %2866 = vmatpush.msra.mxu0 0.0
  %2867 = vmatpush.msra.mxu0 0.0
  %2868 = vmatpush.msra.mxu0 0.0
  %2869 = vmatpush.msra.mxu0 0.0
  %2870 = vmatpush.msra.mxu0 0.0
  %2871 = vmatpush.msra.mxu0 0.0
  %2872 = vmatpush.msra.mxu0 0.0
  %2873 = vmatpush.msra.mxu0 0.0
  %2874 = vmatpush.msra.mxu0 0.0
  %2875 = vmatpush.msra.mxu0 0.0
  %v2876 = vand.u32 %v558, 4294901760
  %v2877 = vsub.f32 %v558, %v2876
  %v2878 = vand.u32 %v2877, 4294901760
  %2879 = vmatpush.msra.mxu0 %v2878
  %v2880 = vand.u32 %v557, 4294901760
  %v2881 = vsub.f32 %v557, %v2880
  %v2882 = vand.u32 %v2881, 4294901760
  %2883 = vmatpush.msra.mxu0 %v2882
  %v2884 = vand.u32 %v2725, 4294901760
  %2885 = vmatmul.f32.gmra.mxu0 %v2884
  %v2886 = vpop.f32.mrf.mxu0
  %v2887 = vadd.f32 %v2854, %v2886
  %v2888 = vand.u32 %v2728, 4294901760
  %2889 = vmatmul.f32.gmra.mxu0 %v2888
  %v2890 = vpop.f32.mrf.mxu0
  %v2891 = vadd.f32 %v2860, %v2890
  %2892 = vdwg.mxu0
  %2893 = vmatpush.msra.mxu0 0.0
  %2894 = vmatpush.msra.mxu0 0.0
  %2895 = vmatpush.msra.mxu0 0.0
  %2896 = vmatpush.msra.mxu0 0.0
  %2897 = vmatpush.msra.mxu0 0.0
  %2898 = vmatpush.msra.mxu0 0.0
  %2899 = vmatpush.msra.mxu0 0.0
  %2900 = vmatpush.msra.mxu0 0.0
  %2901 = vmatpush.msra.mxu0 0.0
  %2902 = vmatpush.msra.mxu0 0.0
  %2903 = vmatpush.msra.mxu0 0.0
  %2904 = vmatpush.msra.mxu0 0.0
  %2905 = vmatpush.msra.mxu0 0.0
  %2906 = vmatpush.msra.mxu0 0.0
  %v2907 = vand.u32 %v558, 4294901760
  %2908 = vmatpush.msra.mxu0 %v2907
  %v2909 = vand.u32 %v557, 4294901760
  %2910 = vmatpush.msra.mxu0 %v2909
  %v2911 = vand.u32 %v2725, 4294901760
  %2912 = vmatmul.f32.gmra.mxu0 %v2911
  %v2913 = vpop.f32.mrf.mxu0
  %v2914 = vadd.f32 %v2887, %v2913
  %v2915 = vand.u32 %v2728, 4294901760
  %2916 = vmatmul.f32.gmra.mxu0 %v2915
  %v2917 = vpop.f32.mrf.mxu0
  %v2918 = vadd.f32 %v2891, %v2917
  %2919 = vdwg.mxu0
  %v2920 = vmul.f32 %v2914, %v2914
  %v2921 = vmul.f32 %v2918, %v2918
  %v2922 = vld [vmem:[%s4] sm:$0xf]
  %v2924 = vsel %vm29, %v2922, 0
  %2926 = vmatpush.msra.mxu0 0.0
  %2927 = vmatpush.msra.mxu0 0.0
  %2928 = vmatpush.msra.mxu0 0.0
  %2929 = vmatpush.msra.mxu0 0.0
  %2930 = vmatpush.msra.mxu0 0.0
  %2931 = vmatpush.msra.mxu0 0.0
  %2932 = vmatpush.msra.mxu0 0.0
  %2933 = vmatpush.msra.mxu0 0.0
  %2934 = vmatpush.msra.mxu0 0.0
  %2935 = vmatpush.msra.mxu0 0.0
  %2936 = vmatpush.msra.mxu0 0.0
  %2937 = vmatpush.msra.mxu0 0.0
  %2938 = vmatpush.msra.mxu0 0.0
  %2939 = vmatpush.msra.mxu0 0.0
  %v2940 = vand.u32 %v2921, 4294901760
  %2941 = vmatpush.msra.mxu0 %v2940
  %v2942 = vand.u32 %v2920, 4294901760
  %2943 = vmatpush.msra.mxu0 %v2942
  %v2944 = vand.u32 %v2924, 4294901760
  %v2945 = vsub.f32 %v2924, %v2944
  %v2946 = vand.u32 %v2945, 4294901760
  %v2947 = vsub.f32 %v2945, %v2946
  %v2948 = vand.u32 %v2947, 4294901760
  %2949 = vmatmul.f32.gmra.mxu0 %v2948
  %v2950 = vpop.f32.mrf.mxu0
  %v2951 = vadd.f32 0.0, %v2950
  %2952 = vdwg.mxu0
  %2953 = vmatpush.msra.mxu0 0.0
  %2954 = vmatpush.msra.mxu0 0.0
  %2955 = vmatpush.msra.mxu0 0.0
  %2956 = vmatpush.msra.mxu0 0.0
  %2957 = vmatpush.msra.mxu0 0.0
  %2958 = vmatpush.msra.mxu0 0.0
  %2959 = vmatpush.msra.mxu0 0.0
  %2960 = vmatpush.msra.mxu0 0.0
  %2961 = vmatpush.msra.mxu0 0.0
  %2962 = vmatpush.msra.mxu0 0.0
  %2963 = vmatpush.msra.mxu0 0.0
  %2964 = vmatpush.msra.mxu0 0.0
  %2965 = vmatpush.msra.mxu0 0.0
  %2966 = vmatpush.msra.mxu0 0.0
  %v2967 = vand.u32 %v2921, 4294901760
  %v2968 = vsub.f32 %v2921, %v2967
  %v2969 = vand.u32 %v2968, 4294901760
  %v2970 = vsub.f32 %v2968, %v2969
  %v2971 = vand.u32 %v2970, 4294901760
  %2972 = vmatpush.msra.mxu0 %v2971
  %v2973 = vand.u32 %v2920, 4294901760
  %v2974 = vsub.f32 %v2920, %v2973
  %v2975 = vand.u32 %v2974, 4294901760
  %v2976 = vsub.f32 %v2974, %v2975
  %v2977 = vand.u32 %v2976, 4294901760
  %2978 = vmatpush.msra.mxu0 %v2977
  %v2979 = vand.u32 %v2924, 4294901760
  %2980 = vmatmul.f32.gmra.mxu0 %v2979
  %v2981 = vpop.f32.mrf.mxu0
  %v2982 = vadd.f32 %v2951, %v2981
  %2983 = vdwg.mxu0
  %2984 = vmatpush.msra.mxu0 0.0
  %2985 = vmatpush.msra.mxu0 0.0
  %2986 = vmatpush.msra.mxu0 0.0
  %2987 = vmatpush.msra.mxu0 0.0
  %2988 = vmatpush.msra.mxu0 0.0
  %2989 = vmatpush.msra.mxu0 0.0
  %2990 = vmatpush.msra.mxu0 0.0
  %2991 = vmatpush.msra.mxu0 0.0
  %2992 = vmatpush.msra.mxu0 0.0
  %2993 = vmatpush.msra.mxu0 0.0
  %2994 = vmatpush.msra.mxu0 0.0
  %2995 = vmatpush.msra.mxu0 0.0
  %2996 = vmatpush.msra.mxu0 0.0
  %2997 = vmatpush.msra.mxu0 0.0
  %v2998 = vand.u32 %v2921, 4294901760
  %v2999 = vsub.f32 %v2921, %v2998
  %3000 = vmatpush.msra.mxu0 %v2999
  %v3001 = vand.u32 %v2920, 4294901760
  %v3002 = vsub.f32 %v2920, %v3001
  %3003 = vmatpush.msra.mxu0 %v3002
  %v3004 = vand.u32 %v2924, 4294901760
  %v3005 = vsub.f32 %v2924, %v3004
  %3006 = vmatmul.f32.gmra.mxu0 %v3005
  %v3007 = vpop.f32.mrf.mxu0
  %v3008 = vadd.f32 %v2982, %v3007
  %3009 = vdwg.mxu0
  %3010 = vmatpush.msra.mxu0 0.0
  %3011 = vmatpush.msra.mxu0 0.0
  %3012 = vmatpush.msra.mxu0 0.0
  %3013 = vmatpush.msra.mxu0 0.0
  %3014 = vmatpush.msra.mxu0 0.0
  %3015 = vmatpush.msra.mxu0 0.0
  %3016 = vmatpush.msra.mxu0 0.0
  %3017 = vmatpush.msra.mxu0 0.0
  %3018 = vmatpush.msra.mxu0 0.0
  %3019 = vmatpush.msra.mxu0 0.0
  %3020 = vmatpush.msra.mxu0 0.0
  %3021 = vmatpush.msra.mxu0 0.0
  %3022 = vmatpush.msra.mxu0 0.0
  %3023 = vmatpush.msra.mxu0 0.0
  %v3024 = vand.u32 %v2921, 4294901760
  %3025 = vmatpush.msra.mxu0 %v3024
  %v3026 = vand.u32 %v2920, 4294901760
  %3027 = vmatpush.msra.mxu0 %v3026
  %v3028 = vand.u32 %v2924, 4294901760
  %v3029 = vsub.f32 %v2924, %v3028
  %v3030 = vand.u32 %v3029, 4294901760
  %3031 = vmatmul.f32.gmra.mxu0 %v3030
  %v3032 = vpop.f32.mrf.mxu0
  %v3033 = vadd.f32 %v3008, %v3032
  %3034 = vdwg.mxu0
  %3035 = vmatpush.msra.mxu0 0.0
  %3036 = vmatpush.msra.mxu0 0.0
  %3037 = vmatpush.msra.mxu0 0.0
  %3038 = vmatpush.msra.mxu0 0.0
  %3039 = vmatpush.msra.mxu0 0.0
  %3040 = vmatpush.msra.mxu0 0.0
  %3041 = vmatpush.msra.mxu0 0.0
  %3042 = vmatpush.msra.mxu0 0.0
  %3043 = vmatpush.msra.mxu0 0.0
  %3044 = vmatpush.msra.mxu0 0.0
  %3045 = vmatpush.msra.mxu0 0.0
  %3046 = vmatpush.msra.mxu0 0.0
  %3047 = vmatpush.msra.mxu0 0.0
  %3048 = vmatpush.msra.mxu0 0.0
  %v3049 = vand.u32 %v2921, 4294901760
  %v3050 = vsub.f32 %v2921, %v3049
  %v3051 = vand.u32 %v3050, 4294901760
  %3052 = vmatpush.msra.mxu0 %v3051
  %v3053 = vand.u32 %v2920, 4294901760
  %v3054 = vsub.f32 %v2920, %v3053
  %v3055 = vand.u32 %v3054, 4294901760
  %3056 = vmatpush.msra.mxu0 %v3055
  %v3057 = vand.u32 %v2924, 4294901760
  %3058 = vmatmul.f32.gmra.mxu0 %v3057
  %v3059 = vpop.f32.mrf.mxu0
  %v3060 = vadd.f32 %v3033, %v3059
  %3061 = vdwg.mxu0
  %3062 = vmatpush.msra.mxu0 0.0
  %3063 = vmatpush.msra.mxu0 0.0
  %3064 = vmatpush.msra.mxu0 0.0
  %3065 = vmatpush.msra.mxu0 0.0
  %3066 = vmatpush.msra.mxu0 0.0
  %3067 = vmatpush.msra.mxu0 0.0
  %3068 = vmatpush.msra.mxu0 0.0
  %3069 = vmatpush.msra.mxu0 0.0
  %3070 = vmatpush.msra.mxu0 0.0
  %3071 = vmatpush.msra.mxu0 0.0
  %3072 = vmatpush.msra.mxu0 0.0
  %3073 = vmatpush.msra.mxu0 0.0
  %3074 = vmatpush.msra.mxu0 0.0
  %3075 = vmatpush.msra.mxu0 0.0
  %v3076 = vand.u32 %v2921, 4294901760
  %3077 = vmatpush.msra.mxu0 %v3076
  %v3078 = vand.u32 %v2920, 4294901760
  %3079 = vmatpush.msra.mxu0 %v3078
  %v3080 = vand.u32 %v2924, 4294901760
  %3081 = vmatmul.f32.gmra.mxu0 %v3080
  %v3082 = vpop.f32.mrf.mxu0
  %v3083 = vadd.f32 %v3060, %v3082
  %3084 = vdwg.mxu0
  %3085 = vst [vmem:[%s5] sm:$0xf] %v3083
  // Predicated region
  $region22: #{hybrid_qnn_forward.1} parent=0 // pred_check
    _
  $region23: #{hybrid_qnn_forward.1} parent=0 // pred_check_branch
    %3087 = sbr.rel (0) target = $region25
  $region24: #{hybrid_qnn_forward.1} parent=0 // pred_region
    _
  $region25: #{hybrid_qnn_forward.1} parent=0 // pred_fallthru
    _
  // Predicated region
  $region26: #{hybrid_qnn_forward.1} parent=0 // pred_check
    _
  $region27: #{hybrid_qnn_forward.1} parent=0 // pred_check_branch
    %3089 = sbr.rel (0) target = $region29
  $region28: #{hybrid_qnn_forward.1} parent=0 // pred_region
    _
  $region29: #{hybrid_qnn_forward.1} parent=0 // pred_fallthru
    _

</llo_original>
